<compile_context>
chip_gen: v6e
topology: v6e:2x2x1
jax: 0.10.0
libtpu: 0.0.40
codegen_flags: <defaults>
</compile_context>

<pallas_src>
import functools

import jax
import jax.numpy as jnp
import numpy as np
from jax import lax
from jax.experimental import pallas as pl
from jax.experimental.pallas import tpu as pltpu


def _fused_convblock_kernel(x_ref, w_ref, s_ref, b_ref, out_ref, pad_ref, *,
                            H, W, cp, n_layers, relu_flags, cout_last):
    # x_ref   : (1, H, W, cp)        NHWC input, channels zero-padded to cp lanes
    # w_ref   : (L, 9*cp, cp)        im2col weights (tap-major rows), zero-padded
    # s_ref   : (L, 1, cp)           folded BN scale (gamma / sqrt(var+eps)), padded with 0
    # b_ref   : (L, 1, cp)           folded BN bias (includes conv bias), padded with 0
    # out_ref : (1, cout_last, H*W)  NCHW-flat output (lane-dense: last dim = H*W)
    # pad_ref : (H+2, W+2, cp)       VMEM scratch for the reflect-padded activation
    HW = H * W
    act = x_ref[0].astype(jnp.float32)                       # (H, W, cp)
    y = None
    for l in range(n_layers):
        # ---- in-kernel reflect padding (p=1) into VMEM scratch ----
        pad_ref[1:H + 1, 1:W + 1, :] = act                    # interior
        pad_ref[0:1, 1:W + 1, :] = act[1:2]                   # top    = row 1
        pad_ref[H + 1:H + 2, 1:W + 1, :] = act[H - 2:H - 1]   # bottom = row H-2
        pad_ref[:, 0:1, :] = pad_ref[:, 2:3, :]               # left   = padded col 2
        pad_ref[:, W + 1:W + 2, :] = pad_ref[:, W - 1:W, :]   # right  = padded col W-1

        # ---- im2col: one (HW, 9*cp) patch matrix, single MXU matmul ----
        cols = [pad_ref[dy:dy + H, dx:dx + W, :].reshape(HW, cp)
                for dy in range(3) for dx in range(3)]
        patches = jnp.concatenate(cols, axis=-1)              # (HW, 9*cp), 128-aligned concat
        y = jnp.dot(patches, w_ref[l], preferred_element_type=jnp.float32)  # (HW, cp)

        # ---- folded BN affine (+ conv bias) and ReLU epilogue ----
        y = y * s_ref[l] + b_ref[l]
        if relu_flags[l]:
            y = jnp.maximum(y, 0.0)
        if l + 1 < n_layers:
            act = y.reshape(H, W, cp)                          # stays in f32, never leaves VMEM

    # ---- lane-dense NCHW-flat store: (cout_last, H*W), last dim multiple of 128 ----
    y_t = jnp.transpose(y)                                     # (cp, HW), well-tiled f32 transpose
    out_ref[0] = y_t[:cout_last, :].astype(out_ref.dtype)


def conv_block_forward(x_nchw, params, *, last_relu=True, eps=1e-5):
    """Pallas equivalent of ConvBlock.forward(input) with norm='batch' (eval mode).

    x_nchw: (B, C, H, W) float32. params: list of per-layer dicts with keys
    conv_w (Cout,Cin,3,3), conv_b, gamma, beta, running_mean, running_var.
    """
    B, cin0, H, W = x_nchw.shape
    n_layers = len(params)
    HW = H * W
    couts = [int(p["conv_w"].shape[0]) for p in params]
    c_max = max([int(cin0)] + couts)
    cp = ((c_max + 127) // 128) * 128          # pad every channel dim to full lanes
    cout_last = couts[-1]

    # Pre-pack weights: (3,3,Cin,Cout) -> zero-padded (9*cp, cp) im2col block per layer;
    # fold eval-mode BatchNorm (+ conv bias) into per-channel scale/bias, padded with 0.
    w_list, s_list, b_list, relu_flags = [], [], [], []
    cin = int(cin0)
    for i, p in enumerate(params):
        cout = couts[i]
        w = jnp.transpose(p["conv_w"], (2, 3, 1, 0))                     # (3,3,cin,cout)
        w = jnp.pad(w, ((0, 0), (0, 0), (0, cp - cin), (0, cp - cout)))
        w_list.append(w.reshape(9 * cp, cp).astype(jnp.float32))
        inv_std = 1.0 / jnp.sqrt(p["running_var"] + eps)
        scale = p["gamma"] * inv_std
        bias = (p["conv_b"] - p["running_mean"]) * scale + p["beta"]
        s_list.append(jnp.pad(scale.reshape(1, cout),
                              ((0, 0), (0, cp - cout))).astype(jnp.float32))
        b_list.append(jnp.pad(bias.reshape(1, cout),
                              ((0, 0), (0, cp - cout))).astype(jnp.float32))
        relu_flags.append(bool(last_relu or (i < n_layers - 1)))
        cin = cout
    w_all = jnp.stack(w_list)                  # (L, 9*cp, cp)
    s_all = jnp.stack(s_list)                  # (L, 1, cp)
    b_all = jnp.stack(b_list)                  # (L, 1, cp)

    # NCHW -> NHWC + zero-pad input channels to cp lanes (cheap glue on a tiny input).
    x_nhwc = jnp.transpose(x_nchw, (0, 2, 3, 1))
    x_nhwc = jnp.pad(x_nhwc, ((0, 0), (0, 0), (0, 0), (0, cp - cin0)))

    kernel = functools.partial(_fused_convblock_kernel, H=H, W=W, cp=cp,
                               n_layers=n_layers, relu_flags=tuple(relu_flags),
                               cout_last=cout_last)

    y = pl.pallas_call(
        kernel,
        out_shape=jax.ShapeDtypeStruct((B, cout_last, HW), x_nchw.dtype),
        grid=(B,),
        in_specs=[
            pl.BlockSpec((1, H, W, cp), lambda b: (b, 0, 0, 0)),
            pl.BlockSpec((n_layers, 9 * cp, cp), lambda b: (0, 0, 0)),
            pl.BlockSpec((n_layers, 1, cp), lambda b: (0, 0, 0)),
            pl.BlockSpec((n_layers, 1, cp), lambda b: (0, 0, 0)),
        ],
        out_specs=pl.BlockSpec((1, cout_last, HW), lambda b: (b, 0, 0)),
        scratch_shapes=[pltpu.VMEM((H + 2, W + 2, cp), jnp.float32)],
        compiler_params=pltpu.CompilerParams(
            dimension_semantics=("parallel",),
            vmem_limit_bytes=32 * 1024 * 1024),
    )(x_nhwc, w_all, s_all, b_all)

    # Kernel output is already NCHW-flat; only a metadata reshape remains.
    return y.reshape(B, cout_last, H, W)


def conv_block_smart_forward(x, params, *, last_relu=True):
    """TemporallySharedBlock.smart_forward: merge (b, t) for 5-D inputs."""
    # TODO(synk): pad_value masking branch of smart_forward is not implemented.
    if x.ndim == 5:
        b, t, c, h, w = x.shape
        y = conv_block_forward(x.reshape(b * t, c, h, w), params, last_relu=last_relu)
        return y.reshape(b, t, y.shape[1], h, w)
    return conv_block_forward(x, params, last_relu=last_relu)


def _reference(x_nchw, params, *, last_relu=True, eps=1e-5):
    """Pure-JAX reference mirroring the PyTorch forward (eval-mode BatchNorm)."""
    n_layers = len(params)
    x = jnp.transpose(x_nchw, (0, 2, 3, 1))
    for i, p in enumerate(params):
        xp = jnp.pad(x, ((0, 0), (1, 1), (1, 1), (0, 0)), mode="reflect")
        w_hwio = jnp.transpose(p["conv_w"], (2, 3, 1, 0))
        y = lax.conv_general_dilated(
            xp, w_hwio, window_strides=(1, 1), padding="VALID",
            dimension_numbers=("NHWC", "HWIO", "NHWC"),
            precision=lax.Precision.HIGHEST,
        ) + p["conv_b"]
        y = (y - p["running_mean"]) / jnp.sqrt(p["running_var"] + eps)
        y = y * p["gamma"] + p["beta"]
        if last_relu or (i < n_layers - 1):
            y = jnp.maximum(y, 0.0)
        x = y
    return jnp.transpose(x, (0, 3, 1, 2))


if __name__ == "__main__":
    # ConvBlock(nkernels=[4, 8, 16], norm='batch', last_relu=True, padding_mode='reflect')
    nkernels = [4, 8, 16]
    B, H, W = 2, 16, 16

    key = jax.random.PRNGKey(0)
    params = []
    for i in range(len(nkernels) - 1):
        cin, cout = nkernels[i], nkernels[i + 1]
        key, kw, kb, kg, kbe, km, kv = jax.random.split(key, 7)
        bound = 1.0 / np.sqrt(cin * 9)                    # PyTorch Conv2d default init
        params.append(dict(
            conv_w=jax.random.uniform(kw, (cout, cin, 3, 3), jnp.float32, -bound, bound),
            conv_b=jax.random.uniform(kb, (cout,), jnp.float32, -bound, bound),
            gamma=1.0 + 0.1 * jax.random.normal(kg, (cout,), jnp.float32),
            beta=0.1 * jax.random.normal(kbe, (cout,), jnp.float32),
            running_mean=0.1 * jax.random.normal(km, (cout,), jnp.float32),
            running_var=jnp.abs(1.0 + 0.1 * jax.random.normal(kv, (cout,), jnp.float32)),
        ))

    x = jax.random.normal(key, (B, nkernels[0], H, W), jnp.float32)

    out = conv_block_forward(x, params, last_relu=True)
    jax.block_until_ready(out)

    ref_out = _reference(x, params, last_relu=True)
    np.testing.assert_allclose(np.asarray(out), np.asarray(ref_out),
                               rtol=1e-3, atol=1e-3)

    # smart_forward 5-D path (merge batch x time)
    x5 = x.reshape(1, B, nkernels[0], H, W)
    out5 = conv_block_smart_forward(x5, params, last_relu=True)
    jax.block_until_ready(out5)
    np.testing.assert_allclose(np.asarray(out5[0]), np.asarray(ref_out),
                               rtol=1e-3, atol=1e-3)

    print("KERNEL_OK")
</pallas_src>

<mosaic_0001>
module attributes {stable_mosaic.version = 11 : i64} {
  func.func @_fused_convblock_kernel(%arg0: i32, %arg1: memref<1x16x16x128xf32, #tpu.memory_space<vmem>>, %arg2: memref<2x1152x128xf32, #tpu.memory_space<vmem>>, %arg3: memref<2x1x128xf32, #tpu.memory_space<vmem>>, %arg4: memref<2x1x128xf32, #tpu.memory_space<vmem>>, %arg5: memref<1x16x256xf32, #tpu.memory_space<vmem>>, %arg6: memref<18x18x128xf32, #tpu.memory_space<vmem>>) attributes {dimension_semantics = [#tpu.dimension_semantics<parallel>], iteration_bounds = array<i64: 2>, scalar_prefetch = 0 : i64, scratch_operands = 1 : i64, tpu.core_type = #tpu.core_type<tc>, window_params = [{transform_indices = @transform_0, window_bounds = array<i64: 1, 16, 16, 128>}, {pipeline_mode = #tpu.pipeline_mode<synchronous>, transform_indices = @transform_1, window_bounds = array<i64: 2, 1152, 128>}, {pipeline_mode = #tpu.pipeline_mode<synchronous>, transform_indices = @transform_2, window_bounds = array<i64: 2, 1, 128>}, {pipeline_mode = #tpu.pipeline_mode<synchronous>, transform_indices = @transform_3, window_bounds = array<i64: 2, 1, 128>}, {transform_indices = @transform_4, window_bounds = array<i64: 1, 16, 256>}]} {
    %c0 = arith.constant 0 : index
    %c0_0 = arith.constant 0 : index
    %c0_1 = arith.constant 0 : index
    %c0_2 = arith.constant 0 : index
    %0 = vector.load %arg1[%c0, %c0_0, %c0_1, %c0_2] : memref<1x16x16x128xf32, #tpu.memory_space<vmem>>, vector<1x16x16x128xf32>
    %1 = vector.shape_cast %0 : vector<1x16x16x128xf32> to vector<16x16x128xf32>
    %c1 = arith.constant 1 : index
    %c1_3 = arith.constant 1 : index
    %c0_4 = arith.constant 0 : index
    %2 = vector.load %arg6[%c1, %c1_3, %c0_4] : memref<18x18x128xf32, #tpu.memory_space<vmem>>, vector<16x16x128xf32>
    tpu.vector_store %arg6[%c1, %c1_3, %c0_4], %1 {strides = array<i32>} : memref<18x18x128xf32, #tpu.memory_space<vmem>>, vector<16x16x128xf32>,
    %3 = vector.extract_strided_slice %1 {offsets = [1, 0, 0], sizes = [1, 16, 128], strides = [1, 1, 1]} : vector<16x16x128xf32> to vector<1x16x128xf32>
    %c0_5 = arith.constant 0 : index
    %c1_6 = arith.constant 1 : index
    %c0_7 = arith.constant 0 : index
    %4 = vector.load %arg6[%c0_5, %c1_6, %c0_7] : memref<18x18x128xf32, #tpu.memory_space<vmem>>, vector<1x16x128xf32>
    tpu.vector_store %arg6[%c0_5, %c1_6, %c0_7], %3 {strides = array<i32>} : memref<18x18x128xf32, #tpu.memory_space<vmem>>, vector<1x16x128xf32>,
    %5 = vector.extract_strided_slice %1 {offsets = [14, 0, 0], sizes = [1, 16, 128], strides = [1, 1, 1]} : vector<16x16x128xf32> to vector<1x16x128xf32>
    %c17 = arith.constant 17 : index
    %c1_8 = arith.constant 1 : index
    %c0_9 = arith.constant 0 : index
    %6 = vector.load %arg6[%c17, %c1_8, %c0_9] : memref<18x18x128xf32, #tpu.memory_space<vmem>>, vector<1x16x128xf32>
    tpu.vector_store %arg6[%c17, %c1_8, %c0_9], %5 {strides = array<i32>} : memref<18x18x128xf32, #tpu.memory_space<vmem>>, vector<1x16x128xf32>,
    %c0_10 = arith.constant 0 : index
    %c2 = arith.constant 2 : index
    %c0_11 = arith.constant 0 : index
    %7 = vector.load %arg6[%c0_10, %c2, %c0_11] : memref<18x18x128xf32, #tpu.memory_space<vmem>>, vector<18x1x128xf32>
    %c0_12 = arith.constant 0 : index
    %c0_13 = arith.constant 0 : index
    %c0_14 = arith.constant 0 : index
    %8 = vector.load %arg6[%c0_12, %c0_13, %c0_14] : memref<18x18x128xf32, #tpu.memory_space<vmem>>, vector<18x1x128xf32>
    tpu.vector_store %arg6[%c0_12, %c0_13, %c0_14], %7 {strides = array<i32>} : memref<18x18x128xf32, #tpu.memory_space<vmem>>, vector<18x1x128xf32>,
    %c0_15 = arith.constant 0 : index
    %c15 = arith.constant 15 : index
    %c0_16 = arith.constant 0 : index
    %9 = vector.load %arg6[%c0_15, %c15, %c0_16] : memref<18x18x128xf32, #tpu.memory_space<vmem>>, vector<18x1x128xf32>
    %c0_17 = arith.constant 0 : index
    %c17_18 = arith.constant 17 : index
    %c0_19 = arith.constant 0 : index
    %10 = vector.load %arg6[%c0_17, %c17_18, %c0_19] : memref<18x18x128xf32, #tpu.memory_space<vmem>>, vector<18x1x128xf32>
    tpu.vector_store %arg6[%c0_17, %c17_18, %c0_19], %9 {strides = array<i32>} : memref<18x18x128xf32, #tpu.memory_space<vmem>>, vector<18x1x128xf32>,
    %c0_20 = arith.constant 0 : index
    %c0_21 = arith.constant 0 : index
    %c0_22 = arith.constant 0 : index
    %11 = vector.load %arg6[%c0_20, %c0_21, %c0_22] : memref<18x18x128xf32, #tpu.memory_space<vmem>>, vector<16x16x128xf32>
    %12 = vector.shape_cast %11 : vector<16x16x128xf32> to vector<256x128xf32>
    %c0_23 = arith.constant 0 : index
    %c1_24 = arith.constant 1 : index
    %c0_25 = arith.constant 0 : index
    %13 = vector.load %arg6[%c0_23, %c1_24, %c0_25] : memref<18x18x128xf32, #tpu.memory_space<vmem>>, vector<16x16x128xf32>
    %14 = vector.shape_cast %13 : vector<16x16x128xf32> to vector<256x128xf32>
    %c0_26 = arith.constant 0 : index
    %c2_27 = arith.constant 2 : index
    %c0_28 = arith.constant 0 : index
    %15 = vector.load %arg6[%c0_26, %c2_27, %c0_28] : memref<18x18x128xf32, #tpu.memory_space<vmem>>, vector<16x16x128xf32>
    %16 = vector.shape_cast %15 : vector<16x16x128xf32> to vector<256x128xf32>
    %c1_29 = arith.constant 1 : index
    %c0_30 = arith.constant 0 : index
    %c0_31 = arith.constant 0 : index
    %17 = vector.load %arg6[%c1_29, %c0_30, %c0_31] : memref<18x18x128xf32, #tpu.memory_space<vmem>>, vector<16x16x128xf32>
    %18 = vector.shape_cast %17 : vector<16x16x128xf32> to vector<256x128xf32>
    %c1_32 = arith.constant 1 : index
    %c1_33 = arith.constant 1 : index
    %c0_34 = arith.constant 0 : index
    %19 = vector.load %arg6[%c1_32, %c1_33, %c0_34] : memref<18x18x128xf32, #tpu.memory_space<vmem>>, vector<16x16x128xf32>
    %20 = vector.shape_cast %19 : vector<16x16x128xf32> to vector<256x128xf32>
    %c1_35 = arith.constant 1 : index
    %c2_36 = arith.constant 2 : index
    %c0_37 = arith.constant 0 : index
    %21 = vector.load %arg6[%c1_35, %c2_36, %c0_37] : memref<18x18x128xf32, #tpu.memory_space<vmem>>, vector<16x16x128xf32>
    %22 = vector.shape_cast %21 : vector<16x16x128xf32> to vector<256x128xf32>
    %c2_38 = arith.constant 2 : index
    %c0_39 = arith.constant 0 : index
    %c0_40 = arith.constant 0 : index
    %23 = vector.load %arg6[%c2_38, %c0_39, %c0_40] : memref<18x18x128xf32, #tpu.memory_space<vmem>>, vector<16x16x128xf32>
    %24 = vector.shape_cast %23 : vector<16x16x128xf32> to vector<256x128xf32>
    %c2_41 = arith.constant 2 : index
    %c1_42 = arith.constant 1 : index
    %c0_43 = arith.constant 0 : index
    %25 = vector.load %arg6[%c2_41, %c1_42, %c0_43] : memref<18x18x128xf32, #tpu.memory_space<vmem>>, vector<16x16x128xf32>
    %26 = vector.shape_cast %25 : vector<16x16x128xf32> to vector<256x128xf32>
    %c2_44 = arith.constant 2 : index
    %c2_45 = arith.constant 2 : index
    %c0_46 = arith.constant 0 : index
    %27 = vector.load %arg6[%c2_44, %c2_45, %c0_46] : memref<18x18x128xf32, #tpu.memory_space<vmem>>, vector<16x16x128xf32>
    %28 = vector.shape_cast %27 : vector<16x16x128xf32> to vector<256x128xf32>
    %29 = tpu.concatenate %12, %14, %16, %18, %20, %22, %24, %26, %28 in 1 : vector<256x128xf32>, vector<256x128xf32>, vector<256x128xf32>, vector<256x128xf32>, vector<256x128xf32>, vector<256x128xf32>, vector<256x128xf32>, vector<256x128xf32>, vector<256x128xf32> -> vector<256x1152xf32>
    %c0_47 = arith.constant 0 : index
    %c0_48 = arith.constant 0 : index
    %c0_49 = arith.constant 0 : index
    %30 = vector.load %arg2[%c0_47, %c0_48, %c0_49] : memref<2x1152x128xf32, #tpu.memory_space<vmem>>, vector<1x1152x128xf32>
    %31 = vector.shape_cast %30 : vector<1x1152x128xf32> to vector<1152x128xf32>
    %cst = arith.constant dense<0.000000e+00> : vector<256x128xf32>
    %32 = tpu.matmul %29, %31, %cst {dimension_numbers = #tpu.dot_dimension_numbers<[1], [0], [0], [1], [0, 0, 1, 1], [], []>} : vector<256x1152xf32>, vector<1152x128xf32>, vector<256x128xf32> -> vector<256x128xf32>
    %c0_50 = arith.constant 0 : index
    %c0_51 = arith.constant 0 : index
    %c0_52 = arith.constant 0 : index
    %33 = vector.load %arg3[%c0_50, %c0_51, %c0_52] : memref<2x1x128xf32, #tpu.memory_space<vmem>>, vector<1x1x128xf32>
    %34 = vector.shape_cast %33 : vector<1x1x128xf32> to vector<1x128xf32>
    %35 = vector.broadcast %34 : vector<1x128xf32> to vector<256x128xf32>
    %36 = arith.mulf %32, %35 : vector<256x128xf32>
    %c0_53 = arith.constant 0 : index
    %c0_54 = arith.constant 0 : index
    %c0_55 = arith.constant 0 : index
    %37 = vector.load %arg4[%c0_53, %c0_54, %c0_55] : memref<2x1x128xf32, #tpu.memory_space<vmem>>, vector<1x1x128xf32>
    %38 = vector.shape_cast %37 : vector<1x1x128xf32> to vector<1x128xf32>
    %39 = vector.broadcast %38 : vector<1x128xf32> to vector<256x128xf32>
    %40 = arith.addf %36, %39 : vector<256x128xf32>
    %cst_56 = arith.constant 0.000000e+00 : f32
    %41 = vector.broadcast %cst_56 : f32 to vector<256x128xf32>
    %42 = arith.maximumf %40, %41 : vector<256x128xf32>
    %43 = vector.shape_cast %42 : vector<256x128xf32> to vector<16x16x128xf32>
    %c1_57 = arith.constant 1 : index
    %c1_58 = arith.constant 1 : index
    %c0_59 = arith.constant 0 : index
    %44 = vector.load %arg6[%c1_57, %c1_58, %c0_59] : memref<18x18x128xf32, #tpu.memory_space<vmem>>, vector<16x16x128xf32>
    tpu.vector_store %arg6[%c1_57, %c1_58, %c0_59], %43 {strides = array<i32>} : memref<18x18x128xf32, #tpu.memory_space<vmem>>, vector<16x16x128xf32>,
    %45 = vector.extract_strided_slice %43 {offsets = [1, 0, 0], sizes = [1, 16, 128], strides = [1, 1, 1]} : vector<16x16x128xf32> to vector<1x16x128xf32>
    %c0_60 = arith.constant 0 : index
    %c1_61 = arith.constant 1 : index
    %c0_62 = arith.constant 0 : index
    %46 = vector.load %arg6[%c0_60, %c1_61, %c0_62] : memref<18x18x128xf32, #tpu.memory_space<vmem>>, vector<1x16x128xf32>
    tpu.vector_store %arg6[%c0_60, %c1_61, %c0_62], %45 {strides = array<i32>} : memref<18x18x128xf32, #tpu.memory_space<vmem>>, vector<1x16x128xf32>,
    %47 = vector.extract_strided_slice %43 {offsets = [14, 0, 0], sizes = [1, 16, 128], strides = [1, 1, 1]} : vector<16x16x128xf32> to vector<1x16x128xf32>
    %c17_63 = arith.constant 17 : index
    %c1_64 = arith.constant 1 : index
    %c0_65 = arith.constant 0 : index
    %48 = vector.load %arg6[%c17_63, %c1_64, %c0_65] : memref<18x18x128xf32, #tpu.memory_space<vmem>>, vector<1x16x128xf32>
    tpu.vector_store %arg6[%c17_63, %c1_64, %c0_65], %47 {strides = array<i32>} : memref<18x18x128xf32, #tpu.memory_space<vmem>>, vector<1x16x128xf32>,
    %c0_66 = arith.constant 0 : index
    %c2_67 = arith.constant 2 : index
    %c0_68 = arith.constant 0 : index
    %49 = vector.load %arg6[%c0_66, %c2_67, %c0_68] : memref<18x18x128xf32, #tpu.memory_space<vmem>>, vector<18x1x128xf32>
    %c0_69 = arith.constant 0 : index
    %c0_70 = arith.constant 0 : index
    %c0_71 = arith.constant 0 : index
    %50 = vector.load %arg6[%c0_69, %c0_70, %c0_71] : memref<18x18x128xf32, #tpu.memory_space<vmem>>, vector<18x1x128xf32>
    tpu.vector_store %arg6[%c0_69, %c0_70, %c0_71], %49 {strides = array<i32>} : memref<18x18x128xf32, #tpu.memory_space<vmem>>, vector<18x1x128xf32>,
    %c0_72 = arith.constant 0 : index
    %c15_73 = arith.constant 15 : index
    %c0_74 = arith.constant 0 : index
    %51 = vector.load %arg6[%c0_72, %c15_73, %c0_74] : memref<18x18x128xf32, #tpu.memory_space<vmem>>, vector<18x1x128xf32>
    %c0_75 = arith.constant 0 : index
    %c17_76 = arith.constant 17 : index
    %c0_77 = arith.constant 0 : index
    %52 = vector.load %arg6[%c0_75, %c17_76, %c0_77] : memref<18x18x128xf32, #tpu.memory_space<vmem>>, vector<18x1x128xf32>
    tpu.vector_store %arg6[%c0_75, %c17_76, %c0_77], %51 {strides = array<i32>} : memref<18x18x128xf32, #tpu.memory_space<vmem>>, vector<18x1x128xf32>,
    %c0_78 = arith.constant 0 : index
    %c0_79 = arith.constant 0 : index
    %c0_80 = arith.constant 0 : index
    %53 = vector.load %arg6[%c0_78, %c0_79, %c0_80] : memref<18x18x128xf32, #tpu.memory_space<vmem>>, vector<16x16x128xf32>
    %54 = vector.shape_cast %53 : vector<16x16x128xf32> to vector<256x128xf32>
    %c0_81 = arith.constant 0 : index
    %c1_82 = arith.constant 1 : index
    %c0_83 = arith.constant 0 : index
    %55 = vector.load %arg6[%c0_81, %c1_82, %c0_83] : memref<18x18x128xf32, #tpu.memory_space<vmem>>, vector<16x16x128xf32>
    %56 = vector.shape_cast %55 : vector<16x16x128xf32> to vector<256x128xf32>
    %c0_84 = arith.constant 0 : index
    %c2_85 = arith.constant 2 : index
    %c0_86 = arith.constant 0 : index
    %57 = vector.load %arg6[%c0_84, %c2_85, %c0_86] : memref<18x18x128xf32, #tpu.memory_space<vmem>>, vector<16x16x128xf32>
    %58 = vector.shape_cast %57 : vector<16x16x128xf32> to vector<256x128xf32>
    %c1_87 = arith.constant 1 : index
    %c0_88 = arith.constant 0 : index
    %c0_89 = arith.constant 0 : index
    %59 = vector.load %arg6[%c1_87, %c0_88, %c0_89] : memref<18x18x128xf32, #tpu.memory_space<vmem>>, vector<16x16x128xf32>
    %60 = vector.shape_cast %59 : vector<16x16x128xf32> to vector<256x128xf32>
    %c1_90 = arith.constant 1 : index
    %c1_91 = arith.constant 1 : index
    %c0_92 = arith.constant 0 : index
    %61 = vector.load %arg6[%c1_90, %c1_91, %c0_92] : memref<18x18x128xf32, #tpu.memory_space<vmem>>, vector<16x16x128xf32>
    %62 = vector.shape_cast %61 : vector<16x16x128xf32> to vector<256x128xf32>
    %c1_93 = arith.constant 1 : index
    %c2_94 = arith.constant 2 : index
    %c0_95 = arith.constant 0 : index
    %63 = vector.load %arg6[%c1_93, %c2_94, %c0_95] : memref<18x18x128xf32, #tpu.memory_space<vmem>>, vector<16x16x128xf32>
    %64 = vector.shape_cast %63 : vector<16x16x128xf32> to vector<256x128xf32>
    %c2_96 = arith.constant 2 : index
    %c0_97 = arith.constant 0 : index
    %c0_98 = arith.constant 0 : index
    %65 = vector.load %arg6[%c2_96, %c0_97, %c0_98] : memref<18x18x128xf32, #tpu.memory_space<vmem>>, vector<16x16x128xf32>
    %66 = vector.shape_cast %65 : vector<16x16x128xf32> to vector<256x128xf32>
    %c2_99 = arith.constant 2 : index
    %c1_100 = arith.constant 1 : index
    %c0_101 = arith.constant 0 : index
    %67 = vector.load %arg6[%c2_99, %c1_100, %c0_101] : memref<18x18x128xf32, #tpu.memory_space<vmem>>, vector<16x16x128xf32>
    %68 = vector.shape_cast %67 : vector<16x16x128xf32> to vector<256x128xf32>
    %c2_102 = arith.constant 2 : index
    %c2_103 = arith.constant 2 : index
    %c0_104 = arith.constant 0 : index
    %69 = vector.load %arg6[%c2_102, %c2_103, %c0_104] : memref<18x18x128xf32, #tpu.memory_space<vmem>>, vector<16x16x128xf32>
    %70 = vector.shape_cast %69 : vector<16x16x128xf32> to vector<256x128xf32>
    %71 = tpu.concatenate %54, %56, %58, %60, %62, %64, %66, %68, %70 in 1 : vector<256x128xf32>, vector<256x128xf32>, vector<256x128xf32>, vector<256x128xf32>, vector<256x128xf32>, vector<256x128xf32>, vector<256x128xf32>, vector<256x128xf32>, vector<256x128xf32> -> vector<256x1152xf32>
    %c1_105 = arith.constant 1 : index
    %c0_106 = arith.constant 0 : index
    %c0_107 = arith.constant 0 : index
    %72 = vector.load %arg2[%c1_105, %c0_106, %c0_107] : memref<2x1152x128xf32, #tpu.memory_space<vmem>>, vector<1x1152x128xf32>
    %73 = vector.shape_cast %72 : vector<1x1152x128xf32> to vector<1152x128xf32>
    %cst_108 = arith.constant dense<0.000000e+00> : vector<256x128xf32>
    %74 = tpu.matmul %71, %73, %cst_108 {dimension_numbers = #tpu.dot_dimension_numbers<[1], [0], [0], [1], [0, 0, 1, 1], [], []>} : vector<256x1152xf32>, vector<1152x128xf32>, vector<256x128xf32> -> vector<256x128xf32>
    %c1_109 = arith.constant 1 : index
    %c0_110 = arith.constant 0 : index
    %c0_111 = arith.constant 0 : index
    %75 = vector.load %arg3[%c1_109, %c0_110, %c0_111] : memref<2x1x128xf32, #tpu.memory_space<vmem>>, vector<1x1x128xf32>
    %76 = vector.shape_cast %75 : vector<1x1x128xf32> to vector<1x128xf32>
    %77 = vector.broadcast %76 : vector<1x128xf32> to vector<256x128xf32>
    %78 = arith.mulf %74, %77 : vector<256x128xf32>
    %c1_112 = arith.constant 1 : index
    %c0_113 = arith.constant 0 : index
    %c0_114 = arith.constant 0 : index
    %79 = vector.load %arg4[%c1_112, %c0_113, %c0_114] : memref<2x1x128xf32, #tpu.memory_space<vmem>>, vector<1x1x128xf32>
    %80 = vector.shape_cast %79 : vector<1x1x128xf32> to vector<1x128xf32>
    %81 = vector.broadcast %80 : vector<1x128xf32> to vector<256x128xf32>
    %82 = arith.addf %78, %81 : vector<256x128xf32>
    %cst_115 = arith.constant 0.000000e+00 : f32
    %83 = vector.broadcast %cst_115 : f32 to vector<256x128xf32>
    %84 = arith.maximumf %82, %83 : vector<256x128xf32>
    %85 = tpu.transpose %84, [1, 0] : vector<256x128xf32> -> vector<128x256xf32>
    %86 = vector.extract_strided_slice %85 {offsets = [0, 0], sizes = [16, 256], strides = [1, 1]} : vector<128x256xf32> to vector<16x256xf32>
    %c0_116 = arith.constant 0 : index
    %c0_117 = arith.constant 0 : index
    %c0_118 = arith.constant 0 : index
    %87 = vector.load %arg5[%c0_116, %c0_117, %c0_118] : memref<1x16x256xf32, #tpu.memory_space<vmem>>, vector<1x16x256xf32>
    %88 = vector.shape_cast %87 : vector<1x16x256xf32> to vector<16x256xf32>
    %89 = vector.shape_cast %86 : vector<16x256xf32> to vector<1x16x256xf32>
    tpu.vector_store %arg5[%c0_116, %c0_117, %c0_118], %89 {strides = array<i32>} : memref<1x16x256xf32, #tpu.memory_space<vmem>>, vector<1x16x256xf32>,
    return
  }
  func.func @transform_0(%arg0: i32) -> (i32, i32, i32, i32) {
    %c0_i32 = arith.constant 0 : i32
    %c0_i32_0 = arith.constant 0 : i32
    %c0_i32_1 = arith.constant 0 : i32
    %c0_i32_2 = arith.constant 0 : i32
    return %arg0, %c0_i32, %c0_i32_0, %c0_i32_1 : i32, i32, i32, i32
  }
  func.func @transform_1(%arg0: i32) -> (i32, i32, i32) {
    %c0_i32 = arith.constant 0 : i32
    %c0_i32_0 = arith.constant 0 : i32
    %c0_i32_1 = arith.constant 0 : i32
    %c0_i32_2 = arith.constant 0 : i32
    return %c0_i32, %c0_i32_0, %c0_i32_1 : i32, i32, i32
  }
  func.func @transform_2(%arg0: i32) -> (i32, i32, i32) {
    %c0_i32 = arith.constant 0 : i32
    %c0_i32_0 = arith.constant 0 : i32
    %c0_i32_1 = arith.constant 0 : i32
    %c0_i32_2 = arith.constant 0 : i32
    return %c0_i32, %c0_i32_0, %c0_i32_1 : i32, i32, i32
  }
  func.func @transform_3(%arg0: i32) -> (i32, i32, i32) {
    %c0_i32 = arith.constant 0 : i32
    %c0_i32_0 = arith.constant 0 : i32
    %c0_i32_1 = arith.constant 0 : i32
    %c0_i32_2 = arith.constant 0 : i32
    return %c0_i32, %c0_i32_0, %c0_i32_1 : i32, i32, i32
  }
  func.func @transform_4(%arg0: i32) -> (i32, i32, i32) {
    %c0_i32 = arith.constant 0 : i32
    %c0_i32_0 = arith.constant 0 : i32
    %c0_i32_1 = arith.constant 0 : i32
    return %arg0, %c0_i32, %c0_i32_0 : i32, i32, i32
  }
}

</mosaic_0001>

<llo_original>
// kernel: tpu_custom_call.1
$region0: #{tpu_custom_call.1}
  #allocation0 [shape = 'u32[]', space=smem, size = 0x4, offset = 0x4, fixed_abs, tag = 'smem constant byte address 0x4 - core index']
  #allocation1 [shape = 'u32[144,128]{1,0:T(1,128)}', space=vmem, size = 0x12000, scoped, tag = 'internal scratch']
  #allocation2 [shape = 'f32[18,18,128]{2,1,0:T(8,128)}', space=vmem, size = 0x36000, scoped, tag = 'scratch operand']
  %s0 = inlined_call_operand.hbm [shape: f32[2,16,16,128], index: 0, kind: input, shape index: {}]
  %s1 = inlined_call_operand.hbm [shape: f32[2,1152,128], index: 1, kind: input, shape index: {}]
  %s2 = inlined_call_operand.hbm [shape: f32[2,1,128], index: 2, kind: input, shape index: {}]
  %s3 = inlined_call_operand.hbm [shape: f32[2,1,128], index: 3, kind: input, shape index: {}]
  %s4 = inlined_call_operand.hbm [shape: f32[2,16,256], index: 4, kind: output, shape index: {}]
  %s5 = sld [smem:[#allocation0]]
  $region65: #{tpu_custom_call.1} parent=0
    _
  %s7 = ssub.s32 1, %s5
  %s8 = scalar_select 0, %s7, %s5
  $region1: #{tpu_custom_call.1} parent=0
    #allocation3 [shape = 'u8[262144]{0}', space=vmem, size = 0x40000, scoped, tag = 'input window, operand 0']
    #allocation4 [shape = 's32[2]{0}', space=sflag, size = 0x8, scoped, tag = 'scoped memory for tpu_custom_call.1']
    #allocation5 [shape = 's32[2]{0}', space=sflag, size = 0x8, scoped, tag = 'scoped memory for tpu_custom_call.1']
    #allocation6 [shape = 'u8[1179648]{0}', space=vmem, size = 0x120000, scoped, tag = 'input window, operand 1, single buffered']
    #allocation7 [shape = 's32[1]{0}', space=sflag, size = 0x4, scoped, tag = 'scoped memory for tpu_custom_call.1']
    #allocation8 [shape = 'u8[1024]{0}', space=vmem, size = 0x400, scoped, tag = 'input window, operand 2, single buffered']
    #allocation9 [shape = 'u8[1024]{0}', space=vmem, size = 0x400, scoped, tag = 'input window, operand 3, single buffered']
    #allocation10 [shape = 's32[1]{0}', space=sflag, size = 0x4, scoped, tag = 'scoped memory for tpu_custom_call.1']
    #allocation11 [shape = 'u8[32768]{0}', space=vmem, size = 0x8000, scoped, tag = 'output window, operand 0']
    %9 = vsyncpa [#allocation4], 0
    %s10 = scalar_lea.sflag [#allocation4], 1
    %11 = vsyncpa %s10, 0
    %12 = vsyncpa [#allocation7], 0
    %13 = vsyncpa [#allocation10], 0
    %14 = vsyncpa [#allocation5], 0
    %s15 = scalar_lea.sflag [#allocation5], 1
    %16 = vsyncpa %s15, 0
    loop: start=0, step=1, limit=4
    $region2: #{tpu_custom_call.1} parent=1 // loop_pre_header
      _
    $region3: #{tpu_custom_call.1} parent=1 // loop_header
      %s18 = sphi 0, %s22
      %p19 = scmp.ge.s32.totalorder %s18, 4
      %s28 = sphi 0, %s30
      %s31 = sphi 0, %s28
      %s32 = sphi 0, %s31
      %s48 = sphi 0, %s32
      %s52 = sphi 0, %s52
      %s54 = sphi 0, %s52
      %s55 = sphi 0, %s54
      %s69 = sphi 0, %s55
      %s73 = sphi 0, %s73
      %s75 = sphi 0, %s73
      %s76 = sphi 0, %s75
      %s90 = sphi 0, %s76
      %s94 = sphi 0, %s94
      %s96 = sphi 0, %s94
      %s97 = sphi 0, %s96
      %s111 = sphi 0, %s97
      %s117 = sphi 0, %s119
      %s120 = sphi 0, %s117
      %s121 = sphi 0, %s120
      %s137 = sphi 0, %s121
    $region4: #{tpu_custom_call.1} parent=1 // loop_header_branch
      %21 = sbr.rel (%p19) target = $region8
    $region5: #{tpu_custom_call.1} parent=1 // loop_body
      %s23 = ssub.s32 %s18, 1
      %s24 = ssub.s32 %s18, 2
      %s25 = sadd.s32 %s18, 1
      %s26 = ssub.s32 %s18, %s25
      %p27 = scmp.eq.s32.totalorder %s26, 0
      %s29 = sadd.s32 %s28, 1
      %s30 = scalar_select %p27, %s28, %s29
      %p33 = pneg %p27
      %p34 = scmp.eq.s32.totalorder %s18, 1
      %p35 = por %p33, %p34
      %p36 = scmp.ne.s32.totalorder %s28, %s31
      %p37 = scmp.eq.s32.totalorder %s18, 0
      %p38 = por %p36, %p37
      %p39 = scmp.ne.s32.totalorder %s28, %s31
      %p40 = scmp.eq.s32.totalorder %s23, 1
      %p41 = por %p39, %p40
      %p42 = scmp.ne.s32.totalorder %s31, %s32
      %p43 = scmp.eq.s32.totalorder %s23, 0
      %p44 = por %p42, %p43
      %p45 = scmp.ne.s32.totalorder %s31, %s32
      %p46 = scmp.eq.s32.totalorder %s24, 1
      %p47 = por %p45, %p46
      %p49 = scmp.ne.s32.totalorder %s32, %s48
      %p50 = scmp.eq.s32.totalorder %s24, 0
      %p51 = por %p49, %p50
      %s53 = sadd.s32 %s52, 1
      %p56 = scmp.eq.s32.totalorder %s18, 1
      %p57 = scmp.ne.s32.totalorder %s52, %s54
      %p58 = scmp.eq.s32.totalorder %s18, 0
      %p59 = por %p57, %p58
      %p60 = scmp.ne.s32.totalorder %s52, %s54
      %p61 = scmp.eq.s32.totalorder %s23, 1
      %p62 = por %p60, %p61
      %p63 = scmp.ne.s32.totalorder %s54, %s55
      %p64 = scmp.eq.s32.totalorder %s23, 0
      %p65 = por %p63, %p64
      %p66 = scmp.ne.s32.totalorder %s54, %s55
      %p67 = scmp.eq.s32.totalorder %s24, 1
      %p68 = por %p66, %p67
      %p70 = scmp.ne.s32.totalorder %s55, %s69
      %p71 = scmp.eq.s32.totalorder %s24, 0
      %p72 = por %p70, %p71
      %s74 = sadd.s32 %s73, 1
      %p77 = scmp.eq.s32.totalorder %s18, 1
      %p78 = scmp.ne.s32.totalorder %s73, %s75
      %p79 = scmp.eq.s32.totalorder %s18, 0
      %p80 = por %p78, %p79
      %p81 = scmp.ne.s32.totalorder %s73, %s75
      %p82 = scmp.eq.s32.totalorder %s23, 1
      %p83 = por %p81, %p82
      %p84 = scmp.ne.s32.totalorder %s75, %s76
      %p85 = scmp.eq.s32.totalorder %s23, 0
      %p86 = por %p84, %p85
      %p87 = scmp.ne.s32.totalorder %s75, %s76
      %p88 = scmp.eq.s32.totalorder %s24, 1
      %p89 = por %p87, %p88
      %p91 = scmp.ne.s32.totalorder %s76, %s90
      %p92 = scmp.eq.s32.totalorder %s24, 0
      %p93 = por %p91, %p92
      %s95 = sadd.s32 %s94, 1
      %p98 = scmp.eq.s32.totalorder %s18, 1
      %p99 = scmp.ne.s32.totalorder %s94, %s96
      %p100 = scmp.eq.s32.totalorder %s18, 0
      %p101 = por %p99, %p100
      %p102 = scmp.ne.s32.totalorder %s94, %s96
      %p103 = scmp.eq.s32.totalorder %s23, 1
      %p104 = por %p102, %p103
      %p105 = scmp.ne.s32.totalorder %s96, %s97
      %p106 = scmp.eq.s32.totalorder %s23, 0
      %p107 = por %p105, %p106
      %p108 = scmp.ne.s32.totalorder %s96, %s97
      %p109 = scmp.eq.s32.totalorder %s24, 1
      %p110 = por %p108, %p109
      %p112 = scmp.ne.s32.totalorder %s97, %s111
      %p113 = scmp.eq.s32.totalorder %s24, 0
      %p114 = por %p112, %p113
      %s115 = ssub.s32 %s18, %s25
      %p116 = scmp.eq.s32.totalorder %s115, 0
      %s118 = sadd.s32 %s117, 1
      %s119 = scalar_select %p116, %s117, %s118
      %p122 = pneg %p116
      %p123 = scmp.eq.s32.totalorder %s18, 1
      %p124 = por %p122, %p123
      %p125 = scmp.ne.s32.totalorder %s117, %s120
      %p126 = scmp.eq.s32.totalorder %s18, 0
      %p127 = por %p125, %p126
      %p128 = scmp.ne.s32.totalorder %s117, %s120
      %p129 = scmp.eq.s32.totalorder %s23, 1
      %p130 = por %p128, %p129
      %p131 = scmp.ne.s32.totalorder %s120, %s121
      %p132 = scmp.eq.s32.totalorder %s23, 0
      %p133 = por %p131, %p132
      %p134 = scmp.ne.s32.totalorder %s120, %s121
      %p135 = scmp.eq.s32.totalorder %s24, 1
      %p136 = por %p134, %p135
      %p138 = scmp.ne.s32.totalorder %s121, %s137
      %p139 = scmp.eq.s32.totalorder %s24, 0
      %p140 = por %p138, %p139
      %p141 = scmp.le.s32.totalorder 1, %s18
      %p142 = scmp.lt.s32.totalorder %s18, 3
      %p143 = pnand %p141, %p142
      %p144 = pneg %p143
      // Predicated region
      $region9: #{tpu_custom_call.1} parent=5 // pred_check
        _
      $region10: #{tpu_custom_call.1} parent=5 // pred_check_branch
        %146 = sbr.rel (%p143) target = $region12
      $region11: #{tpu_custom_call.1} parent=5 // pred_region
        %s147 = ssub.s32 %s18, 1
        // Predicated region
        $region13: #{tpu_custom_call.1} parent=11 // pred_check
          %p148 = pneg %p65
        $region14: #{tpu_custom_call.1} parent=11 // pred_check_branch
          %150 = sbr.rel (%p148) target = $region16
        $region15: #{tpu_custom_call.1} parent=11 // pred_region
          %s152 = ssub.s32 36864, 36864
          %153 = vsyncadd [#allocation7], %s152
          %s154 = sshll.u32 [#allocation6], 4
          %s155 = int_to_ptr.vmem [resolvable:$true] %s154
          %160 = dma.hbm_to_vmem [thread:$0]  %s1, 36864, %s155, [#allocation7], 128, 128, 8
        $region16: #{tpu_custom_call.1} parent=11 // pred_fallthru
          _
        // Predicated region
        $region17: #{tpu_custom_call.1} parent=11 // pred_check
          %p161 = pneg %p86
        $region18: #{tpu_custom_call.1} parent=11 // pred_check_branch
          %163 = sbr.rel (%p161) target = $region20
        $region19: #{tpu_custom_call.1} parent=11 // pred_region
          %s165 = ssub.s32 32, 32
          %166 = vsyncadd [#allocation7], %s165
          %s167 = sshll.u32 [#allocation8], 4
          %s168 = int_to_ptr.vmem [resolvable:$true] %s167
          %173 = dma.hbm_to_vmem [thread:$0]  %s2, 32, %s168, [#allocation7], 16, 16, 1
        $region20: #{tpu_custom_call.1} parent=11 // pred_fallthru
          _
        // Predicated region
        $region21: #{tpu_custom_call.1} parent=11 // pred_check
          %p174 = pneg %p107
        $region22: #{tpu_custom_call.1} parent=11 // pred_check_branch
          %176 = sbr.rel (%p174) target = $region24
        $region23: #{tpu_custom_call.1} parent=11 // pred_region
          %s178 = ssub.s32 32, 32
          %179 = vsyncadd [#allocation10], %s178
          %s180 = sshll.u32 [#allocation9], 4
          %s181 = int_to_ptr.vmem [resolvable:$true] %s180
          %186 = dma.hbm_to_vmem [thread:$0]  %s3, 32, %s181, [#allocation10], 16, 16, 1
        $region24: #{tpu_custom_call.1} parent=11 // pred_fallthru
          _
      $region12: #{tpu_custom_call.1} parent=5 // pred_fallthru
        _
      %p187 = scmp.lt.s32.totalorder %s18, 2
      // Predicated region
      $region25: #{tpu_custom_call.1} parent=5 // pred_check
        %p188 = pneg %p187
      $region26: #{tpu_custom_call.1} parent=5 // pred_check_branch
        %190 = sbr.rel (%p188) target = $region28
      $region27: #{tpu_custom_call.1} parent=5 // pred_region
        // Predicated region
        $region29: #{tpu_custom_call.1} parent=27 // pred_check
          %p191 = pneg %p38
        $region30: #{tpu_custom_call.1} parent=27 // pred_check_branch
          %193 = sbr.rel (%p191) target = $region32
        $region31: #{tpu_custom_call.1} parent=27 // pred_region
          %s194 = sand.u32 %s28, 1
          %s195 = scalar_lea.sflag [#allocation4], %s194
          %s196 = sand.u32 %s28, 1
          %s197 = smul.addr %s196, 256
          %s198 = scalar_lea.vmem [#allocation3], %s197
          %s200 = ssub.s32 4096, 4096
          %201 = vsyncadd %s195, %s200
          %s202 = smul.addr %s18, 32
          %s203 = smul.addr %s202, 128
          %s204 = scalar_lea.hbm %s0, %s203
          %s205 = sshll.u32 %s198, 4
          %s206 = int_to_ptr.vmem [resolvable:$true] %s205
          %211 = dma.hbm_to_vmem [thread:$0]  %s204, 4096, %s206, %s195, 128, 128, 8
        $region32: #{tpu_custom_call.1} parent=27 // pred_fallthru
          _
      $region28: #{tpu_custom_call.1} parent=5 // pred_fallthru
        _
      %p212 = scmp.le.s32.totalorder 1, %s18
      %p213 = scmp.lt.s32.totalorder %s18, 3
      %p214 = pnand %p212, %p213
      %p215 = pneg %p214
      // Predicated region
      $region33: #{tpu_custom_call.1} parent=5 // pred_check
        _
      $region34: #{tpu_custom_call.1} parent=5 // pred_check_branch
        %217 = sbr.rel (%p214) target = $region36
      $region35: #{tpu_custom_call.1} parent=5 // pred_region
        %s218 = ssub.s32 %s18, 1
        %s219 = sand.u32 %s31, 1
        %s220 = scalar_lea.sflag [#allocation4], %s219
        %s221 = sand.u32 %s31, 1
        %s222 = smul.addr %s221, 256
        %s223 = scalar_lea.vmem [#allocation3], %s222
        // Predicated region
        $region37: #{tpu_custom_call.1} parent=35 // pred_check
          %p224 = pneg %p44
        $region38: #{tpu_custom_call.1} parent=35 // pred_check_branch
          %226 = sbr.rel (%p224) target = $region40
        $region39: #{tpu_custom_call.1} parent=35 // pred_region
          %227 = dma.done %s220, 4096
        $region40: #{tpu_custom_call.1} parent=35 // pred_fallthru
          _
        // Predicated region
        $region41: #{tpu_custom_call.1} parent=35 // pred_check
          %p228 = pneg %p65
        $region42: #{tpu_custom_call.1} parent=35 // pred_check_branch
          %230 = sbr.rel (%p228) target = $region44
        $region43: #{tpu_custom_call.1} parent=35 // pred_region
          %231 = dma.done [#allocation7], 36864
        $region44: #{tpu_custom_call.1} parent=35 // pred_fallthru
          _
        // Predicated region
        $region45: #{tpu_custom_call.1} parent=35 // pred_check
          %p232 = pneg %p86
        $region46: #{tpu_custom_call.1} parent=35 // pred_check_branch
          %234 = sbr.rel (%p232) target = $region48
        $region47: #{tpu_custom_call.1} parent=35 // pred_region
          %235 = dma.done [#allocation7], 32
        $region48: #{tpu_custom_call.1} parent=35 // pred_fallthru
          _
        // Predicated region
        $region49: #{tpu_custom_call.1} parent=35 // pred_check
          %p236 = pneg %p107
        $region50: #{tpu_custom_call.1} parent=35 // pred_check_branch
          %238 = sbr.rel (%p236) target = $region52
        $region51: #{tpu_custom_call.1} parent=35 // pred_region
          %239 = dma.done [#allocation10], 32
        $region52: #{tpu_custom_call.1} parent=35 // pred_fallthru
          _
        %s240 = sand.u32 %s31, 1
        %s241 = scalar_lea.sflag [#allocation4], %s240
        %s242 = sand.u32 %s31, 1
        %s243 = smul.addr %s242, 256
        %s244 = scalar_lea.vmem [#allocation3], %s243
        %p245 = pneg %p44
        %p246 = pneg %p41
        %p247 = pneg %p65
        %p248 = pneg %p62
        %p249 = pneg %p86
        %p250 = pneg %p83
        %p251 = pneg %p107
        %p252 = pneg %p104
        %p253 = pneg %p133
        %p254 = pneg %p130
        %s255 = sand.u32 %s120, 1
        %s256 = scalar_lea.sflag [#allocation5], %s255
        %s257 = sand.u32 %s120, 1
        %s258 = smul.addr %s257, 32
        %s259 = scalar_lea.vmem [#allocation11], %s258
        %v260 = vld [vmem:[%s223] sm:$0xff]
        %v261 = vld [vmem:[%s223 + $0x8] sm:$0xff]
        %v262 = vld [vmem:[%s223 + $0x10] sm:$0xff]
        %v263 = vld [vmem:[%s223 + $0x18] sm:$0xff]
        %v264 = vld [vmem:[%s223 + $0x20] sm:$0xff]
        %v265 = vld [vmem:[%s223 + $0x28] sm:$0xff]
        %v266 = vld [vmem:[%s223 + $0x30] sm:$0xff]
        %v267 = vld [vmem:[%s223 + $0x38] sm:$0xff]
        %v268 = vld [vmem:[%s223 + $0x40] sm:$0xff]
        %v269 = vld [vmem:[%s223 + $0x48] sm:$0xff]
        %v270 = vld [vmem:[%s223 + $0x50] sm:$0xff]
        %v271 = vld [vmem:[%s223 + $0x58] sm:$0xff]
        %v272 = vld [vmem:[%s223 + $0x60] sm:$0xff]
        %v273 = vld [vmem:[%s223 + $0x68] sm:$0xff]
        %v274 = vld [vmem:[%s223 + $0x70] sm:$0xff]
        %v275 = vld [vmem:[%s223 + $0x78] sm:$0xff]
        %v276 = vld [vmem:[%s223 + $0x80] sm:$0xff]
        %v277 = vld [vmem:[%s223 + $0x88] sm:$0xff]
        %v278 = vld [vmem:[%s223 + $0x90] sm:$0xff]
        %v279 = vld [vmem:[%s223 + $0x98] sm:$0xff]
        %v280 = vld [vmem:[%s223 + $0xa0] sm:$0xff]
        %v281 = vld [vmem:[%s223 + $0xa8] sm:$0xff]
        %v282 = vld [vmem:[%s223 + $0xb0] sm:$0xff]
        %v283 = vld [vmem:[%s223 + $0xb8] sm:$0xff]
        %v284 = vld [vmem:[%s223 + $0xc0] sm:$0xff]
        %v285 = vld [vmem:[%s223 + $0xc8] sm:$0xff]
        %v286 = vld [vmem:[%s223 + $0xd0] sm:$0xff]
        %v287 = vld [vmem:[%s223 + $0xd8] sm:$0xff]
        %v288 = vld [vmem:[%s223 + $0xe0] sm:$0xff]
        %v289 = vld [vmem:[%s223 + $0xe8] sm:$0xff]
        %v290 = vld [vmem:[%s223 + $0xf0] sm:$0xff]
        %v291 = vld [vmem:[%s223 + $0xf8] sm:$0xff]
        %s292 = scalar_lea.vmem [#allocation2], 24
        %293 = vst [vmem:[%s292 + $0x1] sm:$0xff] %v260
        %294 = vst [vmem:[%s292 + $0x9] sm:$0xff] %v261
        %295 = vst [vmem:[%s292 + $0x19] sm:$0xff] %v262
        %296 = vst [vmem:[%s292 + $0x21] sm:$0xff] %v263
        %297 = vst [vmem:[%s292 + $0x31] sm:$0xff] %v264
        %298 = vst [vmem:[%s292 + $0x39] sm:$0xff] %v265
        %299 = vst [vmem:[%s292 + $0x49] sm:$0xff] %v266
        %300 = vst [vmem:[%s292 + $0x51] sm:$0xff] %v267
        %301 = vst [vmem:[%s292 + $0x61] sm:$0xff] %v268
        %302 = vst [vmem:[%s292 + $0x69] sm:$0xff] %v269
        %303 = vst [vmem:[%s292 + $0x79] sm:$0xff] %v270
        %304 = vst [vmem:[%s292 + $0x81] sm:$0xff] %v271
        %305 = vst [vmem:[%s292 + $0x91] sm:$0xff] %v272
        %306 = vst [vmem:[%s292 + $0x99] sm:$0xff] %v273
        %307 = vst [vmem:[%s292 + $0xa9] sm:$0xff] %v274
        %308 = vst [vmem:[%s292 + $0xb1] sm:$0xff] %v275
        %309 = vst [vmem:[%s292 + $0xc1] sm:$0xff] %v276
        %310 = vst [vmem:[%s292 + $0xc9] sm:$0xff] %v277
        %311 = vst [vmem:[%s292 + $0xd9] sm:$0xff] %v278
        %312 = vst [vmem:[%s292 + $0xe1] sm:$0xff] %v279
        %313 = vst [vmem:[%s292 + $0xf1] sm:$0xff] %v280
        %314 = vst [vmem:[%s292 + $0xf9] sm:$0xff] %v281
        %315 = vst [vmem:[%s292 + $0x109] sm:$0xff] %v282
        %316 = vst [vmem:[%s292 + $0x111] sm:$0xff] %v283
        %317 = vst [vmem:[%s292 + $0x121] sm:$0xff] %v284
        %318 = vst [vmem:[%s292 + $0x129] sm:$0xff] %v285
        %319 = vst [vmem:[%s292 + $0x139] sm:$0xff] %v286
        %320 = vst [vmem:[%s292 + $0x141] sm:$0xff] %v287
        %321 = vst [vmem:[%s292 + $0x151] sm:$0xff] %v288
        %322 = vst [vmem:[%s292 + $0x159] sm:$0xff] %v289
        %323 = vst [vmem:[%s292 + $0x169] sm:$0xff] %v290
        %324 = vst [vmem:[%s292 + $0x171] sm:$0xff] %v291
        %325 = vst [vmem:[#allocation2 + $0x1] sm:$0xff] %v262
        %326 = vst [vmem:[#allocation2 + $0x9] sm:$0xff] %v263
        %s327 = scalar_lea.vmem [#allocation2], 408
        %328 = vst [vmem:[%s327 + $0x1] sm:$0xff] %v288
        %329 = vst [vmem:[%s327 + $0x9] sm:$0xff] %v289
        %v330 = vld [vmem:[#allocation2 + $0x2] sm:$0x1]
        %v331 = vld [vmem:[#allocation2 + $0x1a] sm:$0x1]
        %v332 = vld [vmem:[#allocation2 + $0x32] sm:$0x1]
        %v333 = vld [vmem:[#allocation2 + $0x4a] sm:$0x1]
        %v334 = vld [vmem:[#allocation2 + $0x62] sm:$0x1]
        %v335 = vld [vmem:[#allocation2 + $0x7a] sm:$0x1]
        %v336 = vld [vmem:[#allocation2 + $0x92] sm:$0x1]
        %v337 = vld [vmem:[#allocation2 + $0xaa] sm:$0x1]
        %v338 = vld [vmem:[#allocation2 + $0xc2] sm:$0x1]
        %v339 = vld [vmem:[#allocation2 + $0xda] sm:$0x1]
        %v340 = vld [vmem:[#allocation2 + $0xf2] sm:$0x1]
        %v341 = vld [vmem:[#allocation2 + $0x10a] sm:$0x1]
        %v342 = vld [vmem:[#allocation2 + $0x122] sm:$0x1]
        %v343 = vld [vmem:[#allocation2 + $0x13a] sm:$0x1]
        %v344 = vld [vmem:[#allocation2 + $0x152] sm:$0x1]
        %v345 = vld [vmem:[#allocation2 + $0x16a] sm:$0x1]
        %v346 = vld [vmem:[#allocation2 + $0x182] sm:$0x1]
        %v347 = vld [vmem:[#allocation2 + $0x19a] sm:$0x1]
        %348 = vst [vmem:[#allocation2] sm:$0x1] %v330
        %349 = vst [vmem:[#allocation2 + $0x18] sm:$0x1] %v331
        %350 = vst [vmem:[#allocation2 + $0x30] sm:$0x1] %v332
        %351 = vst [vmem:[#allocation2 + $0x48] sm:$0x1] %v333
        %352 = vst [vmem:[#allocation2 + $0x60] sm:$0x1] %v334
        %353 = vst [vmem:[#allocation2 + $0x78] sm:$0x1] %v335
        %354 = vst [vmem:[#allocation2 + $0x90] sm:$0x1] %v336
        %355 = vst [vmem:[#allocation2 + $0xa8] sm:$0x1] %v337
        %356 = vst [vmem:[#allocation2 + $0xc0] sm:$0x1] %v338
        %357 = vst [vmem:[#allocation2 + $0xd8] sm:$0x1] %v339
        %358 = vst [vmem:[#allocation2 + $0xf0] sm:$0x1] %v340
        %359 = vst [vmem:[#allocation2 + $0x108] sm:$0x1] %v341
        %360 = vst [vmem:[#allocation2 + $0x120] sm:$0x1] %v342
        %361 = vst [vmem:[#allocation2 + $0x138] sm:$0x1] %v343
        %362 = vst [vmem:[#allocation2 + $0x150] sm:$0x1] %v344
        %363 = vst [vmem:[#allocation2 + $0x168] sm:$0x1] %v345
        %364 = vst [vmem:[#allocation2 + $0x180] sm:$0x1] %v346
        %365 = vst [vmem:[#allocation2 + $0x198] sm:$0x1] %v347
        %v366 = vld [vmem:[#allocation2 + $0xf] sm:$0x1]
        %v367 = vld [vmem:[#allocation2 + $0x27] sm:$0x1]
        %v368 = vld [vmem:[#allocation2 + $0x3f] sm:$0x1]
        %v369 = vld [vmem:[#allocation2 + $0x57] sm:$0x1]
        %v370 = vld [vmem:[#allocation2 + $0x6f] sm:$0x1]
        %v371 = vld [vmem:[#allocation2 + $0x87] sm:$0x1]
        %v372 = vld [vmem:[#allocation2 + $0x9f] sm:$0x1]
        %v373 = vld [vmem:[#allocation2 + $0xb7] sm:$0x1]
        %v374 = vld [vmem:[#allocation2 + $0xcf] sm:$0x1]
        %v375 = vld [vmem:[#allocation2 + $0xe7] sm:$0x1]
        %v376 = vld [vmem:[#allocation2 + $0xff] sm:$0x1]
        %v377 = vld [vmem:[#allocation2 + $0x117] sm:$0x1]
        %v378 = vld [vmem:[#allocation2 + $0x12f] sm:$0x1]
        %v379 = vld [vmem:[#allocation2 + $0x147] sm:$0x1]
        %v380 = vld [vmem:[#allocation2 + $0x15f] sm:$0x1]
        %v381 = vld [vmem:[#allocation2 + $0x177] sm:$0x1]
        %v382 = vld [vmem:[#allocation2 + $0x18f] sm:$0x1]
        %v383 = vld [vmem:[#allocation2 + $0x1a7] sm:$0x1]
        %384 = vst [vmem:[#allocation2 + $0x11] sm:$0x1] %v366
        %385 = vst [vmem:[#allocation2 + $0x29] sm:$0x1] %v367
        %386 = vst [vmem:[#allocation2 + $0x41] sm:$0x1] %v368
        %387 = vst [vmem:[#allocation2 + $0x59] sm:$0x1] %v369
        %388 = vst [vmem:[#allocation2 + $0x71] sm:$0x1] %v370
        %389 = vst [vmem:[#allocation2 + $0x89] sm:$0x1] %v371
        %390 = vst [vmem:[#allocation2 + $0xa1] sm:$0x1] %v372
        %391 = vst [vmem:[#allocation2 + $0xb9] sm:$0x1] %v373
        %392 = vst [vmem:[#allocation2 + $0xd1] sm:$0x1] %v374
        %393 = vst [vmem:[#allocation2 + $0xe9] sm:$0x1] %v375
        %394 = vst [vmem:[#allocation2 + $0x101] sm:$0x1] %v376
        %395 = vst [vmem:[#allocation2 + $0x119] sm:$0x1] %v377
        %396 = vst [vmem:[#allocation2 + $0x131] sm:$0x1] %v378
        %397 = vst [vmem:[#allocation2 + $0x149] sm:$0x1] %v379
        %398 = vst [vmem:[#allocation2 + $0x161] sm:$0x1] %v380
        %399 = vst [vmem:[#allocation2 + $0x179] sm:$0x1] %v381
        %400 = vst [vmem:[#allocation2 + $0x191] sm:$0x1] %v382
        %401 = vst [vmem:[#allocation2 + $0x1a9] sm:$0x1] %v383
        %v402 = vld [vmem:[#allocation2] sm:$0xff]
        %v403 = vld [vmem:[#allocation2 + $0x8] sm:$0xff]
        %v404 = vld [vmem:[#allocation2 + $0x18] sm:$0xff]
        %v405 = vld [vmem:[#allocation2 + $0x20] sm:$0xff]
        %v406 = vld [vmem:[#allocation2 + $0x30] sm:$0xff]
        %v407 = vld [vmem:[#allocation2 + $0x38] sm:$0xff]
        %v408 = vld [vmem:[#allocation2 + $0x48] sm:$0xff]
        %v409 = vld [vmem:[#allocation2 + $0x50] sm:$0xff]
        %v410 = vld [vmem:[#allocation2 + $0x60] sm:$0xff]
        %v411 = vld [vmem:[#allocation2 + $0x68] sm:$0xff]
        %v412 = vld [vmem:[#allocation2 + $0x78] sm:$0xff]
        %v413 = vld [vmem:[#allocation2 + $0x80] sm:$0xff]
        %v414 = vld [vmem:[#allocation2 + $0x90] sm:$0xff]
        %v415 = vld [vmem:[#allocation2 + $0x98] sm:$0xff]
        %v416 = vld [vmem:[#allocation2 + $0xa8] sm:$0xff]
        %v417 = vld [vmem:[#allocation2 + $0xb0] sm:$0xff]
        %v418 = vld [vmem:[#allocation2 + $0xc0] sm:$0xff]
        %v419 = vld [vmem:[#allocation2 + $0xc8] sm:$0xff]
        %v420 = vld [vmem:[#allocation2 + $0xd8] sm:$0xff]
        %v421 = vld [vmem:[#allocation2 + $0xe0] sm:$0xff]
        %v422 = vld [vmem:[#allocation2 + $0xf0] sm:$0xff]
        %v423 = vld [vmem:[#allocation2 + $0xf8] sm:$0xff]
        %v424 = vld [vmem:[#allocation2 + $0x108] sm:$0xff]
        %v425 = vld [vmem:[#allocation2 + $0x110] sm:$0xff]
        %v426 = vld [vmem:[#allocation2 + $0x120] sm:$0xff]
        %v427 = vld [vmem:[#allocation2 + $0x128] sm:$0xff]
        %v428 = vld [vmem:[#allocation2 + $0x138] sm:$0xff]
        %v429 = vld [vmem:[#allocation2 + $0x140] sm:$0xff]
        %v430 = vld [vmem:[#allocation2 + $0x150] sm:$0xff]
        %v431 = vld [vmem:[#allocation2 + $0x158] sm:$0xff]
        %v432 = vld [vmem:[#allocation2 + $0x168] sm:$0xff]
        %v433 = vld [vmem:[#allocation2 + $0x170] sm:$0xff]
        %v434 = vld [vmem:[#allocation2 + $0x1] sm:$0xff]
        %v435 = vld [vmem:[#allocation2 + $0x9] sm:$0xff]
        %v436 = vld [vmem:[#allocation2 + $0x19] sm:$0xff]
        %v437 = vld [vmem:[#allocation2 + $0x21] sm:$0xff]
        %v438 = vld [vmem:[#allocation2 + $0x31] sm:$0xff]
        %v439 = vld [vmem:[#allocation2 + $0x39] sm:$0xff]
        %v440 = vld [vmem:[#allocation2 + $0x49] sm:$0xff]
        %v441 = vld [vmem:[#allocation2 + $0x51] sm:$0xff]
        %v442 = vld [vmem:[#allocation2 + $0x61] sm:$0xff]
        %v443 = vld [vmem:[#allocation2 + $0x69] sm:$0xff]
        %v444 = vld [vmem:[#allocation2 + $0x79] sm:$0xff]
        %v445 = vld [vmem:[#allocation2 + $0x81] sm:$0xff]
        %v446 = vld [vmem:[#allocation2 + $0x91] sm:$0xff]
        %v447 = vld [vmem:[#allocation2 + $0x99] sm:$0xff]
        %v448 = vld [vmem:[#allocation2 + $0xa9] sm:$0xff]
        %v449 = vld [vmem:[#allocation2 + $0xb1] sm:$0xff]
        %v450 = vld [vmem:[#allocation2 + $0xc1] sm:$0xff]
        %v451 = vld [vmem:[#allocation2 + $0xc9] sm:$0xff]
        %v452 = vld [vmem:[#allocation2 + $0xd9] sm:$0xff]
        %v453 = vld [vmem:[#allocation2 + $0xe1] sm:$0xff]
        %v454 = vld [vmem:[#allocation2 + $0xf1] sm:$0xff]
        %v455 = vld [vmem:[#allocation2 + $0xf9] sm:$0xff]
        %v456 = vld [vmem:[#allocation2 + $0x109] sm:$0xff]
        %v457 = vld [vmem:[#allocation2 + $0x111] sm:$0xff]
        %v458 = vld [vmem:[#allocation2 + $0x121] sm:$0xff]
        %v459 = vld [vmem:[#allocation2 + $0x129] sm:$0xff]
        %v460 = vld [vmem:[#allocation2 + $0x139] sm:$0xff]
        %v461 = vld [vmem:[#allocation2 + $0x141] sm:$0xff]
        %v462 = vld [vmem:[#allocation2 + $0x151] sm:$0xff]
        %v463 = vld [vmem:[#allocation2 + $0x159] sm:$0xff]
        %v464 = vld [vmem:[#allocation2 + $0x169] sm:$0xff]
        %v465 = vld [vmem:[#allocation2 + $0x171] sm:$0xff]
        %v466 = vld [vmem:[#allocation2 + $0x2] sm:$0xff]
        %v467 = vld [vmem:[#allocation2 + $0xa] sm:$0xff]
        %v468 = vld [vmem:[#allocation2 + $0x1a] sm:$0xff]
        %v469 = vld [vmem:[#allocation2 + $0x22] sm:$0xff]
        %v470 = vld [vmem:[#allocation2 + $0x32] sm:$0xff]
        %v471 = vld [vmem:[#allocation2 + $0x3a] sm:$0xff]
        %v472 = vld [vmem:[#allocation2 + $0x4a] sm:$0xff]
        %v473 = vld [vmem:[#allocation2 + $0x52] sm:$0xff]
        %v474 = vld [vmem:[#allocation2 + $0x62] sm:$0xff]
        %v475 = vld [vmem:[#allocation2 + $0x6a] sm:$0xff]
        %v476 = vld [vmem:[#allocation2 + $0x7a] sm:$0xff]
        %v477 = vld [vmem:[#allocation2 + $0x82] sm:$0xff]
        %v478 = vld [vmem:[#allocation2 + $0x92] sm:$0xff]
        %v479 = vld [vmem:[#allocation2 + $0x9a] sm:$0xff]
        %v480 = vld [vmem:[#allocation2 + $0xaa] sm:$0xff]
        %v481 = vld [vmem:[#allocation2 + $0xb2] sm:$0xff]
        %v482 = vld [vmem:[#allocation2 + $0xc2] sm:$0xff]
        %v483 = vld [vmem:[#allocation2 + $0xca] sm:$0xff]
        %v484 = vld [vmem:[#allocation2 + $0xda] sm:$0xff]
        %v485 = vld [vmem:[#allocation2 + $0xe2] sm:$0xff]
        %v486 = vld [vmem:[#allocation2 + $0xf2] sm:$0xff]
        %v487 = vld [vmem:[#allocation2 + $0xfa] sm:$0xff]
        %v488 = vld [vmem:[#allocation2 + $0x10a] sm:$0xff]
        %v489 = vld [vmem:[#allocation2 + $0x112] sm:$0xff]
        %v490 = vld [vmem:[#allocation2 + $0x122] sm:$0xff]
        %v491 = vld [vmem:[#allocation2 + $0x12a] sm:$0xff]
        %v492 = vld [vmem:[#allocation2 + $0x13a] sm:$0xff]
        %v493 = vld [vmem:[#allocation2 + $0x142] sm:$0xff]
        %v494 = vld [vmem:[#allocation2 + $0x152] sm:$0xff]
        %v495 = vld [vmem:[#allocation2 + $0x15a] sm:$0xff]
        %v496 = vld [vmem:[#allocation2 + $0x16a] sm:$0xff]
        %v497 = vld [vmem:[#allocation2 + $0x172] sm:$0xff]
        %v498 = vld [vmem:[%s292] sm:$0xff]
        %v499 = vld [vmem:[%s292 + $0x8] sm:$0xff]
        %v500 = vld [vmem:[%s292 + $0x18] sm:$0xff]
        %v501 = vld [vmem:[%s292 + $0x20] sm:$0xff]
        %v502 = vld [vmem:[%s292 + $0x30] sm:$0xff]
        %v503 = vld [vmem:[%s292 + $0x38] sm:$0xff]
        %v504 = vld [vmem:[%s292 + $0x48] sm:$0xff]
        %v505 = vld [vmem:[%s292 + $0x50] sm:$0xff]
        %v506 = vld [vmem:[%s292 + $0x60] sm:$0xff]
        %v507 = vld [vmem:[%s292 + $0x68] sm:$0xff]
        %v508 = vld [vmem:[%s292 + $0x78] sm:$0xff]
        %v509 = vld [vmem:[%s292 + $0x80] sm:$0xff]
        %v510 = vld [vmem:[%s292 + $0x90] sm:$0xff]
        %v511 = vld [vmem:[%s292 + $0x98] sm:$0xff]
        %v512 = vld [vmem:[%s292 + $0xa8] sm:$0xff]
        %v513 = vld [vmem:[%s292 + $0xb0] sm:$0xff]
        %v514 = vld [vmem:[%s292 + $0xc0] sm:$0xff]
        %v515 = vld [vmem:[%s292 + $0xc8] sm:$0xff]
        %v516 = vld [vmem:[%s292 + $0xd8] sm:$0xff]
        %v517 = vld [vmem:[%s292 + $0xe0] sm:$0xff]
        %v518 = vld [vmem:[%s292 + $0xf0] sm:$0xff]
        %v519 = vld [vmem:[%s292 + $0xf8] sm:$0xff]
        %v520 = vld [vmem:[%s292 + $0x108] sm:$0xff]
        %v521 = vld [vmem:[%s292 + $0x110] sm:$0xff]
        %v522 = vld [vmem:[%s292 + $0x120] sm:$0xff]
        %v523 = vld [vmem:[%s292 + $0x128] sm:$0xff]
        %v524 = vld [vmem:[%s292 + $0x138] sm:$0xff]
        %v525 = vld [vmem:[%s292 + $0x140] sm:$0xff]
        %v526 = vld [vmem:[%s292 + $0x150] sm:$0xff]
        %v527 = vld [vmem:[%s292 + $0x158] sm:$0xff]
        %v528 = vld [vmem:[%s292 + $0x168] sm:$0xff]
        %v529 = vld [vmem:[%s292 + $0x170] sm:$0xff]
        %v530 = vld [vmem:[%s292 + $0x1] sm:$0xff]
        %v531 = vld [vmem:[%s292 + $0x9] sm:$0xff]
        %v532 = vld [vmem:[%s292 + $0x19] sm:$0xff]
        %v533 = vld [vmem:[%s292 + $0x21] sm:$0xff]
        %v534 = vld [vmem:[%s292 + $0x31] sm:$0xff]
        %v535 = vld [vmem:[%s292 + $0x39] sm:$0xff]
        %v536 = vld [vmem:[%s292 + $0x49] sm:$0xff]
        %v537 = vld [vmem:[%s292 + $0x51] sm:$0xff]
        %v538 = vld [vmem:[%s292 + $0x61] sm:$0xff]
        %v539 = vld [vmem:[%s292 + $0x69] sm:$0xff]
        %v540 = vld [vmem:[%s292 + $0x79] sm:$0xff]
        %v541 = vld [vmem:[%s292 + $0x81] sm:$0xff]
        %v542 = vld [vmem:[%s292 + $0x91] sm:$0xff]
        %v543 = vld [vmem:[%s292 + $0x99] sm:$0xff]
        %v544 = vld [vmem:[%s292 + $0xa9] sm:$0xff]
        %v545 = vld [vmem:[%s292 + $0xb1] sm:$0xff]
        %v546 = vld [vmem:[%s292 + $0xc1] sm:$0xff]
        %v547 = vld [vmem:[%s292 + $0xc9] sm:$0xff]
        %v548 = vld [vmem:[%s292 + $0xd9] sm:$0xff]
        %v549 = vld [vmem:[%s292 + $0xe1] sm:$0xff]
        %v550 = vld [vmem:[%s292 + $0xf1] sm:$0xff]
        %v551 = vld [vmem:[%s292 + $0xf9] sm:$0xff]
        %v552 = vld [vmem:[%s292 + $0x109] sm:$0xff]
        %v553 = vld [vmem:[%s292 + $0x111] sm:$0xff]
        %v554 = vld [vmem:[%s292 + $0x121] sm:$0xff]
        %v555 = vld [vmem:[%s292 + $0x129] sm:$0xff]
        %v556 = vld [vmem:[%s292 + $0x139] sm:$0xff]
        %v557 = vld [vmem:[%s292 + $0x141] sm:$0xff]
        %v558 = vld [vmem:[%s292 + $0x151] sm:$0xff]
        %v559 = vld [vmem:[%s292 + $0x159] sm:$0xff]
        %v560 = vld [vmem:[%s292 + $0x169] sm:$0xff]
        %v561 = vld [vmem:[%s292 + $0x171] sm:$0xff]
        %v562 = vld [vmem:[%s292 + $0x2] sm:$0xff]
        %v563 = vld [vmem:[%s292 + $0xa] sm:$0xff]
        %v564 = vld [vmem:[%s292 + $0x1a] sm:$0xff]
        %v565 = vld [vmem:[%s292 + $0x22] sm:$0xff]
        %v566 = vld [vmem:[%s292 + $0x32] sm:$0xff]
        %v567 = vld [vmem:[%s292 + $0x3a] sm:$0xff]
        %v568 = vld [vmem:[%s292 + $0x4a] sm:$0xff]
        %v569 = vld [vmem:[%s292 + $0x52] sm:$0xff]
        %v570 = vld [vmem:[%s292 + $0x62] sm:$0xff]
        %v571 = vld [vmem:[%s292 + $0x6a] sm:$0xff]
        %v572 = vld [vmem:[%s292 + $0x7a] sm:$0xff]
        %v573 = vld [vmem:[%s292 + $0x82] sm:$0xff]
        %v574 = vld [vmem:[%s292 + $0x92] sm:$0xff]
        %v575 = vld [vmem:[%s292 + $0x9a] sm:$0xff]
        %v576 = vld [vmem:[%s292 + $0xaa] sm:$0xff]
        %v577 = vld [vmem:[%s292 + $0xb2] sm:$0xff]
        %v578 = vld [vmem:[%s292 + $0xc2] sm:$0xff]
        %v579 = vld [vmem:[%s292 + $0xca] sm:$0xff]
        %v580 = vld [vmem:[%s292 + $0xda] sm:$0xff]
        %v581 = vld [vmem:[%s292 + $0xe2] sm:$0xff]
        %v582 = vld [vmem:[%s292 + $0xf2] sm:$0xff]
        %v583 = vld [vmem:[%s292 + $0xfa] sm:$0xff]
        %v584 = vld [vmem:[%s292 + $0x10a] sm:$0xff]
        %v585 = vld [vmem:[%s292 + $0x112] sm:$0xff]
        %v586 = vld [vmem:[%s292 + $0x122] sm:$0xff]
        %v587 = vld [vmem:[%s292 + $0x12a] sm:$0xff]
        %v588 = vld [vmem:[%s292 + $0x13a] sm:$0xff]
        %v589 = vld [vmem:[%s292 + $0x142] sm:$0xff]
        %v590 = vld [vmem:[%s292 + $0x152] sm:$0xff]
        %v591 = vld [vmem:[%s292 + $0x15a] sm:$0xff]
        %v592 = vld [vmem:[%s292 + $0x16a] sm:$0xff]
        %v593 = vld [vmem:[%s292 + $0x172] sm:$0xff]
        %s594 = scalar_lea.vmem [#allocation2], 48
        %v595 = vld [vmem:[%s594] sm:$0xff]
        %v596 = vld [vmem:[%s594 + $0x8] sm:$0xff]
        %v597 = vld [vmem:[%s594 + $0x18] sm:$0xff]
        %v598 = vld [vmem:[%s594 + $0x20] sm:$0xff]
        %v599 = vld [vmem:[%s594 + $0x30] sm:$0xff]
        %v600 = vld [vmem:[%s594 + $0x38] sm:$0xff]
        %v601 = vld [vmem:[%s594 + $0x48] sm:$0xff]
        %v602 = vld [vmem:[%s594 + $0x50] sm:$0xff]
        %v603 = vld [vmem:[%s594 + $0x60] sm:$0xff]
        %v604 = vld [vmem:[%s594 + $0x68] sm:$0xff]
        %v605 = vld [vmem:[%s594 + $0x78] sm:$0xff]
        %v606 = vld [vmem:[%s594 + $0x80] sm:$0xff]
        %v607 = vld [vmem:[%s594 + $0x90] sm:$0xff]
        %v608 = vld [vmem:[%s594 + $0x98] sm:$0xff]
        %v609 = vld [vmem:[%s594 + $0xa8] sm:$0xff]
        %v610 = vld [vmem:[%s594 + $0xb0] sm:$0xff]
        %v611 = vld [vmem:[%s594 + $0xc0] sm:$0xff]
        %v612 = vld [vmem:[%s594 + $0xc8] sm:$0xff]
        %v613 = vld [vmem:[%s594 + $0xd8] sm:$0xff]
        %v614 = vld [vmem:[%s594 + $0xe0] sm:$0xff]
        %v615 = vld [vmem:[%s594 + $0xf0] sm:$0xff]
        %v616 = vld [vmem:[%s594 + $0xf8] sm:$0xff]
        %v617 = vld [vmem:[%s594 + $0x108] sm:$0xff]
        %v618 = vld [vmem:[%s594 + $0x110] sm:$0xff]
        %v619 = vld [vmem:[%s594 + $0x120] sm:$0xff]
        %v620 = vld [vmem:[%s594 + $0x128] sm:$0xff]
        %v621 = vld [vmem:[%s594 + $0x138] sm:$0xff]
        %v622 = vld [vmem:[%s594 + $0x140] sm:$0xff]
        %v623 = vld [vmem:[%s594 + $0x150] sm:$0xff]
        %v624 = vld [vmem:[%s594 + $0x158] sm:$0xff]
        %v625 = vld [vmem:[%s594 + $0x168] sm:$0xff]
        %v626 = vld [vmem:[%s594 + $0x170] sm:$0xff]
        %v627 = vld [vmem:[%s594 + $0x1] sm:$0xff]
        %v628 = vld [vmem:[%s594 + $0x9] sm:$0xff]
        %v629 = vld [vmem:[%s594 + $0x19] sm:$0xff]
        %v630 = vld [vmem:[%s594 + $0x21] sm:$0xff]
        %v631 = vld [vmem:[%s594 + $0x31] sm:$0xff]
        %v632 = vld [vmem:[%s594 + $0x39] sm:$0xff]
        %v633 = vld [vmem:[%s594 + $0x49] sm:$0xff]
        %v634 = vld [vmem:[%s594 + $0x51] sm:$0xff]
        %v635 = vld [vmem:[%s594 + $0x61] sm:$0xff]
        %v636 = vld [vmem:[%s594 + $0x69] sm:$0xff]
        %v637 = vld [vmem:[%s594 + $0x79] sm:$0xff]
        %v638 = vld [vmem:[%s594 + $0x81] sm:$0xff]
        %v639 = vld [vmem:[%s594 + $0x91] sm:$0xff]
        %v640 = vld [vmem:[%s594 + $0x99] sm:$0xff]
        %v641 = vld [vmem:[%s594 + $0xa9] sm:$0xff]
        %v642 = vld [vmem:[%s594 + $0xb1] sm:$0xff]
        %v643 = vld [vmem:[%s594 + $0xc1] sm:$0xff]
        %v644 = vld [vmem:[%s594 + $0xc9] sm:$0xff]
        %v645 = vld [vmem:[%s594 + $0xd9] sm:$0xff]
        %v646 = vld [vmem:[%s594 + $0xe1] sm:$0xff]
        %v647 = vld [vmem:[%s594 + $0xf1] sm:$0xff]
        %v648 = vld [vmem:[%s594 + $0xf9] sm:$0xff]
        %v649 = vld [vmem:[%s594 + $0x109] sm:$0xff]
        %v650 = vld [vmem:[%s594 + $0x111] sm:$0xff]
        %v651 = vld [vmem:[%s594 + $0x121] sm:$0xff]
        %v652 = vld [vmem:[%s594 + $0x129] sm:$0xff]
        %v653 = vld [vmem:[%s594 + $0x139] sm:$0xff]
        %v654 = vld [vmem:[%s594 + $0x141] sm:$0xff]
        %v655 = vld [vmem:[%s594 + $0x151] sm:$0xff]
        %v656 = vld [vmem:[%s594 + $0x159] sm:$0xff]
        %v657 = vld [vmem:[%s594 + $0x169] sm:$0xff]
        %v658 = vld [vmem:[%s594 + $0x171] sm:$0xff]
        %v659 = vld [vmem:[%s594 + $0x2] sm:$0xff]
        %v660 = vld [vmem:[%s594 + $0xa] sm:$0xff]
        %v661 = vld [vmem:[%s594 + $0x1a] sm:$0xff]
        %v662 = vld [vmem:[%s594 + $0x22] sm:$0xff]
        %v663 = vld [vmem:[%s594 + $0x32] sm:$0xff]
        %v664 = vld [vmem:[%s594 + $0x3a] sm:$0xff]
        %v665 = vld [vmem:[%s594 + $0x4a] sm:$0xff]
        %v666 = vld [vmem:[%s594 + $0x52] sm:$0xff]
        %v667 = vld [vmem:[%s594 + $0x62] sm:$0xff]
        %v668 = vld [vmem:[%s594 + $0x6a] sm:$0xff]
        %v669 = vld [vmem:[%s594 + $0x7a] sm:$0xff]
        %v670 = vld [vmem:[%s594 + $0x82] sm:$0xff]
        %v671 = vld [vmem:[%s594 + $0x92] sm:$0xff]
        %v672 = vld [vmem:[%s594 + $0x9a] sm:$0xff]
        %v673 = vld [vmem:[%s594 + $0xaa] sm:$0xff]
        %v674 = vld [vmem:[%s594 + $0xb2] sm:$0xff]
        %v675 = vld [vmem:[%s594 + $0xc2] sm:$0xff]
        %v676 = vld [vmem:[%s594 + $0xca] sm:$0xff]
        %v677 = vld [vmem:[%s594 + $0xda] sm:$0xff]
        %v678 = vld [vmem:[%s594 + $0xe2] sm:$0xff]
        %v679 = vld [vmem:[%s594 + $0xf2] sm:$0xff]
        %v680 = vld [vmem:[%s594 + $0xfa] sm:$0xff]
        %v681 = vld [vmem:[%s594 + $0x10a] sm:$0xff]
        %v682 = vld [vmem:[%s594 + $0x112] sm:$0xff]
        %v683 = vld [vmem:[%s594 + $0x122] sm:$0xff]
        %v684 = vld [vmem:[%s594 + $0x12a] sm:$0xff]
        %v685 = vld [vmem:[%s594 + $0x13a] sm:$0xff]
        %v686 = vld [vmem:[%s594 + $0x142] sm:$0xff]
        %v687 = vld [vmem:[%s594 + $0x152] sm:$0xff]
        %v688 = vld [vmem:[%s594 + $0x15a] sm:$0xff]
        %v689 = vld [vmem:[%s594 + $0x16a] sm:$0xff]
        %v690 = vld [vmem:[%s594 + $0x172] sm:$0xff]
        %v691 = vld [vmem:[#allocation6] sm:$0xff]
        %v692 = vld [vmem:[#allocation6 + $0x8] sm:$0xff]
        %v693 = vld [vmem:[#allocation6 + $0x10] sm:$0xff]
        %v694 = vld [vmem:[#allocation6 + $0x18] sm:$0xff]
        %v695 = vld [vmem:[#allocation6 + $0x20] sm:$0xff]
        %v696 = vld [vmem:[#allocation6 + $0x28] sm:$0xff]
        %v697 = vld [vmem:[#allocation6 + $0x30] sm:$0xff]
        %v698 = vld [vmem:[#allocation6 + $0x38] sm:$0xff]
        %v699 = vld [vmem:[#allocation6 + $0x40] sm:$0xff]
        %v700 = vld [vmem:[#allocation6 + $0x48] sm:$0xff]
        %v701 = vld [vmem:[#allocation6 + $0x50] sm:$0xff]
        %v702 = vld [vmem:[#allocation6 + $0x58] sm:$0xff]
        %v703 = vld [vmem:[#allocation6 + $0x60] sm:$0xff]
        %v704 = vld [vmem:[#allocation6 + $0x68] sm:$0xff]
        %v705 = vld [vmem:[#allocation6 + $0x70] sm:$0xff]
        %v706 = vld [vmem:[#allocation6 + $0x78] sm:$0xff]
        %v707 = vld [vmem:[#allocation6 + $0x80] sm:$0xff]
        %v708 = vld [vmem:[#allocation6 + $0x88] sm:$0xff]
        %v709 = vld [vmem:[#allocation6 + $0x90] sm:$0xff]
        %v710 = vld [vmem:[#allocation6 + $0x98] sm:$0xff]
        %v711 = vld [vmem:[#allocation6 + $0xa0] sm:$0xff]
        %v712 = vld [vmem:[#allocation6 + $0xa8] sm:$0xff]
        %v713 = vld [vmem:[#allocation6 + $0xb0] sm:$0xff]
        %v714 = vld [vmem:[#allocation6 + $0xb8] sm:$0xff]
        %v715 = vld [vmem:[#allocation6 + $0xc0] sm:$0xff]
        %v716 = vld [vmem:[#allocation6 + $0xc8] sm:$0xff]
        %v717 = vld [vmem:[#allocation6 + $0xd0] sm:$0xff]
        %v718 = vld [vmem:[#allocation6 + $0xd8] sm:$0xff]
        %v719 = vld [vmem:[#allocation6 + $0xe0] sm:$0xff]
        %v720 = vld [vmem:[#allocation6 + $0xe8] sm:$0xff]
        %v721 = vld [vmem:[#allocation6 + $0xf0] sm:$0xff]
        %v722 = vld [vmem:[#allocation6 + $0xf8] sm:$0xff]
        %v723 = vld [vmem:[#allocation6 + $0x100] sm:$0xff]
        %v724 = vld [vmem:[#allocation6 + $0x108] sm:$0xff]
        %v725 = vld [vmem:[#allocation6 + $0x110] sm:$0xff]
        %v726 = vld [vmem:[#allocation6 + $0x118] sm:$0xff]
        %v727 = vld [vmem:[#allocation6 + $0x120] sm:$0xff]
        %v728 = vld [vmem:[#allocation6 + $0x128] sm:$0xff]
        %v729 = vld [vmem:[#allocation6 + $0x130] sm:$0xff]
        %v730 = vld [vmem:[#allocation6 + $0x138] sm:$0xff]
        %v731 = vld [vmem:[#allocation6 + $0x140] sm:$0xff]
        %v732 = vld [vmem:[#allocation6 + $0x148] sm:$0xff]
        %v733 = vld [vmem:[#allocation6 + $0x150] sm:$0xff]
        %v734 = vld [vmem:[#allocation6 + $0x158] sm:$0xff]
        %v735 = vld [vmem:[#allocation6 + $0x160] sm:$0xff]
        %v736 = vld [vmem:[#allocation6 + $0x168] sm:$0xff]
        %v737 = vld [vmem:[#allocation6 + $0x170] sm:$0xff]
        %v738 = vld [vmem:[#allocation6 + $0x178] sm:$0xff]
        %v739 = vld [vmem:[#allocation6 + $0x180] sm:$0xff]
        %v740 = vld [vmem:[#allocation6 + $0x188] sm:$0xff]
        %v741 = vld [vmem:[#allocation6 + $0x190] sm:$0xff]
        %v742 = vld [vmem:[#allocation6 + $0x198] sm:$0xff]
        %v743 = vld [vmem:[#allocation6 + $0x1a0] sm:$0xff]
        %v744 = vld [vmem:[#allocation6 + $0x1a8] sm:$0xff]
        %v745 = vld [vmem:[#allocation6 + $0x1b0] sm:$0xff]
        %v746 = vld [vmem:[#allocation6 + $0x1b8] sm:$0xff]
        %v747 = vld [vmem:[#allocation6 + $0x1c0] sm:$0xff]
        %v748 = vld [vmem:[#allocation6 + $0x1c8] sm:$0xff]
        %v749 = vld [vmem:[#allocation6 + $0x1d0] sm:$0xff]
        %v750 = vld [vmem:[#allocation6 + $0x1d8] sm:$0xff]
        %v751 = vld [vmem:[#allocation6 + $0x1e0] sm:$0xff]
        %v752 = vld [vmem:[#allocation6 + $0x1e8] sm:$0xff]
        %v753 = vld [vmem:[#allocation6 + $0x1f0] sm:$0xff]
        %v754 = vld [vmem:[#allocation6 + $0x1f8] sm:$0xff]
        %v755 = vld [vmem:[#allocation6 + $0x200] sm:$0xff]
        %v756 = vld [vmem:[#allocation6 + $0x208] sm:$0xff]
        %v757 = vld [vmem:[#allocation6 + $0x210] sm:$0xff]
        %v758 = vld [vmem:[#allocation6 + $0x218] sm:$0xff]
        %v759 = vld [vmem:[#allocation6 + $0x220] sm:$0xff]
        %v760 = vld [vmem:[#allocation6 + $0x228] sm:$0xff]
        %v761 = vld [vmem:[#allocation6 + $0x230] sm:$0xff]
        %v762 = vld [vmem:[#allocation6 + $0x238] sm:$0xff]
        %v763 = vld [vmem:[#allocation6 + $0x240] sm:$0xff]
        %v764 = vld [vmem:[#allocation6 + $0x248] sm:$0xff]
        %v765 = vld [vmem:[#allocation6 + $0x250] sm:$0xff]
        %v766 = vld [vmem:[#allocation6 + $0x258] sm:$0xff]
        %v767 = vld [vmem:[#allocation6 + $0x260] sm:$0xff]
        %v768 = vld [vmem:[#allocation6 + $0x268] sm:$0xff]
        %v769 = vld [vmem:[#allocation6 + $0x270] sm:$0xff]
        %v770 = vld [vmem:[#allocation6 + $0x278] sm:$0xff]
        %v771 = vld [vmem:[#allocation6 + $0x280] sm:$0xff]
        %v772 = vld [vmem:[#allocation6 + $0x288] sm:$0xff]
        %v773 = vld [vmem:[#allocation6 + $0x290] sm:$0xff]
        %v774 = vld [vmem:[#allocation6 + $0x298] sm:$0xff]
        %v775 = vld [vmem:[#allocation6 + $0x2a0] sm:$0xff]
        %v776 = vld [vmem:[#allocation6 + $0x2a8] sm:$0xff]
        %v777 = vld [vmem:[#allocation6 + $0x2b0] sm:$0xff]
        %v778 = vld [vmem:[#allocation6 + $0x2b8] sm:$0xff]
        %v779 = vld [vmem:[#allocation6 + $0x2c0] sm:$0xff]
        %v780 = vld [vmem:[#allocation6 + $0x2c8] sm:$0xff]
        %v781 = vld [vmem:[#allocation6 + $0x2d0] sm:$0xff]
        %v782 = vld [vmem:[#allocation6 + $0x2d8] sm:$0xff]
        %v783 = vld [vmem:[#allocation6 + $0x2e0] sm:$0xff]
        %v784 = vld [vmem:[#allocation6 + $0x2e8] sm:$0xff]
        %v785 = vld [vmem:[#allocation6 + $0x2f0] sm:$0xff]
        %v786 = vld [vmem:[#allocation6 + $0x2f8] sm:$0xff]
        %v787 = vld [vmem:[#allocation6 + $0x300] sm:$0xff]
        %v788 = vld [vmem:[#allocation6 + $0x308] sm:$0xff]
        %v789 = vld [vmem:[#allocation6 + $0x310] sm:$0xff]
        %v790 = vld [vmem:[#allocation6 + $0x318] sm:$0xff]
        %v791 = vld [vmem:[#allocation6 + $0x320] sm:$0xff]
        %v792 = vld [vmem:[#allocation6 + $0x328] sm:$0xff]
        %v793 = vld [vmem:[#allocation6 + $0x330] sm:$0xff]
        %v794 = vld [vmem:[#allocation6 + $0x338] sm:$0xff]
        %v795 = vld [vmem:[#allocation6 + $0x340] sm:$0xff]
        %v796 = vld [vmem:[#allocation6 + $0x348] sm:$0xff]
        %v797 = vld [vmem:[#allocation6 + $0x350] sm:$0xff]
        %v798 = vld [vmem:[#allocation6 + $0x358] sm:$0xff]
        %v799 = vld [vmem:[#allocation6 + $0x360] sm:$0xff]
        %v800 = vld [vmem:[#allocation6 + $0x368] sm:$0xff]
        %v801 = vld [vmem:[#allocation6 + $0x370] sm:$0xff]
        %v802 = vld [vmem:[#allocation6 + $0x378] sm:$0xff]
        %v803 = vld [vmem:[#allocation6 + $0x380] sm:$0xff]
        %v804 = vld [vmem:[#allocation6 + $0x388] sm:$0xff]
        %v805 = vld [vmem:[#allocation6 + $0x390] sm:$0xff]
        %v806 = vld [vmem:[#allocation6 + $0x398] sm:$0xff]
        %v807 = vld [vmem:[#allocation6 + $0x3a0] sm:$0xff]
        %v808 = vld [vmem:[#allocation6 + $0x3a8] sm:$0xff]
        %v809 = vld [vmem:[#allocation6 + $0x3b0] sm:$0xff]
        %v810 = vld [vmem:[#allocation6 + $0x3b8] sm:$0xff]
        %v811 = vld [vmem:[#allocation6 + $0x3c0] sm:$0xff]
        %v812 = vld [vmem:[#allocation6 + $0x3c8] sm:$0xff]
        %v813 = vld [vmem:[#allocation6 + $0x3d0] sm:$0xff]
        %v814 = vld [vmem:[#allocation6 + $0x3d8] sm:$0xff]
        %v815 = vld [vmem:[#allocation6 + $0x3e0] sm:$0xff]
        %v816 = vld [vmem:[#allocation6 + $0x3e8] sm:$0xff]
        %v817 = vld [vmem:[#allocation6 + $0x3f0] sm:$0xff]
        %v818 = vld [vmem:[#allocation6 + $0x3f8] sm:$0xff]
        %v819 = vld [vmem:[#allocation6 + $0x400] sm:$0xff]
        %v820 = vld [vmem:[#allocation6 + $0x408] sm:$0xff]
        %v821 = vld [vmem:[#allocation6 + $0x410] sm:$0xff]
        %v822 = vld [vmem:[#allocation6 + $0x418] sm:$0xff]
        %v823 = vld [vmem:[#allocation6 + $0x420] sm:$0xff]
        %v824 = vld [vmem:[#allocation6 + $0x428] sm:$0xff]
        %v825 = vld [vmem:[#allocation6 + $0x430] sm:$0xff]
        %v826 = vld [vmem:[#allocation6 + $0x438] sm:$0xff]
        %v827 = vld [vmem:[#allocation6 + $0x440] sm:$0xff]
        %v828 = vld [vmem:[#allocation6 + $0x448] sm:$0xff]
        %v829 = vld [vmem:[#allocation6 + $0x450] sm:$0xff]
        %v830 = vld [vmem:[#allocation6 + $0x458] sm:$0xff]
        %v831 = vld [vmem:[#allocation6 + $0x460] sm:$0xff]
        %v832 = vld [vmem:[#allocation6 + $0x468] sm:$0xff]
        %v833 = vld [vmem:[#allocation6 + $0x470] sm:$0xff]
        %v834 = vld [vmem:[#allocation6 + $0x478] sm:$0xff]
        %835 = vmatprep.subr.mxu0 0.0
        %836 = vmatpush1.msra.mxu0 %v706
        %837 = vmatprep.subr.mxu0 0.0
        %838 = vmatpush1.msra.mxu0 %v705
        %839 = vmatprep.subr.mxu0 0.0
        %840 = vmatpush1.msra.mxu0 %v704
        %841 = vmatprep.subr.mxu0 0.0
        %842 = vmatpush1.msra.mxu0 %v703
        %843 = vmatprep.subr.mxu0 0.0
        %844 = vmatpush1.msra.mxu0 %v702
        %845 = vmatprep.subr.mxu0 0.0
        %846 = vmatpush1.msra.mxu0 %v701
        %847 = vmatprep.subr.mxu0 0.0
        %848 = vmatpush1.msra.mxu0 %v700
        %849 = vmatprep.subr.mxu0 0.0
        %850 = vmatpush1.msra.mxu0 %v699
        %851 = vmatprep.subr.mxu0 0.0
        %852 = vmatpush1.msra.mxu0 %v698
        %853 = vmatprep.subr.mxu0 0.0
        %854 = vmatpush1.msra.mxu0 %v697
        %855 = vmatprep.subr.mxu0 0.0
        %856 = vmatpush1.msra.mxu0 %v696
        %857 = vmatprep.subr.mxu0 0.0
        %858 = vmatpush1.msra.mxu0 %v695
        %859 = vmatprep.subr.mxu0 0.0
        %860 = vmatpush1.msra.mxu0 %v694
        %861 = vmatprep.subr.mxu0 0.0
        %862 = vmatpush1.msra.mxu0 %v693
        %863 = vmatprep.subr.mxu0 0.0
        %864 = vmatpush1.msra.mxu0 %v692
        %865 = vmatprep.subr.mxu0 0.0
        %866 = vmatpush1.msra.mxu0 %v691
        %867 = vmatprep.subr.mxu0 0.0
        %868 = vmatpush2.msra.mxu0 %v722
        %869 = vmatprep.subr.mxu0 0.0
        %870 = vmatpush2.msra.mxu0 %v721
        %871 = vmatprep.subr.mxu0 0.0
        %872 = vmatpush2.msra.mxu0 %v720
        %873 = vmatprep.subr.mxu0 0.0
        %874 = vmatpush2.msra.mxu0 %v719
        %875 = vmatprep.subr.mxu0 0.0
        %876 = vmatpush2.msra.mxu0 %v718
        %877 = vmatprep.subr.mxu0 0.0
        %878 = vmatpush2.msra.mxu0 %v717
        %879 = vmatprep.subr.mxu0 0.0
        %880 = vmatpush2.msra.mxu0 %v716
        %881 = vmatprep.subr.mxu0 0.0
        %882 = vmatpush2.msra.mxu0 %v715
        %883 = vmatprep.subr.mxu0 0.0
        %884 = vmatpush2.msra.mxu0 %v714
        %885 = vmatprep.subr.mxu0 0.0
        %886 = vmatpush2.msra.mxu0 %v713
        %887 = vmatprep.subr.mxu0 0.0
        %888 = vmatpush2.msra.mxu0 %v712
        %889 = vmatprep.subr.mxu0 0.0
        %890 = vmatpush2.msra.mxu0 %v711
        %891 = vmatprep.subr.mxu0 0.0
        %892 = vmatpush2.msra.mxu0 %v710
        %893 = vmatprep.subr.mxu0 0.0
        %894 = vmatpush2.msra.mxu0 %v709
        %895 = vmatprep.subr.mxu0 0.0
        %896 = vmatpush2.msra.mxu0 %v708
        %897 = vmatprep.subr.mxu0 0.0
        %898 = vmatpush2.msra.mxu0 %v707
        %899 = vmatprep.mubr.f32.mxu0 %v434
        %900 = vmatmul.mubr.f32.gmra.mxu0 %v402
        %v901 = vpop.f32.mrf.mxu0
        %v902 = vadd.f32 0.0, %v901
        %v903 = vpop.f32.mrf.mxu0
        %904 = vmatprep.mubr.f32.mxu0 %v435
        %905 = vmatmul.mubr.f32.gmra.mxu0 %v403
        %v906 = vpop.f32.mrf.mxu0
        %v907 = vadd.f32 0.0, %v906
        %v908 = vpop.f32.mrf.mxu0
        %909 = vmatprep.mubr.f32.mxu0 %v436
        %910 = vmatmul.mubr.f32.gmra.mxu0 %v404
        %v911 = vpop.f32.mrf.mxu0
        %v912 = vadd.f32 0.0, %v911
        %v913 = vpop.f32.mrf.mxu0
        %914 = vmatprep.mubr.f32.mxu0 %v437
        %915 = vmatmul.mubr.f32.gmra.mxu0 %v405
        %v916 = vpop.f32.mrf.mxu0
        %v917 = vadd.f32 0.0, %v916
        %v918 = vpop.f32.mrf.mxu0
        %919 = vmatprep.mubr.f32.mxu0 %v438
        %920 = vmatmul.mubr.f32.gmra.mxu0 %v406
        %v921 = vpop.f32.mrf.mxu0
        %v922 = vadd.f32 0.0, %v921
        %v923 = vpop.f32.mrf.mxu0
        %924 = vmatprep.mubr.f32.mxu0 %v439
        %925 = vmatmul.mubr.f32.gmra.mxu0 %v407
        %v926 = vpop.f32.mrf.mxu0
        %v927 = vadd.f32 0.0, %v926
        %v928 = vpop.f32.mrf.mxu0
        %929 = vmatprep.mubr.f32.mxu0 %v440
        %930 = vmatmul.mubr.f32.gmra.mxu0 %v408
        %v931 = vpop.f32.mrf.mxu0
        %v932 = vadd.f32 0.0, %v931
        %v933 = vpop.f32.mrf.mxu0
        %934 = vmatprep.mubr.f32.mxu0 %v441
        %935 = vmatmul.mubr.f32.gmra.mxu0 %v409
        %v936 = vpop.f32.mrf.mxu0
        %v937 = vadd.f32 0.0, %v936
        %v938 = vpop.f32.mrf.mxu0
        %939 = vmatprep.mubr.f32.mxu0 %v442
        %940 = vmatmul.mubr.f32.gmra.mxu0 %v410
        %v941 = vpop.f32.mrf.mxu0
        %v942 = vadd.f32 0.0, %v941
        %v943 = vpop.f32.mrf.mxu0
        %944 = vmatprep.mubr.f32.mxu0 %v443
        %945 = vmatmul.mubr.f32.gmra.mxu0 %v411
        %v946 = vpop.f32.mrf.mxu0
        %v947 = vadd.f32 0.0, %v946
        %v948 = vpop.f32.mrf.mxu0
        %949 = vmatprep.mubr.f32.mxu0 %v444
        %950 = vmatmul.mubr.f32.gmra.mxu0 %v412
        %v951 = vpop.f32.mrf.mxu0
        %v952 = vadd.f32 0.0, %v951
        %v953 = vpop.f32.mrf.mxu0
        %954 = vmatprep.mubr.f32.mxu0 %v445
        %955 = vmatmul.mubr.f32.gmra.mxu0 %v413
        %v956 = vpop.f32.mrf.mxu0
        %v957 = vadd.f32 0.0, %v956
        %v958 = vpop.f32.mrf.mxu0
        %959 = vmatprep.mubr.f32.mxu0 %v446
        %960 = vmatmul.mubr.f32.gmra.mxu0 %v414
        %v961 = vpop.f32.mrf.mxu0
        %v962 = vadd.f32 0.0, %v961
        %v963 = vpop.f32.mrf.mxu0
        %964 = vmatprep.mubr.f32.mxu0 %v447
        %965 = vmatmul.mubr.f32.gmra.mxu0 %v415
        %v966 = vpop.f32.mrf.mxu0
        %v967 = vadd.f32 0.0, %v966
        %v968 = vpop.f32.mrf.mxu0
        %969 = vmatprep.mubr.f32.mxu0 %v448
        %970 = vmatmul.mubr.f32.gmra.mxu0 %v416
        %v971 = vpop.f32.mrf.mxu0
        %v972 = vadd.f32 0.0, %v971
        %v973 = vpop.f32.mrf.mxu0
        %974 = vmatprep.mubr.f32.mxu0 %v449
        %975 = vmatmul.mubr.f32.gmra.mxu0 %v417
        %v976 = vpop.f32.mrf.mxu0
        %v977 = vadd.f32 0.0, %v976
        %v978 = vpop.f32.mrf.mxu0
        %979 = vmatprep.mubr.f32.mxu0 %v450
        %980 = vmatmul.mubr.f32.gmra.mxu0 %v418
        %v981 = vpop.f32.mrf.mxu0
        %v982 = vadd.f32 0.0, %v981
        %v983 = vpop.f32.mrf.mxu0
        %984 = vmatprep.mubr.f32.mxu0 %v451
        %985 = vmatmul.mubr.f32.gmra.mxu0 %v419
        %v986 = vpop.f32.mrf.mxu0
        %v987 = vadd.f32 0.0, %v986
        %v988 = vpop.f32.mrf.mxu0
        %989 = vmatprep.mubr.f32.mxu0 %v452
        %990 = vmatmul.mubr.f32.gmra.mxu0 %v420
        %v991 = vpop.f32.mrf.mxu0
        %v992 = vadd.f32 0.0, %v991
        %v993 = vpop.f32.mrf.mxu0
        %994 = vmatprep.mubr.f32.mxu0 %v453
        %995 = vmatmul.mubr.f32.gmra.mxu0 %v421
        %v996 = vpop.f32.mrf.mxu0
        %v997 = vadd.f32 0.0, %v996
        %v998 = vpop.f32.mrf.mxu0
        %999 = vmatprep.mubr.f32.mxu0 %v454
        %1000 = vmatmul.mubr.f32.gmra.mxu0 %v422
        %v1001 = vpop.f32.mrf.mxu0
        %v1002 = vadd.f32 0.0, %v1001
        %v1003 = vpop.f32.mrf.mxu0
        %1004 = vmatprep.mubr.f32.mxu0 %v455
        %1005 = vmatmul.mubr.f32.gmra.mxu0 %v423
        %v1006 = vpop.f32.mrf.mxu0
        %v1007 = vadd.f32 0.0, %v1006
        %v1008 = vpop.f32.mrf.mxu0
        %1009 = vmatprep.mubr.f32.mxu0 %v456
        %1010 = vmatmul.mubr.f32.gmra.mxu0 %v424
        %v1011 = vpop.f32.mrf.mxu0
        %v1012 = vadd.f32 0.0, %v1011
        %v1013 = vpop.f32.mrf.mxu0
        %1014 = vmatprep.mubr.f32.mxu0 %v457
        %1015 = vmatmul.mubr.f32.gmra.mxu0 %v425
        %v1016 = vpop.f32.mrf.mxu0
        %v1017 = vadd.f32 0.0, %v1016
        %v1018 = vpop.f32.mrf.mxu0
        %1019 = vmatprep.mubr.f32.mxu0 %v458
        %1020 = vmatmul.mubr.f32.gmra.mxu0 %v426
        %v1021 = vpop.f32.mrf.mxu0
        %v1022 = vadd.f32 0.0, %v1021
        %v1023 = vpop.f32.mrf.mxu0
        %1024 = vmatprep.mubr.f32.mxu0 %v459
        %1025 = vmatmul.mubr.f32.gmra.mxu0 %v427
        %v1026 = vpop.f32.mrf.mxu0
        %v1027 = vadd.f32 0.0, %v1026
        %v1028 = vpop.f32.mrf.mxu0
        %1029 = vmatprep.mubr.f32.mxu0 %v460
        %1030 = vmatmul.mubr.f32.gmra.mxu0 %v428
        %v1031 = vpop.f32.mrf.mxu0
        %v1032 = vadd.f32 0.0, %v1031
        %v1033 = vpop.f32.mrf.mxu0
        %1034 = vmatprep.mubr.f32.mxu0 %v461
        %1035 = vmatmul.mubr.f32.gmra.mxu0 %v429
        %v1036 = vpop.f32.mrf.mxu0
        %v1037 = vadd.f32 0.0, %v1036
        %v1038 = vpop.f32.mrf.mxu0
        %1039 = vmatprep.mubr.f32.mxu0 %v462
        %1040 = vmatmul.mubr.f32.gmra.mxu0 %v430
        %v1041 = vpop.f32.mrf.mxu0
        %v1042 = vadd.f32 0.0, %v1041
        %v1043 = vpop.f32.mrf.mxu0
        %1044 = vmatprep.mubr.f32.mxu0 %v463
        %1045 = vmatmul.mubr.f32.gmra.mxu0 %v431
        %v1046 = vpop.f32.mrf.mxu0
        %v1047 = vadd.f32 0.0, %v1046
        %v1048 = vpop.f32.mrf.mxu0
        %1049 = vmatprep.mubr.f32.mxu0 %v464
        %1050 = vmatmul.mubr.f32.gmra.mxu0 %v432
        %v1051 = vpop.f32.mrf.mxu0
        %v1052 = vadd.f32 0.0, %v1051
        %v1053 = vpop.f32.mrf.mxu0
        %1054 = vmatprep.mubr.f32.mxu0 %v465
        %1055 = vmatmul.mubr.f32.gmra.mxu0 %v433
        %v1056 = vpop.f32.mrf.mxu0
        %v1057 = vadd.f32 0.0, %v1056
        %v1058 = vpop.f32.mrf.mxu0
        %1059 = vdwg.mxu0
        %1060 = vmatprep.subr.mxu0 0.0
        %1061 = vmatpush1.msra.mxu0 %v738
        %1062 = vmatprep.subr.mxu0 0.0
        %1063 = vmatpush1.msra.mxu0 %v737
        %1064 = vmatprep.subr.mxu0 0.0
        %1065 = vmatpush1.msra.mxu0 %v736
        %1066 = vmatprep.subr.mxu0 0.0
        %1067 = vmatpush1.msra.mxu0 %v735
        %1068 = vmatprep.subr.mxu0 0.0
        %1069 = vmatpush1.msra.mxu0 %v734
        %1070 = vmatprep.subr.mxu0 0.0
        %1071 = vmatpush1.msra.mxu0 %v733
        %1072 = vmatprep.subr.mxu0 0.0
        %1073 = vmatpush1.msra.mxu0 %v732
        %1074 = vmatprep.subr.mxu0 0.0
        %1075 = vmatpush1.msra.mxu0 %v731
        %1076 = vmatprep.subr.mxu0 0.0
        %1077 = vmatpush1.msra.mxu0 %v730
        %1078 = vmatprep.subr.mxu0 0.0
        %1079 = vmatpush1.msra.mxu0 %v729
        %1080 = vmatprep.subr.mxu0 0.0
        %1081 = vmatpush1.msra.mxu0 %v728
        %1082 = vmatprep.subr.mxu0 0.0
        %1083 = vmatpush1.msra.mxu0 %v727
        %1084 = vmatprep.subr.mxu0 0.0
        %1085 = vmatpush1.msra.mxu0 %v726
        %1086 = vmatprep.subr.mxu0 0.0
        %1087 = vmatpush1.msra.mxu0 %v725
        %1088 = vmatprep.subr.mxu0 0.0
        %1089 = vmatpush1.msra.mxu0 %v724
        %1090 = vmatprep.subr.mxu0 0.0
        %1091 = vmatpush1.msra.mxu0 %v723
        %1092 = vmatprep.subr.mxu0 0.0
        %1093 = vmatpush2.msra.mxu0 %v754
        %1094 = vmatprep.subr.mxu0 0.0
        %1095 = vmatpush2.msra.mxu0 %v753
        %1096 = vmatprep.subr.mxu0 0.0
        %1097 = vmatpush2.msra.mxu0 %v752
        %1098 = vmatprep.subr.mxu0 0.0
        %1099 = vmatpush2.msra.mxu0 %v751
        %1100 = vmatprep.subr.mxu0 0.0
        %1101 = vmatpush2.msra.mxu0 %v750
        %1102 = vmatprep.subr.mxu0 0.0
        %1103 = vmatpush2.msra.mxu0 %v749
        %1104 = vmatprep.subr.mxu0 0.0
        %1105 = vmatpush2.msra.mxu0 %v748
        %1106 = vmatprep.subr.mxu0 0.0
        %1107 = vmatpush2.msra.mxu0 %v747
        %1108 = vmatprep.subr.mxu0 0.0
        %1109 = vmatpush2.msra.mxu0 %v746
        %1110 = vmatprep.subr.mxu0 0.0
        %1111 = vmatpush2.msra.mxu0 %v745
        %1112 = vmatprep.subr.mxu0 0.0
        %1113 = vmatpush2.msra.mxu0 %v744
        %1114 = vmatprep.subr.mxu0 0.0
        %1115 = vmatpush2.msra.mxu0 %v743
        %1116 = vmatprep.subr.mxu0 0.0
        %1117 = vmatpush2.msra.mxu0 %v742
        %1118 = vmatprep.subr.mxu0 0.0
        %1119 = vmatpush2.msra.mxu0 %v741
        %1120 = vmatprep.subr.mxu0 0.0
        %1121 = vmatpush2.msra.mxu0 %v740
        %1122 = vmatprep.subr.mxu0 0.0
        %1123 = vmatpush2.msra.mxu0 %v739
        %1124 = vmatprep.mubr.f32.mxu0 %v498
        %1125 = vmatmul.mubr.f32.gmra.mxu0 %v466
        %v1126 = vpop.f32.mrf.mxu0
        %v1127 = vadd.f32 %v902, %v1126
        %v1128 = vpop.f32.mrf.mxu0
        %1129 = vmatprep.mubr.f32.mxu0 %v499
        %1130 = vmatmul.mubr.f32.gmra.mxu0 %v467
        %v1131 = vpop.f32.mrf.mxu0
        %v1132 = vadd.f32 %v907, %v1131
        %v1133 = vpop.f32.mrf.mxu0
        %1134 = vmatprep.mubr.f32.mxu0 %v500
        %1135 = vmatmul.mubr.f32.gmra.mxu0 %v468
        %v1136 = vpop.f32.mrf.mxu0
        %v1137 = vadd.f32 %v912, %v1136
        %v1138 = vpop.f32.mrf.mxu0
        %1139 = vmatprep.mubr.f32.mxu0 %v501
        %1140 = vmatmul.mubr.f32.gmra.mxu0 %v469
        %v1141 = vpop.f32.mrf.mxu0
        %v1142 = vadd.f32 %v917, %v1141
        %v1143 = vpop.f32.mrf.mxu0
        %1144 = vmatprep.mubr.f32.mxu0 %v502
        %1145 = vmatmul.mubr.f32.gmra.mxu0 %v470
        %v1146 = vpop.f32.mrf.mxu0
        %v1147 = vadd.f32 %v922, %v1146
        %v1148 = vpop.f32.mrf.mxu0
        %1149 = vmatprep.mubr.f32.mxu0 %v503
        %1150 = vmatmul.mubr.f32.gmra.mxu0 %v471
        %v1151 = vpop.f32.mrf.mxu0
        %v1152 = vadd.f32 %v927, %v1151
        %v1153 = vpop.f32.mrf.mxu0
        %1154 = vmatprep.mubr.f32.mxu0 %v504
        %1155 = vmatmul.mubr.f32.gmra.mxu0 %v472
        %v1156 = vpop.f32.mrf.mxu0
        %v1157 = vadd.f32 %v932, %v1156
        %v1158 = vpop.f32.mrf.mxu0
        %1159 = vmatprep.mubr.f32.mxu0 %v505
        %1160 = vmatmul.mubr.f32.gmra.mxu0 %v473
        %v1161 = vpop.f32.mrf.mxu0
        %v1162 = vadd.f32 %v937, %v1161
        %v1163 = vpop.f32.mrf.mxu0
        %1164 = vmatprep.mubr.f32.mxu0 %v506
        %1165 = vmatmul.mubr.f32.gmra.mxu0 %v474
        %v1166 = vpop.f32.mrf.mxu0
        %v1167 = vadd.f32 %v942, %v1166
        %v1168 = vpop.f32.mrf.mxu0
        %1169 = vmatprep.mubr.f32.mxu0 %v507
        %1170 = vmatmul.mubr.f32.gmra.mxu0 %v475
        %v1171 = vpop.f32.mrf.mxu0
        %v1172 = vadd.f32 %v947, %v1171
        %v1173 = vpop.f32.mrf.mxu0
        %1174 = vmatprep.mubr.f32.mxu0 %v508
        %1175 = vmatmul.mubr.f32.gmra.mxu0 %v476
        %v1176 = vpop.f32.mrf.mxu0
        %v1177 = vadd.f32 %v952, %v1176
        %v1178 = vpop.f32.mrf.mxu0
        %1179 = vmatprep.mubr.f32.mxu0 %v509
        %1180 = vmatmul.mubr.f32.gmra.mxu0 %v477
        %v1181 = vpop.f32.mrf.mxu0
        %v1182 = vadd.f32 %v957, %v1181
        %v1183 = vpop.f32.mrf.mxu0
        %1184 = vmatprep.mubr.f32.mxu0 %v510
        %1185 = vmatmul.mubr.f32.gmra.mxu0 %v478
        %v1186 = vpop.f32.mrf.mxu0
        %v1187 = vadd.f32 %v962, %v1186
        %v1188 = vpop.f32.mrf.mxu0
        %1189 = vmatprep.mubr.f32.mxu0 %v511
        %1190 = vmatmul.mubr.f32.gmra.mxu0 %v479
        %v1191 = vpop.f32.mrf.mxu0
        %v1192 = vadd.f32 %v967, %v1191
        %v1193 = vpop.f32.mrf.mxu0
        %1194 = vmatprep.mubr.f32.mxu0 %v512
        %1195 = vmatmul.mubr.f32.gmra.mxu0 %v480
        %v1196 = vpop.f32.mrf.mxu0
        %v1197 = vadd.f32 %v972, %v1196
        %v1198 = vpop.f32.mrf.mxu0
        %1199 = vmatprep.mubr.f32.mxu0 %v513
        %1200 = vmatmul.mubr.f32.gmra.mxu0 %v481
        %v1201 = vpop.f32.mrf.mxu0
        %v1202 = vadd.f32 %v977, %v1201
        %v1203 = vpop.f32.mrf.mxu0
        %1204 = vmatprep.mubr.f32.mxu0 %v514
        %1205 = vmatmul.mubr.f32.gmra.mxu0 %v482
        %v1206 = vpop.f32.mrf.mxu0
        %v1207 = vadd.f32 %v982, %v1206
        %v1208 = vpop.f32.mrf.mxu0
        %1209 = vmatprep.mubr.f32.mxu0 %v515
        %1210 = vmatmul.mubr.f32.gmra.mxu0 %v483
        %v1211 = vpop.f32.mrf.mxu0
        %v1212 = vadd.f32 %v987, %v1211
        %v1213 = vpop.f32.mrf.mxu0
        %1214 = vmatprep.mubr.f32.mxu0 %v516
        %1215 = vmatmul.mubr.f32.gmra.mxu0 %v484
        %v1216 = vpop.f32.mrf.mxu0
        %v1217 = vadd.f32 %v992, %v1216
        %v1218 = vpop.f32.mrf.mxu0
        %1219 = vmatprep.mubr.f32.mxu0 %v517
        %1220 = vmatmul.mubr.f32.gmra.mxu0 %v485
        %v1221 = vpop.f32.mrf.mxu0
        %v1222 = vadd.f32 %v997, %v1221
        %v1223 = vpop.f32.mrf.mxu0
        %1224 = vmatprep.mubr.f32.mxu0 %v518
        %1225 = vmatmul.mubr.f32.gmra.mxu0 %v486
        %v1226 = vpop.f32.mrf.mxu0
        %v1227 = vadd.f32 %v1002, %v1226
        %v1228 = vpop.f32.mrf.mxu0
        %1229 = vmatprep.mubr.f32.mxu0 %v519
        %1230 = vmatmul.mubr.f32.gmra.mxu0 %v487
        %v1231 = vpop.f32.mrf.mxu0
        %v1232 = vadd.f32 %v1007, %v1231
        %v1233 = vpop.f32.mrf.mxu0
        %1234 = vmatprep.mubr.f32.mxu0 %v520
        %1235 = vmatmul.mubr.f32.gmra.mxu0 %v488
        %v1236 = vpop.f32.mrf.mxu0
        %v1237 = vadd.f32 %v1012, %v1236
        %v1238 = vpop.f32.mrf.mxu0
        %1239 = vmatprep.mubr.f32.mxu0 %v521
        %1240 = vmatmul.mubr.f32.gmra.mxu0 %v489
        %v1241 = vpop.f32.mrf.mxu0
        %v1242 = vadd.f32 %v1017, %v1241
        %v1243 = vpop.f32.mrf.mxu0
        %1244 = vmatprep.mubr.f32.mxu0 %v522
        %1245 = vmatmul.mubr.f32.gmra.mxu0 %v490
        %v1246 = vpop.f32.mrf.mxu0
        %v1247 = vadd.f32 %v1022, %v1246
        %v1248 = vpop.f32.mrf.mxu0
        %1249 = vmatprep.mubr.f32.mxu0 %v523
        %1250 = vmatmul.mubr.f32.gmra.mxu0 %v491
        %v1251 = vpop.f32.mrf.mxu0
        %v1252 = vadd.f32 %v1027, %v1251
        %v1253 = vpop.f32.mrf.mxu0
        %1254 = vmatprep.mubr.f32.mxu0 %v524
        %1255 = vmatmul.mubr.f32.gmra.mxu0 %v492
        %v1256 = vpop.f32.mrf.mxu0
        %v1257 = vadd.f32 %v1032, %v1256
        %v1258 = vpop.f32.mrf.mxu0
        %1259 = vmatprep.mubr.f32.mxu0 %v525
        %1260 = vmatmul.mubr.f32.gmra.mxu0 %v493
        %v1261 = vpop.f32.mrf.mxu0
        %v1262 = vadd.f32 %v1037, %v1261
        %v1263 = vpop.f32.mrf.mxu0
        %1264 = vmatprep.mubr.f32.mxu0 %v526
        %1265 = vmatmul.mubr.f32.gmra.mxu0 %v494
        %v1266 = vpop.f32.mrf.mxu0
        %v1267 = vadd.f32 %v1042, %v1266
        %v1268 = vpop.f32.mrf.mxu0
        %1269 = vmatprep.mubr.f32.mxu0 %v527
        %1270 = vmatmul.mubr.f32.gmra.mxu0 %v495
        %v1271 = vpop.f32.mrf.mxu0
        %v1272 = vadd.f32 %v1047, %v1271
        %v1273 = vpop.f32.mrf.mxu0
        %1274 = vmatprep.mubr.f32.mxu0 %v528
        %1275 = vmatmul.mubr.f32.gmra.mxu0 %v496
        %v1276 = vpop.f32.mrf.mxu0
        %v1277 = vadd.f32 %v1052, %v1276
        %v1278 = vpop.f32.mrf.mxu0
        %1279 = vmatprep.mubr.f32.mxu0 %v529
        %1280 = vmatmul.mubr.f32.gmra.mxu0 %v497
        %v1281 = vpop.f32.mrf.mxu0
        %v1282 = vadd.f32 %v1057, %v1281
        %v1283 = vpop.f32.mrf.mxu0
        %1284 = vdwg.mxu0
        %1285 = vmatprep.subr.mxu0 0.0
        %1286 = vmatpush1.msra.mxu0 %v770
        %1287 = vmatprep.subr.mxu0 0.0
        %1288 = vmatpush1.msra.mxu0 %v769
        %1289 = vmatprep.subr.mxu0 0.0
        %1290 = vmatpush1.msra.mxu0 %v768
        %1291 = vmatprep.subr.mxu0 0.0
        %1292 = vmatpush1.msra.mxu0 %v767
        %1293 = vmatprep.subr.mxu0 0.0
        %1294 = vmatpush1.msra.mxu0 %v766
        %1295 = vmatprep.subr.mxu0 0.0
        %1296 = vmatpush1.msra.mxu0 %v765
        %1297 = vmatprep.subr.mxu0 0.0
        %1298 = vmatpush1.msra.mxu0 %v764
        %1299 = vmatprep.subr.mxu0 0.0
        %1300 = vmatpush1.msra.mxu0 %v763
        %1301 = vmatprep.subr.mxu0 0.0
        %1302 = vmatpush1.msra.mxu0 %v762
        %1303 = vmatprep.subr.mxu0 0.0
        %1304 = vmatpush1.msra.mxu0 %v761
        %1305 = vmatprep.subr.mxu0 0.0
        %1306 = vmatpush1.msra.mxu0 %v760
        %1307 = vmatprep.subr.mxu0 0.0
        %1308 = vmatpush1.msra.mxu0 %v759
        %1309 = vmatprep.subr.mxu0 0.0
        %1310 = vmatpush1.msra.mxu0 %v758
        %1311 = vmatprep.subr.mxu0 0.0
        %1312 = vmatpush1.msra.mxu0 %v757
        %1313 = vmatprep.subr.mxu0 0.0
        %1314 = vmatpush1.msra.mxu0 %v756
        %1315 = vmatprep.subr.mxu0 0.0
        %1316 = vmatpush1.msra.mxu0 %v755
        %1317 = vmatprep.subr.mxu0 0.0
        %1318 = vmatpush2.msra.mxu0 %v786
        %1319 = vmatprep.subr.mxu0 0.0
        %1320 = vmatpush2.msra.mxu0 %v785
        %1321 = vmatprep.subr.mxu0 0.0
        %1322 = vmatpush2.msra.mxu0 %v784
        %1323 = vmatprep.subr.mxu0 0.0
        %1324 = vmatpush2.msra.mxu0 %v783
        %1325 = vmatprep.subr.mxu0 0.0
        %1326 = vmatpush2.msra.mxu0 %v782
        %1327 = vmatprep.subr.mxu0 0.0
        %1328 = vmatpush2.msra.mxu0 %v781
        %1329 = vmatprep.subr.mxu0 0.0
        %1330 = vmatpush2.msra.mxu0 %v780
        %1331 = vmatprep.subr.mxu0 0.0
        %1332 = vmatpush2.msra.mxu0 %v779
        %1333 = vmatprep.subr.mxu0 0.0
        %1334 = vmatpush2.msra.mxu0 %v778
        %1335 = vmatprep.subr.mxu0 0.0
        %1336 = vmatpush2.msra.mxu0 %v777
        %1337 = vmatprep.subr.mxu0 0.0
        %1338 = vmatpush2.msra.mxu0 %v776
        %1339 = vmatprep.subr.mxu0 0.0
        %1340 = vmatpush2.msra.mxu0 %v775
        %1341 = vmatprep.subr.mxu0 0.0
        %1342 = vmatpush2.msra.mxu0 %v774
        %1343 = vmatprep.subr.mxu0 0.0
        %1344 = vmatpush2.msra.mxu0 %v773
        %1345 = vmatprep.subr.mxu0 0.0
        %1346 = vmatpush2.msra.mxu0 %v772
        %1347 = vmatprep.subr.mxu0 0.0
        %1348 = vmatpush2.msra.mxu0 %v771
        %1349 = vmatprep.mubr.f32.mxu0 %v562
        %1350 = vmatmul.mubr.f32.gmra.mxu0 %v530
        %v1351 = vpop.f32.mrf.mxu0
        %v1352 = vadd.f32 %v1127, %v1351
        %v1353 = vpop.f32.mrf.mxu0
        %1354 = vmatprep.mubr.f32.mxu0 %v563
        %1355 = vmatmul.mubr.f32.gmra.mxu0 %v531
        %v1356 = vpop.f32.mrf.mxu0
        %v1357 = vadd.f32 %v1132, %v1356
        %v1358 = vpop.f32.mrf.mxu0
        %1359 = vmatprep.mubr.f32.mxu0 %v564
        %1360 = vmatmul.mubr.f32.gmra.mxu0 %v532
        %v1361 = vpop.f32.mrf.mxu0
        %v1362 = vadd.f32 %v1137, %v1361
        %v1363 = vpop.f32.mrf.mxu0
        %1364 = vmatprep.mubr.f32.mxu0 %v565
        %1365 = vmatmul.mubr.f32.gmra.mxu0 %v533
        %v1366 = vpop.f32.mrf.mxu0
        %v1367 = vadd.f32 %v1142, %v1366
        %v1368 = vpop.f32.mrf.mxu0
        %1369 = vmatprep.mubr.f32.mxu0 %v566
        %1370 = vmatmul.mubr.f32.gmra.mxu0 %v534
        %v1371 = vpop.f32.mrf.mxu0
        %v1372 = vadd.f32 %v1147, %v1371
        %v1373 = vpop.f32.mrf.mxu0
        %1374 = vmatprep.mubr.f32.mxu0 %v567
        %1375 = vmatmul.mubr.f32.gmra.mxu0 %v535
        %v1376 = vpop.f32.mrf.mxu0
        %v1377 = vadd.f32 %v1152, %v1376
        %v1378 = vpop.f32.mrf.mxu0
        %1379 = vmatprep.mubr.f32.mxu0 %v568
        %1380 = vmatmul.mubr.f32.gmra.mxu0 %v536
        %v1381 = vpop.f32.mrf.mxu0
        %v1382 = vadd.f32 %v1157, %v1381
        %v1383 = vpop.f32.mrf.mxu0
        %1384 = vmatprep.mubr.f32.mxu0 %v569
        %1385 = vmatmul.mubr.f32.gmra.mxu0 %v537
        %v1386 = vpop.f32.mrf.mxu0
        %v1387 = vadd.f32 %v1162, %v1386
        %v1388 = vpop.f32.mrf.mxu0
        %1389 = vmatprep.mubr.f32.mxu0 %v570
        %1390 = vmatmul.mubr.f32.gmra.mxu0 %v538
        %v1391 = vpop.f32.mrf.mxu0
        %v1392 = vadd.f32 %v1167, %v1391
        %v1393 = vpop.f32.mrf.mxu0
        %1394 = vmatprep.mubr.f32.mxu0 %v571
        %1395 = vmatmul.mubr.f32.gmra.mxu0 %v539
        %v1396 = vpop.f32.mrf.mxu0
        %v1397 = vadd.f32 %v1172, %v1396
        %v1398 = vpop.f32.mrf.mxu0
        %1399 = vmatprep.mubr.f32.mxu0 %v572
        %1400 = vmatmul.mubr.f32.gmra.mxu0 %v540
        %v1401 = vpop.f32.mrf.mxu0
        %v1402 = vadd.f32 %v1177, %v1401
        %v1403 = vpop.f32.mrf.mxu0
        %1404 = vmatprep.mubr.f32.mxu0 %v573
        %1405 = vmatmul.mubr.f32.gmra.mxu0 %v541
        %v1406 = vpop.f32.mrf.mxu0
        %v1407 = vadd.f32 %v1182, %v1406
        %v1408 = vpop.f32.mrf.mxu0
        %1409 = vmatprep.mubr.f32.mxu0 %v574
        %1410 = vmatmul.mubr.f32.gmra.mxu0 %v542
        %v1411 = vpop.f32.mrf.mxu0
        %v1412 = vadd.f32 %v1187, %v1411
        %v1413 = vpop.f32.mrf.mxu0
        %1414 = vmatprep.mubr.f32.mxu0 %v575
        %1415 = vmatmul.mubr.f32.gmra.mxu0 %v543
        %v1416 = vpop.f32.mrf.mxu0
        %v1417 = vadd.f32 %v1192, %v1416
        %v1418 = vpop.f32.mrf.mxu0
        %1419 = vmatprep.mubr.f32.mxu0 %v576
        %1420 = vmatmul.mubr.f32.gmra.mxu0 %v544
        %v1421 = vpop.f32.mrf.mxu0
        %v1422 = vadd.f32 %v1197, %v1421
        %v1423 = vpop.f32.mrf.mxu0
        %1424 = vmatprep.mubr.f32.mxu0 %v577
        %1425 = vmatmul.mubr.f32.gmra.mxu0 %v545
        %v1426 = vpop.f32.mrf.mxu0
        %v1427 = vadd.f32 %v1202, %v1426
        %v1428 = vpop.f32.mrf.mxu0
        %1429 = vmatprep.mubr.f32.mxu0 %v578
        %1430 = vmatmul.mubr.f32.gmra.mxu0 %v546
        %v1431 = vpop.f32.mrf.mxu0
        %v1432 = vadd.f32 %v1207, %v1431
        %v1433 = vpop.f32.mrf.mxu0
        %1434 = vmatprep.mubr.f32.mxu0 %v579
        %1435 = vmatmul.mubr.f32.gmra.mxu0 %v547
        %v1436 = vpop.f32.mrf.mxu0
        %v1437 = vadd.f32 %v1212, %v1436
        %v1438 = vpop.f32.mrf.mxu0
        %1439 = vmatprep.mubr.f32.mxu0 %v580
        %1440 = vmatmul.mubr.f32.gmra.mxu0 %v548
        %v1441 = vpop.f32.mrf.mxu0
        %v1442 = vadd.f32 %v1217, %v1441
        %v1443 = vpop.f32.mrf.mxu0
        %1444 = vmatprep.mubr.f32.mxu0 %v581
        %1445 = vmatmul.mubr.f32.gmra.mxu0 %v549
        %v1446 = vpop.f32.mrf.mxu0
        %v1447 = vadd.f32 %v1222, %v1446
        %v1448 = vpop.f32.mrf.mxu0
        %1449 = vmatprep.mubr.f32.mxu0 %v582
        %1450 = vmatmul.mubr.f32.gmra.mxu0 %v550
        %v1451 = vpop.f32.mrf.mxu0
        %v1452 = vadd.f32 %v1227, %v1451
        %v1453 = vpop.f32.mrf.mxu0
        %1454 = vmatprep.mubr.f32.mxu0 %v583
        %1455 = vmatmul.mubr.f32.gmra.mxu0 %v551
        %v1456 = vpop.f32.mrf.mxu0
        %v1457 = vadd.f32 %v1232, %v1456
        %v1458 = vpop.f32.mrf.mxu0
        %1459 = vmatprep.mubr.f32.mxu0 %v584
        %1460 = vmatmul.mubr.f32.gmra.mxu0 %v552
        %v1461 = vpop.f32.mrf.mxu0
        %v1462 = vadd.f32 %v1237, %v1461
        %v1463 = vpop.f32.mrf.mxu0
        %1464 = vmatprep.mubr.f32.mxu0 %v585
        %1465 = vmatmul.mubr.f32.gmra.mxu0 %v553
        %v1466 = vpop.f32.mrf.mxu0
        %v1467 = vadd.f32 %v1242, %v1466
        %v1468 = vpop.f32.mrf.mxu0
        %1469 = vmatprep.mubr.f32.mxu0 %v586
        %1470 = vmatmul.mubr.f32.gmra.mxu0 %v554
        %v1471 = vpop.f32.mrf.mxu0
        %v1472 = vadd.f32 %v1247, %v1471
        %v1473 = vpop.f32.mrf.mxu0
        %1474 = vmatprep.mubr.f32.mxu0 %v587
        %1475 = vmatmul.mubr.f32.gmra.mxu0 %v555
        %v1476 = vpop.f32.mrf.mxu0
        %v1477 = vadd.f32 %v1252, %v1476
        %v1478 = vpop.f32.mrf.mxu0
        %1479 = vmatprep.mubr.f32.mxu0 %v588
        %1480 = vmatmul.mubr.f32.gmra.mxu0 %v556
        %v1481 = vpop.f32.mrf.mxu0
        %v1482 = vadd.f32 %v1257, %v1481
        %v1483 = vpop.f32.mrf.mxu0
        %1484 = vmatprep.mubr.f32.mxu0 %v589
        %1485 = vmatmul.mubr.f32.gmra.mxu0 %v557
        %v1486 = vpop.f32.mrf.mxu0
        %v1487 = vadd.f32 %v1262, %v1486
        %v1488 = vpop.f32.mrf.mxu0
        %1489 = vmatprep.mubr.f32.mxu0 %v590
        %1490 = vmatmul.mubr.f32.gmra.mxu0 %v558
        %v1491 = vpop.f32.mrf.mxu0
        %v1492 = vadd.f32 %v1267, %v1491
        %v1493 = vpop.f32.mrf.mxu0
        %1494 = vmatprep.mubr.f32.mxu0 %v591
        %1495 = vmatmul.mubr.f32.gmra.mxu0 %v559
        %v1496 = vpop.f32.mrf.mxu0
        %v1497 = vadd.f32 %v1272, %v1496
        %v1498 = vpop.f32.mrf.mxu0
        %1499 = vmatprep.mubr.f32.mxu0 %v592
        %1500 = vmatmul.mubr.f32.gmra.mxu0 %v560
        %v1501 = vpop.f32.mrf.mxu0
        %v1502 = vadd.f32 %v1277, %v1501
        %v1503 = vpop.f32.mrf.mxu0
        %1504 = vmatprep.mubr.f32.mxu0 %v593
        %1505 = vmatmul.mubr.f32.gmra.mxu0 %v561
        %v1506 = vpop.f32.mrf.mxu0
        %v1507 = vadd.f32 %v1282, %v1506
        %v1508 = vpop.f32.mrf.mxu0
        %1509 = vdwg.mxu0
        %1510 = vmatprep.subr.mxu0 0.0
        %1511 = vmatpush1.msra.mxu0 %v802
        %1512 = vmatprep.subr.mxu0 0.0
        %1513 = vmatpush1.msra.mxu0 %v801
        %1514 = vmatprep.subr.mxu0 0.0
        %1515 = vmatpush1.msra.mxu0 %v800
        %1516 = vmatprep.subr.mxu0 0.0
        %1517 = vmatpush1.msra.mxu0 %v799
        %1518 = vmatprep.subr.mxu0 0.0
        %1519 = vmatpush1.msra.mxu0 %v798
        %1520 = vmatprep.subr.mxu0 0.0
        %1521 = vmatpush1.msra.mxu0 %v797
        %1522 = vmatprep.subr.mxu0 0.0
        %1523 = vmatpush1.msra.mxu0 %v796
        %1524 = vmatprep.subr.mxu0 0.0
        %1525 = vmatpush1.msra.mxu0 %v795
        %1526 = vmatprep.subr.mxu0 0.0
        %1527 = vmatpush1.msra.mxu0 %v794
        %1528 = vmatprep.subr.mxu0 0.0
        %1529 = vmatpush1.msra.mxu0 %v793
        %1530 = vmatprep.subr.mxu0 0.0
        %1531 = vmatpush1.msra.mxu0 %v792
        %1532 = vmatprep.subr.mxu0 0.0
        %1533 = vmatpush1.msra.mxu0 %v791
        %1534 = vmatprep.subr.mxu0 0.0
        %1535 = vmatpush1.msra.mxu0 %v790
        %1536 = vmatprep.subr.mxu0 0.0
        %1537 = vmatpush1.msra.mxu0 %v789
        %1538 = vmatprep.subr.mxu0 0.0
        %1539 = vmatpush1.msra.mxu0 %v788
        %1540 = vmatprep.subr.mxu0 0.0
        %1541 = vmatpush1.msra.mxu0 %v787
        %1542 = vmatprep.subr.mxu0 0.0
        %1543 = vmatpush2.msra.mxu0 %v818
        %1544 = vmatprep.subr.mxu0 0.0
        %1545 = vmatpush2.msra.mxu0 %v817
        %1546 = vmatprep.subr.mxu0 0.0
        %1547 = vmatpush2.msra.mxu0 %v816
        %1548 = vmatprep.subr.mxu0 0.0
        %1549 = vmatpush2.msra.mxu0 %v815
        %1550 = vmatprep.subr.mxu0 0.0
        %1551 = vmatpush2.msra.mxu0 %v814
        %1552 = vmatprep.subr.mxu0 0.0
        %1553 = vmatpush2.msra.mxu0 %v813
        %1554 = vmatprep.subr.mxu0 0.0
        %1555 = vmatpush2.msra.mxu0 %v812
        %1556 = vmatprep.subr.mxu0 0.0
        %1557 = vmatpush2.msra.mxu0 %v811
        %1558 = vmatprep.subr.mxu0 0.0
        %1559 = vmatpush2.msra.mxu0 %v810
        %1560 = vmatprep.subr.mxu0 0.0
        %1561 = vmatpush2.msra.mxu0 %v809
        %1562 = vmatprep.subr.mxu0 0.0
        %1563 = vmatpush2.msra.mxu0 %v808
        %1564 = vmatprep.subr.mxu0 0.0
        %1565 = vmatpush2.msra.mxu0 %v807
        %1566 = vmatprep.subr.mxu0 0.0
        %1567 = vmatpush2.msra.mxu0 %v806
        %1568 = vmatprep.subr.mxu0 0.0
        %1569 = vmatpush2.msra.mxu0 %v805
        %1570 = vmatprep.subr.mxu0 0.0
        %1571 = vmatpush2.msra.mxu0 %v804
        %1572 = vmatprep.subr.mxu0 0.0
        %1573 = vmatpush2.msra.mxu0 %v803
        %1574 = vmatprep.mubr.f32.mxu0 %v627
        %1575 = vmatmul.mubr.f32.gmra.mxu0 %v595
        %v1576 = vpop.f32.mrf.mxu0
        %v1577 = vadd.f32 %v1352, %v1576
        %v1578 = vpop.f32.mrf.mxu0
        %1579 = vmatprep.mubr.f32.mxu0 %v628
        %1580 = vmatmul.mubr.f32.gmra.mxu0 %v596
        %v1581 = vpop.f32.mrf.mxu0
        %v1582 = vadd.f32 %v1357, %v1581
        %v1583 = vpop.f32.mrf.mxu0
        %1584 = vmatprep.mubr.f32.mxu0 %v629
        %1585 = vmatmul.mubr.f32.gmra.mxu0 %v597
        %v1586 = vpop.f32.mrf.mxu0
        %v1587 = vadd.f32 %v1362, %v1586
        %v1588 = vpop.f32.mrf.mxu0
        %1589 = vmatprep.mubr.f32.mxu0 %v630
        %1590 = vmatmul.mubr.f32.gmra.mxu0 %v598
        %v1591 = vpop.f32.mrf.mxu0
        %v1592 = vadd.f32 %v1367, %v1591
        %v1593 = vpop.f32.mrf.mxu0
        %1594 = vmatprep.mubr.f32.mxu0 %v631
        %1595 = vmatmul.mubr.f32.gmra.mxu0 %v599
        %v1596 = vpop.f32.mrf.mxu0
        %v1597 = vadd.f32 %v1372, %v1596
        %v1598 = vpop.f32.mrf.mxu0
        %1599 = vmatprep.mubr.f32.mxu0 %v632
        %1600 = vmatmul.mubr.f32.gmra.mxu0 %v600
        %v1601 = vpop.f32.mrf.mxu0
        %v1602 = vadd.f32 %v1377, %v1601
        %v1603 = vpop.f32.mrf.mxu0
        %1604 = vmatprep.mubr.f32.mxu0 %v633
        %1605 = vmatmul.mubr.f32.gmra.mxu0 %v601
        %v1606 = vpop.f32.mrf.mxu0
        %v1607 = vadd.f32 %v1382, %v1606
        %v1608 = vpop.f32.mrf.mxu0
        %1609 = vmatprep.mubr.f32.mxu0 %v634
        %1610 = vmatmul.mubr.f32.gmra.mxu0 %v602
        %v1611 = vpop.f32.mrf.mxu0
        %v1612 = vadd.f32 %v1387, %v1611
        %v1613 = vpop.f32.mrf.mxu0
        %1614 = vmatprep.mubr.f32.mxu0 %v635
        %1615 = vmatmul.mubr.f32.gmra.mxu0 %v603
        %v1616 = vpop.f32.mrf.mxu0
        %v1617 = vadd.f32 %v1392, %v1616
        %v1618 = vpop.f32.mrf.mxu0
        %1619 = vmatprep.mubr.f32.mxu0 %v636
        %1620 = vmatmul.mubr.f32.gmra.mxu0 %v604
        %v1621 = vpop.f32.mrf.mxu0
        %v1622 = vadd.f32 %v1397, %v1621
        %v1623 = vpop.f32.mrf.mxu0
        %1624 = vmatprep.mubr.f32.mxu0 %v637
        %1625 = vmatmul.mubr.f32.gmra.mxu0 %v605
        %v1626 = vpop.f32.mrf.mxu0
        %v1627 = vadd.f32 %v1402, %v1626
        %v1628 = vpop.f32.mrf.mxu0
        %1629 = vmatprep.mubr.f32.mxu0 %v638
        %1630 = vmatmul.mubr.f32.gmra.mxu0 %v606
        %v1631 = vpop.f32.mrf.mxu0
        %v1632 = vadd.f32 %v1407, %v1631
        %v1633 = vpop.f32.mrf.mxu0
        %1634 = vmatprep.mubr.f32.mxu0 %v639
        %1635 = vmatmul.mubr.f32.gmra.mxu0 %v607
        %v1636 = vpop.f32.mrf.mxu0
        %v1637 = vadd.f32 %v1412, %v1636
        %v1638 = vpop.f32.mrf.mxu0
        %1639 = vmatprep.mubr.f32.mxu0 %v640
        %1640 = vmatmul.mubr.f32.gmra.mxu0 %v608
        %v1641 = vpop.f32.mrf.mxu0
        %v1642 = vadd.f32 %v1417, %v1641
        %v1643 = vpop.f32.mrf.mxu0
        %1644 = vmatprep.mubr.f32.mxu0 %v641
        %1645 = vmatmul.mubr.f32.gmra.mxu0 %v609
        %v1646 = vpop.f32.mrf.mxu0
        %v1647 = vadd.f32 %v1422, %v1646
        %v1648 = vpop.f32.mrf.mxu0
        %1649 = vmatprep.mubr.f32.mxu0 %v642
        %1650 = vmatmul.mubr.f32.gmra.mxu0 %v610
        %v1651 = vpop.f32.mrf.mxu0
        %v1652 = vadd.f32 %v1427, %v1651
        %v1653 = vpop.f32.mrf.mxu0
        %1654 = vmatprep.mubr.f32.mxu0 %v643
        %1655 = vmatmul.mubr.f32.gmra.mxu0 %v611
        %v1656 = vpop.f32.mrf.mxu0
        %v1657 = vadd.f32 %v1432, %v1656
        %v1658 = vpop.f32.mrf.mxu0
        %1659 = vmatprep.mubr.f32.mxu0 %v644
        %1660 = vmatmul.mubr.f32.gmra.mxu0 %v612
        %v1661 = vpop.f32.mrf.mxu0
        %v1662 = vadd.f32 %v1437, %v1661
        %v1663 = vpop.f32.mrf.mxu0
        %1664 = vmatprep.mubr.f32.mxu0 %v645
        %1665 = vmatmul.mubr.f32.gmra.mxu0 %v613
        %v1666 = vpop.f32.mrf.mxu0
        %v1667 = vadd.f32 %v1442, %v1666
        %v1668 = vpop.f32.mrf.mxu0
        %1669 = vmatprep.mubr.f32.mxu0 %v646
        %1670 = vmatmul.mubr.f32.gmra.mxu0 %v614
        %v1671 = vpop.f32.mrf.mxu0
        %v1672 = vadd.f32 %v1447, %v1671
        %v1673 = vpop.f32.mrf.mxu0
        %1674 = vmatprep.mubr.f32.mxu0 %v647
        %1675 = vmatmul.mubr.f32.gmra.mxu0 %v615
        %v1676 = vpop.f32.mrf.mxu0
        %v1677 = vadd.f32 %v1452, %v1676
        %v1678 = vpop.f32.mrf.mxu0
        %1679 = vmatprep.mubr.f32.mxu0 %v648
        %1680 = vmatmul.mubr.f32.gmra.mxu0 %v616
        %v1681 = vpop.f32.mrf.mxu0
        %v1682 = vadd.f32 %v1457, %v1681
        %v1683 = vpop.f32.mrf.mxu0
        %1684 = vmatprep.mubr.f32.mxu0 %v649
        %1685 = vmatmul.mubr.f32.gmra.mxu0 %v617
        %v1686 = vpop.f32.mrf.mxu0
        %v1687 = vadd.f32 %v1462, %v1686
        %v1688 = vpop.f32.mrf.mxu0
        %1689 = vmatprep.mubr.f32.mxu0 %v650
        %1690 = vmatmul.mubr.f32.gmra.mxu0 %v618
        %v1691 = vpop.f32.mrf.mxu0
        %v1692 = vadd.f32 %v1467, %v1691
        %v1693 = vpop.f32.mrf.mxu0
        %1694 = vmatprep.mubr.f32.mxu0 %v651
        %1695 = vmatmul.mubr.f32.gmra.mxu0 %v619
        %v1696 = vpop.f32.mrf.mxu0
        %v1697 = vadd.f32 %v1472, %v1696
        %v1698 = vpop.f32.mrf.mxu0
        %1699 = vmatprep.mubr.f32.mxu0 %v652
        %1700 = vmatmul.mubr.f32.gmra.mxu0 %v620
        %v1701 = vpop.f32.mrf.mxu0
        %v1702 = vadd.f32 %v1477, %v1701
        %v1703 = vpop.f32.mrf.mxu0
        %1704 = vmatprep.mubr.f32.mxu0 %v653
        %1705 = vmatmul.mubr.f32.gmra.mxu0 %v621
        %v1706 = vpop.f32.mrf.mxu0
        %v1707 = vadd.f32 %v1482, %v1706
        %v1708 = vpop.f32.mrf.mxu0
        %1709 = vmatprep.mubr.f32.mxu0 %v654
        %1710 = vmatmul.mubr.f32.gmra.mxu0 %v622
        %v1711 = vpop.f32.mrf.mxu0
        %v1712 = vadd.f32 %v1487, %v1711
        %v1713 = vpop.f32.mrf.mxu0
        %1714 = vmatprep.mubr.f32.mxu0 %v655
        %1715 = vmatmul.mubr.f32.gmra.mxu0 %v623
        %v1716 = vpop.f32.mrf.mxu0
        %v1717 = vadd.f32 %v1492, %v1716
        %v1718 = vpop.f32.mrf.mxu0
        %1719 = vmatprep.mubr.f32.mxu0 %v656
        %1720 = vmatmul.mubr.f32.gmra.mxu0 %v624
        %v1721 = vpop.f32.mrf.mxu0
        %v1722 = vadd.f32 %v1497, %v1721
        %v1723 = vpop.f32.mrf.mxu0
        %1724 = vmatprep.mubr.f32.mxu0 %v657
        %1725 = vmatmul.mubr.f32.gmra.mxu0 %v625
        %v1726 = vpop.f32.mrf.mxu0
        %v1727 = vadd.f32 %v1502, %v1726
        %v1728 = vpop.f32.mrf.mxu0
        %1729 = vmatprep.mubr.f32.mxu0 %v658
        %1730 = vmatmul.mubr.f32.gmra.mxu0 %v626
        %v1731 = vpop.f32.mrf.mxu0
        %v1732 = vadd.f32 %v1507, %v1731
        %v1733 = vpop.f32.mrf.mxu0
        %1734 = vdwg.mxu0
        %1735 = vmatprep.subr.mxu0 0.0
        %1736 = vmatpush1.msra.mxu0 %v834
        %1737 = vmatprep.subr.mxu0 0.0
        %1738 = vmatpush1.msra.mxu0 %v833
        %1739 = vmatprep.subr.mxu0 0.0
        %1740 = vmatpush1.msra.mxu0 %v832
        %1741 = vmatprep.subr.mxu0 0.0
        %1742 = vmatpush1.msra.mxu0 %v831
        %1743 = vmatprep.subr.mxu0 0.0
        %1744 = vmatpush1.msra.mxu0 %v830
        %1745 = vmatprep.subr.mxu0 0.0
        %1746 = vmatpush1.msra.mxu0 %v829
        %1747 = vmatprep.subr.mxu0 0.0
        %1748 = vmatpush1.msra.mxu0 %v828
        %1749 = vmatprep.subr.mxu0 0.0
        %1750 = vmatpush1.msra.mxu0 %v827
        %1751 = vmatprep.subr.mxu0 0.0
        %1752 = vmatpush1.msra.mxu0 %v826
        %1753 = vmatprep.subr.mxu0 0.0
        %1754 = vmatpush1.msra.mxu0 %v825
        %1755 = vmatprep.subr.mxu0 0.0
        %1756 = vmatpush1.msra.mxu0 %v824
        %1757 = vmatprep.subr.mxu0 0.0
        %1758 = vmatpush1.msra.mxu0 %v823
        %1759 = vmatprep.subr.mxu0 0.0
        %1760 = vmatpush1.msra.mxu0 %v822
        %1761 = vmatprep.subr.mxu0 0.0
        %1762 = vmatpush1.msra.mxu0 %v821
        %1763 = vmatprep.subr.mxu0 0.0
        %1764 = vmatpush1.msra.mxu0 %v820
        %1765 = vmatprep.subr.mxu0 0.0
        %1766 = vmatpush1.msra.mxu0 %v819
        %1767 = vmatprep.subr.mxu0 0.0
        %1768 = vmatpush2.msra.mxu0 0.0
        %1769 = vmatprep.subr.mxu0 0.0
        %1770 = vmatpush2.msra.mxu0 0.0
        %1771 = vmatprep.subr.mxu0 0.0
        %1772 = vmatpush2.msra.mxu0 0.0
        %1773 = vmatprep.subr.mxu0 0.0
        %1774 = vmatpush2.msra.mxu0 0.0
        %1775 = vmatprep.subr.mxu0 0.0
        %1776 = vmatpush2.msra.mxu0 0.0
        %1777 = vmatprep.subr.mxu0 0.0
        %1778 = vmatpush2.msra.mxu0 0.0
        %1779 = vmatprep.subr.mxu0 0.0
        %1780 = vmatpush2.msra.mxu0 0.0
        %1781 = vmatprep.subr.mxu0 0.0
        %1782 = vmatpush2.msra.mxu0 0.0
        %1783 = vmatprep.subr.mxu0 0.0
        %1784 = vmatpush2.msra.mxu0 0.0
        %1785 = vmatprep.subr.mxu0 0.0
        %1786 = vmatpush2.msra.mxu0 0.0
        %1787 = vmatprep.subr.mxu0 0.0
        %1788 = vmatpush2.msra.mxu0 0.0
        %1789 = vmatprep.subr.mxu0 0.0
        %1790 = vmatpush2.msra.mxu0 0.0
        %1791 = vmatprep.subr.mxu0 0.0
        %1792 = vmatpush2.msra.mxu0 0.0
        %1793 = vmatprep.subr.mxu0 0.0
        %1794 = vmatpush2.msra.mxu0 0.0
        %1795 = vmatprep.subr.mxu0 0.0
        %1796 = vmatpush2.msra.mxu0 0.0
        %1797 = vmatprep.subr.mxu0 0.0
        %1798 = vmatpush2.msra.mxu0 0.0
        %1799 = vmatprep.mubr.f32.mxu0 0.0
        %1800 = vmatmul.mubr.f32.gmra.mxu0 %v659
        %v1801 = vpop.f32.mrf.mxu0
        %v1802 = vadd.f32 %v1577, %v1801
        %v1803 = vpop.f32.mrf.mxu0
        %1804 = vmatprep.mubr.f32.mxu0 0.0
        %1805 = vmatmul.mubr.f32.gmra.mxu0 %v660
        %v1806 = vpop.f32.mrf.mxu0
        %v1807 = vadd.f32 %v1582, %v1806
        %v1808 = vpop.f32.mrf.mxu0
        %1809 = vmatprep.mubr.f32.mxu0 0.0
        %1810 = vmatmul.mubr.f32.gmra.mxu0 %v661
        %v1811 = vpop.f32.mrf.mxu0
        %v1812 = vadd.f32 %v1587, %v1811
        %v1813 = vpop.f32.mrf.mxu0
        %1814 = vmatprep.mubr.f32.mxu0 0.0
        %1815 = vmatmul.mubr.f32.gmra.mxu0 %v662
        %v1816 = vpop.f32.mrf.mxu0
        %v1817 = vadd.f32 %v1592, %v1816
        %v1818 = vpop.f32.mrf.mxu0
        %1819 = vmatprep.mubr.f32.mxu0 0.0
        %1820 = vmatmul.mubr.f32.gmra.mxu0 %v663
        %v1821 = vpop.f32.mrf.mxu0
        %v1822 = vadd.f32 %v1597, %v1821
        %v1823 = vpop.f32.mrf.mxu0
        %1824 = vmatprep.mubr.f32.mxu0 0.0
        %1825 = vmatmul.mubr.f32.gmra.mxu0 %v664
        %v1826 = vpop.f32.mrf.mxu0
        %v1827 = vadd.f32 %v1602, %v1826
        %v1828 = vpop.f32.mrf.mxu0
        %1829 = vmatprep.mubr.f32.mxu0 0.0
        %1830 = vmatmul.mubr.f32.gmra.mxu0 %v665
        %v1831 = vpop.f32.mrf.mxu0
        %v1832 = vadd.f32 %v1607, %v1831
        %v1833 = vpop.f32.mrf.mxu0
        %1834 = vmatprep.mubr.f32.mxu0 0.0
        %1835 = vmatmul.mubr.f32.gmra.mxu0 %v666
        %v1836 = vpop.f32.mrf.mxu0
        %v1837 = vadd.f32 %v1612, %v1836
        %v1838 = vpop.f32.mrf.mxu0
        %1839 = vmatprep.mubr.f32.mxu0 0.0
        %1840 = vmatmul.mubr.f32.gmra.mxu0 %v667
        %v1841 = vpop.f32.mrf.mxu0
        %v1842 = vadd.f32 %v1617, %v1841
        %v1843 = vpop.f32.mrf.mxu0
        %1844 = vmatprep.mubr.f32.mxu0 0.0
        %1845 = vmatmul.mubr.f32.gmra.mxu0 %v668
        %v1846 = vpop.f32.mrf.mxu0
        %v1847 = vadd.f32 %v1622, %v1846
        %v1848 = vpop.f32.mrf.mxu0
        %1849 = vmatprep.mubr.f32.mxu0 0.0
        %1850 = vmatmul.mubr.f32.gmra.mxu0 %v669
        %v1851 = vpop.f32.mrf.mxu0
        %v1852 = vadd.f32 %v1627, %v1851
        %v1853 = vpop.f32.mrf.mxu0
        %1854 = vmatprep.mubr.f32.mxu0 0.0
        %1855 = vmatmul.mubr.f32.gmra.mxu0 %v670
        %v1856 = vpop.f32.mrf.mxu0
        %v1857 = vadd.f32 %v1632, %v1856
        %v1858 = vpop.f32.mrf.mxu0
        %1859 = vmatprep.mubr.f32.mxu0 0.0
        %1860 = vmatmul.mubr.f32.gmra.mxu0 %v671
        %v1861 = vpop.f32.mrf.mxu0
        %v1862 = vadd.f32 %v1637, %v1861
        %v1863 = vpop.f32.mrf.mxu0
        %1864 = vmatprep.mubr.f32.mxu0 0.0
        %1865 = vmatmul.mubr.f32.gmra.mxu0 %v672
        %v1866 = vpop.f32.mrf.mxu0
        %v1867 = vadd.f32 %v1642, %v1866
        %v1868 = vpop.f32.mrf.mxu0
        %1869 = vmatprep.mubr.f32.mxu0 0.0
        %1870 = vmatmul.mubr.f32.gmra.mxu0 %v673
        %v1871 = vpop.f32.mrf.mxu0
        %v1872 = vadd.f32 %v1647, %v1871
        %v1873 = vpop.f32.mrf.mxu0
        %1874 = vmatprep.mubr.f32.mxu0 0.0
        %1875 = vmatmul.mubr.f32.gmra.mxu0 %v674
        %v1876 = vpop.f32.mrf.mxu0
        %v1877 = vadd.f32 %v1652, %v1876
        %v1878 = vpop.f32.mrf.mxu0
        %1879 = vmatprep.mubr.f32.mxu0 0.0
        %1880 = vmatmul.mubr.f32.gmra.mxu0 %v675
        %v1881 = vpop.f32.mrf.mxu0
        %v1882 = vadd.f32 %v1657, %v1881
        %v1883 = vpop.f32.mrf.mxu0
        %1884 = vmatprep.mubr.f32.mxu0 0.0
        %1885 = vmatmul.mubr.f32.gmra.mxu0 %v676
        %v1886 = vpop.f32.mrf.mxu0
        %v1887 = vadd.f32 %v1662, %v1886
        %v1888 = vpop.f32.mrf.mxu0
        %1889 = vmatprep.mubr.f32.mxu0 0.0
        %1890 = vmatmul.mubr.f32.gmra.mxu0 %v677
        %v1891 = vpop.f32.mrf.mxu0
        %v1892 = vadd.f32 %v1667, %v1891
        %v1893 = vpop.f32.mrf.mxu0
        %1894 = vmatprep.mubr.f32.mxu0 0.0
        %1895 = vmatmul.mubr.f32.gmra.mxu0 %v678
        %v1896 = vpop.f32.mrf.mxu0
        %v1897 = vadd.f32 %v1672, %v1896
        %v1898 = vpop.f32.mrf.mxu0
        %1899 = vmatprep.mubr.f32.mxu0 0.0
        %1900 = vmatmul.mubr.f32.gmra.mxu0 %v679
        %v1901 = vpop.f32.mrf.mxu0
        %v1902 = vadd.f32 %v1677, %v1901
        %v1903 = vpop.f32.mrf.mxu0
        %1904 = vmatprep.mubr.f32.mxu0 0.0
        %1905 = vmatmul.mubr.f32.gmra.mxu0 %v680
        %v1906 = vpop.f32.mrf.mxu0
        %v1907 = vadd.f32 %v1682, %v1906
        %v1908 = vpop.f32.mrf.mxu0
        %1909 = vmatprep.mubr.f32.mxu0 0.0
        %1910 = vmatmul.mubr.f32.gmra.mxu0 %v681
        %v1911 = vpop.f32.mrf.mxu0
        %v1912 = vadd.f32 %v1687, %v1911
        %v1913 = vpop.f32.mrf.mxu0
        %1914 = vmatprep.mubr.f32.mxu0 0.0
        %1915 = vmatmul.mubr.f32.gmra.mxu0 %v682
        %v1916 = vpop.f32.mrf.mxu0
        %v1917 = vadd.f32 %v1692, %v1916
        %v1918 = vpop.f32.mrf.mxu0
        %1919 = vmatprep.mubr.f32.mxu0 0.0
        %1920 = vmatmul.mubr.f32.gmra.mxu0 %v683
        %v1921 = vpop.f32.mrf.mxu0
        %v1922 = vadd.f32 %v1697, %v1921
        %v1923 = vpop.f32.mrf.mxu0
        %1924 = vmatprep.mubr.f32.mxu0 0.0
        %1925 = vmatmul.mubr.f32.gmra.mxu0 %v684
        %v1926 = vpop.f32.mrf.mxu0
        %v1927 = vadd.f32 %v1702, %v1926
        %v1928 = vpop.f32.mrf.mxu0
        %1929 = vmatprep.mubr.f32.mxu0 0.0
        %1930 = vmatmul.mubr.f32.gmra.mxu0 %v685
        %v1931 = vpop.f32.mrf.mxu0
        %v1932 = vadd.f32 %v1707, %v1931
        %v1933 = vpop.f32.mrf.mxu0
        %1934 = vmatprep.mubr.f32.mxu0 0.0
        %1935 = vmatmul.mubr.f32.gmra.mxu0 %v686
        %v1936 = vpop.f32.mrf.mxu0
        %v1937 = vadd.f32 %v1712, %v1936
        %v1938 = vpop.f32.mrf.mxu0
        %1939 = vmatprep.mubr.f32.mxu0 0.0
        %1940 = vmatmul.mubr.f32.gmra.mxu0 %v687
        %v1941 = vpop.f32.mrf.mxu0
        %v1942 = vadd.f32 %v1717, %v1941
        %v1943 = vpop.f32.mrf.mxu0
        %1944 = vmatprep.mubr.f32.mxu0 0.0
        %1945 = vmatmul.mubr.f32.gmra.mxu0 %v688
        %v1946 = vpop.f32.mrf.mxu0
        %v1947 = vadd.f32 %v1722, %v1946
        %v1948 = vpop.f32.mrf.mxu0
        %1949 = vmatprep.mubr.f32.mxu0 0.0
        %1950 = vmatmul.mubr.f32.gmra.mxu0 %v689
        %v1951 = vpop.f32.mrf.mxu0
        %v1952 = vadd.f32 %v1727, %v1951
        %v1953 = vpop.f32.mrf.mxu0
        %1954 = vmatprep.mubr.f32.mxu0 0.0
        %1955 = vmatmul.mubr.f32.gmra.mxu0 %v690
        %v1956 = vpop.f32.mrf.mxu0
        %v1957 = vadd.f32 %v1732, %v1956
        %v1958 = vpop.f32.mrf.mxu0
        %1959 = vdwg.mxu0
        %v1960 = vld [vmem:[#allocation8] sm:$0x1]
        %v1962 = vlaneseq
        %v1963 = vshrl.u32 %v1962, 7
        %v1964 = vsub.s32 0, %v1963
        %v1965 = vrot.slane %v1960, %v1964
        %v1967 = vmul.f32 %v1802, %v1965
        %v1968 = vmul.f32 %v1807, %v1965
        %v1969 = vmul.f32 %v1812, %v1965
        %v1970 = vmul.f32 %v1817, %v1965
        %v1971 = vmul.f32 %v1822, %v1965
        %v1972 = vmul.f32 %v1827, %v1965
        %v1973 = vmul.f32 %v1832, %v1965
        %v1974 = vmul.f32 %v1837, %v1965
        %v1975 = vmul.f32 %v1842, %v1965
        %v1976 = vmul.f32 %v1847, %v1965
        %v1977 = vmul.f32 %v1852, %v1965
        %v1978 = vmul.f32 %v1857, %v1965
        %v1979 = vmul.f32 %v1862, %v1965
        %v1980 = vmul.f32 %v1867, %v1965
        %v1981 = vmul.f32 %v1872, %v1965
        %v1982 = vmul.f32 %v1877, %v1965
        %v1983 = vmul.f32 %v1882, %v1965
        %v1984 = vmul.f32 %v1887, %v1965
        %v1985 = vmul.f32 %v1892, %v1965
        %v1986 = vmul.f32 %v1897, %v1965
        %v1987 = vmul.f32 %v1902, %v1965
        %v1988 = vmul.f32 %v1907, %v1965
        %v1989 = vmul.f32 %v1912, %v1965
        %v1990 = vmul.f32 %v1917, %v1965
        %v1991 = vmul.f32 %v1922, %v1965
        %v1992 = vmul.f32 %v1927, %v1965
        %v1993 = vmul.f32 %v1932, %v1965
        %v1994 = vmul.f32 %v1937, %v1965
        %v1995 = vmul.f32 %v1942, %v1965
        %v1996 = vmul.f32 %v1947, %v1965
        %v1997 = vmul.f32 %v1952, %v1965
        %v1998 = vmul.f32 %v1957, %v1965
        %v1999 = vld [vmem:[#allocation9] sm:$0x1]
        %v2001 = vlaneseq
        %v2002 = vshrl.u32 %v2001, 7
        %v2003 = vsub.s32 0, %v2002
        %v2004 = vrot.slane %v1999, %v2003
        %v2006 = vadd.f32 %v1967, %v2004
        %v2007 = vadd.f32 %v1968, %v2004
        %v2008 = vadd.f32 %v1969, %v2004
        %v2009 = vadd.f32 %v1970, %v2004
        %v2010 = vadd.f32 %v1971, %v2004
        %v2011 = vadd.f32 %v1972, %v2004
        %v2012 = vadd.f32 %v1973, %v2004
        %v2013 = vadd.f32 %v1974, %v2004
        %v2014 = vadd.f32 %v1975, %v2004
        %v2015 = vadd.f32 %v1976, %v2004
        %v2016 = vadd.f32 %v1977, %v2004
        %v2017 = vadd.f32 %v1978, %v2004
        %v2018 = vadd.f32 %v1979, %v2004
        %v2019 = vadd.f32 %v1980, %v2004
        %v2020 = vadd.f32 %v1981, %v2004
        %v2021 = vadd.f32 %v1982, %v2004
        %v2022 = vadd.f32 %v1983, %v2004
        %v2023 = vadd.f32 %v1984, %v2004
        %v2024 = vadd.f32 %v1985, %v2004
        %v2025 = vadd.f32 %v1986, %v2004
        %v2026 = vadd.f32 %v1987, %v2004
        %v2027 = vadd.f32 %v1988, %v2004
        %v2028 = vadd.f32 %v1989, %v2004
        %v2029 = vadd.f32 %v1990, %v2004
        %v2030 = vadd.f32 %v1991, %v2004
        %v2031 = vadd.f32 %v1992, %v2004
        %v2032 = vadd.f32 %v1993, %v2004
        %v2033 = vadd.f32 %v1994, %v2004
        %v2034 = vadd.f32 %v1995, %v2004
        %v2035 = vadd.f32 %v1996, %v2004
        %v2036 = vadd.f32 %v1997, %v2004
        %v2037 = vadd.f32 %v1998, %v2004
        %v2038 = vmax.f32 %v2006, 0.0
        %v2039 = vmax.f32 %v2007, 0.0
        %v2040 = vmax.f32 %v2008, 0.0
        %v2041 = vmax.f32 %v2009, 0.0
        %v2042 = vmax.f32 %v2010, 0.0
        %v2043 = vmax.f32 %v2011, 0.0
        %v2044 = vmax.f32 %v2012, 0.0
        %v2045 = vmax.f32 %v2013, 0.0
        %v2046 = vmax.f32 %v2014, 0.0
        %v2047 = vmax.f32 %v2015, 0.0
        %v2048 = vmax.f32 %v2016, 0.0
        %v2049 = vmax.f32 %v2017, 0.0
        %v2050 = vmax.f32 %v2018, 0.0
        %v2051 = vmax.f32 %v2019, 0.0
        %v2052 = vmax.f32 %v2020, 0.0
        %v2053 = vmax.f32 %v2021, 0.0
        %v2054 = vmax.f32 %v2022, 0.0
        %v2055 = vmax.f32 %v2023, 0.0
        %v2056 = vmax.f32 %v2024, 0.0
        %v2057 = vmax.f32 %v2025, 0.0
        %v2058 = vmax.f32 %v2026, 0.0
        %v2059 = vmax.f32 %v2027, 0.0
        %v2060 = vmax.f32 %v2028, 0.0
        %v2061 = vmax.f32 %v2029, 0.0
        %v2062 = vmax.f32 %v2030, 0.0
        %v2063 = vmax.f32 %v2031, 0.0
        %v2064 = vmax.f32 %v2032, 0.0
        %v2065 = vmax.f32 %v2033, 0.0
        %v2066 = vmax.f32 %v2034, 0.0
        %v2067 = vmax.f32 %v2035, 0.0
        %v2068 = vmax.f32 %v2036, 0.0
        %v2069 = vmax.f32 %v2037, 0.0
        %2070 = vst [vmem:[%s292 + $0x1] sm:$0xff] %v2038
        %2071 = vst [vmem:[%s292 + $0x9] sm:$0xff] %v2039
        %2072 = vst [vmem:[%s292 + $0x19] sm:$0xff] %v2040
        %2073 = vst [vmem:[%s292 + $0x21] sm:$0xff] %v2041
        %2074 = vst [vmem:[%s292 + $0x31] sm:$0xff] %v2042
        %2075 = vst [vmem:[%s292 + $0x39] sm:$0xff] %v2043
        %2076 = vst [vmem:[%s292 + $0x49] sm:$0xff] %v2044
        %2077 = vst [vmem:[%s292 + $0x51] sm:$0xff] %v2045
        %2078 = vst [vmem:[%s292 + $0x61] sm:$0xff] %v2046
        %2079 = vst [vmem:[%s292 + $0x69] sm:$0xff] %v2047
        %2080 = vst [vmem:[%s292 + $0x79] sm:$0xff] %v2048
        %2081 = vst [vmem:[%s292 + $0x81] sm:$0xff] %v2049
        %2082 = vst [vmem:[%s292 + $0x91] sm:$0xff] %v2050
        %2083 = vst [vmem:[%s292 + $0x99] sm:$0xff] %v2051
        %2084 = vst [vmem:[%s292 + $0xa9] sm:$0xff] %v2052
        %2085 = vst [vmem:[%s292 + $0xb1] sm:$0xff] %v2053
        %2086 = vst [vmem:[%s292 + $0xc1] sm:$0xff] %v2054
        %2087 = vst [vmem:[%s292 + $0xc9] sm:$0xff] %v2055
        %2088 = vst [vmem:[%s292 + $0xd9] sm:$0xff] %v2056
        %2089 = vst [vmem:[%s292 + $0xe1] sm:$0xff] %v2057
        %2090 = vst [vmem:[%s292 + $0xf1] sm:$0xff] %v2058
        %2091 = vst [vmem:[%s292 + $0xf9] sm:$0xff] %v2059
        %2092 = vst [vmem:[%s292 + $0x109] sm:$0xff] %v2060
        %2093 = vst [vmem:[%s292 + $0x111] sm:$0xff] %v2061
        %2094 = vst [vmem:[%s292 + $0x121] sm:$0xff] %v2062
        %2095 = vst [vmem:[%s292 + $0x129] sm:$0xff] %v2063
        %2096 = vst [vmem:[%s292 + $0x139] sm:$0xff] %v2064
        %2097 = vst [vmem:[%s292 + $0x141] sm:$0xff] %v2065
        %2098 = vst [vmem:[%s292 + $0x151] sm:$0xff] %v2066
        %2099 = vst [vmem:[%s292 + $0x159] sm:$0xff] %v2067
        %2100 = vst [vmem:[%s292 + $0x169] sm:$0xff] %v2068
        %2101 = vst [vmem:[%s292 + $0x171] sm:$0xff] %v2069
        %2102 = vst [vmem:[#allocation2 + $0x1] sm:$0xff] %v2040
        %2103 = vst [vmem:[#allocation2 + $0x9] sm:$0xff] %v2041
        %2104 = vst [vmem:[%s327 + $0x1] sm:$0xff] %v2066
        %2105 = vst [vmem:[%s327 + $0x9] sm:$0xff] %v2067
        %v2106 = vld [vmem:[#allocation2 + $0x2] sm:$0x1]
        %v2107 = vld [vmem:[#allocation2 + $0x1a] sm:$0x1]
        %v2108 = vld [vmem:[#allocation2 + $0x32] sm:$0x1]
        %v2109 = vld [vmem:[#allocation2 + $0x4a] sm:$0x1]
        %v2110 = vld [vmem:[#allocation2 + $0x62] sm:$0x1]
        %v2111 = vld [vmem:[#allocation2 + $0x7a] sm:$0x1]
        %v2112 = vld [vmem:[#allocation2 + $0x92] sm:$0x1]
        %v2113 = vld [vmem:[#allocation2 + $0xaa] sm:$0x1]
        %v2114 = vld [vmem:[#allocation2 + $0xc2] sm:$0x1]
        %v2115 = vld [vmem:[#allocation2 + $0xda] sm:$0x1]
        %v2116 = vld [vmem:[#allocation2 + $0xf2] sm:$0x1]
        %v2117 = vld [vmem:[#allocation2 + $0x10a] sm:$0x1]
        %v2118 = vld [vmem:[#allocation2 + $0x122] sm:$0x1]
        %v2119 = vld [vmem:[#allocation2 + $0x13a] sm:$0x1]
        %v2120 = vld [vmem:[#allocation2 + $0x152] sm:$0x1]
        %v2121 = vld [vmem:[#allocation2 + $0x16a] sm:$0x1]
        %v2122 = vld [vmem:[#allocation2 + $0x182] sm:$0x1]
        %v2123 = vld [vmem:[#allocation2 + $0x19a] sm:$0x1]
        %2124 = vst [vmem:[#allocation2] sm:$0x1] %v2106
        %2125 = vst [vmem:[#allocation2 + $0x18] sm:$0x1] %v2107
        %2126 = vst [vmem:[#allocation2 + $0x30] sm:$0x1] %v2108
        %2127 = vst [vmem:[#allocation2 + $0x48] sm:$0x1] %v2109
        %2128 = vst [vmem:[#allocation2 + $0x60] sm:$0x1] %v2110
        %2129 = vst [vmem:[#allocation2 + $0x78] sm:$0x1] %v2111
        %2130 = vst [vmem:[#allocation2 + $0x90] sm:$0x1] %v2112
        %2131 = vst [vmem:[#allocation2 + $0xa8] sm:$0x1] %v2113
        %2132 = vst [vmem:[#allocation2 + $0xc0] sm:$0x1] %v2114
        %2133 = vst [vmem:[#allocation2 + $0xd8] sm:$0x1] %v2115
        %2134 = vst [vmem:[#allocation2 + $0xf0] sm:$0x1] %v2116
        %2135 = vst [vmem:[#allocation2 + $0x108] sm:$0x1] %v2117
        %2136 = vst [vmem:[#allocation2 + $0x120] sm:$0x1] %v2118
        %2137 = vst [vmem:[#allocation2 + $0x138] sm:$0x1] %v2119
        %2138 = vst [vmem:[#allocation2 + $0x150] sm:$0x1] %v2120
        %2139 = vst [vmem:[#allocation2 + $0x168] sm:$0x1] %v2121
        %2140 = vst [vmem:[#allocation2 + $0x180] sm:$0x1] %v2122
        %2141 = vst [vmem:[#allocation2 + $0x198] sm:$0x1] %v2123
        %v2142 = vld [vmem:[#allocation2 + $0xf] sm:$0x1]
        %v2143 = vld [vmem:[#allocation2 + $0x27] sm:$0x1]
        %v2144 = vld [vmem:[#allocation2 + $0x3f] sm:$0x1]
        %v2145 = vld [vmem:[#allocation2 + $0x57] sm:$0x1]
        %v2146 = vld [vmem:[#allocation2 + $0x6f] sm:$0x1]
        %v2147 = vld [vmem:[#allocation2 + $0x87] sm:$0x1]
        %v2148 = vld [vmem:[#allocation2 + $0x9f] sm:$0x1]
        %v2149 = vld [vmem:[#allocation2 + $0xb7] sm:$0x1]
        %v2150 = vld [vmem:[#allocation2 + $0xcf] sm:$0x1]
        %v2151 = vld [vmem:[#allocation2 + $0xe7] sm:$0x1]
        %v2152 = vld [vmem:[#allocation2 + $0xff] sm:$0x1]
        %v2153 = vld [vmem:[#allocation2 + $0x117] sm:$0x1]
        %v2154 = vld [vmem:[#allocation2 + $0x12f] sm:$0x1]
        %v2155 = vld [vmem:[#allocation2 + $0x147] sm:$0x1]
        %v2156 = vld [vmem:[#allocation2 + $0x15f] sm:$0x1]
        %v2157 = vld [vmem:[#allocation2 + $0x177] sm:$0x1]
        %v2158 = vld [vmem:[#allocation2 + $0x18f] sm:$0x1]
        %v2159 = vld [vmem:[#allocation2 + $0x1a7] sm:$0x1]
        %2160 = vst [vmem:[#allocation2 + $0x11] sm:$0x1] %v2142
        %2161 = vst [vmem:[#allocation2 + $0x29] sm:$0x1] %v2143
        %2162 = vst [vmem:[#allocation2 + $0x41] sm:$0x1] %v2144
        %2163 = vst [vmem:[#allocation2 + $0x59] sm:$0x1] %v2145
        %2164 = vst [vmem:[#allocation2 + $0x71] sm:$0x1] %v2146
        %2165 = vst [vmem:[#allocation2 + $0x89] sm:$0x1] %v2147
        %2166 = vst [vmem:[#allocation2 + $0xa1] sm:$0x1] %v2148
        %2167 = vst [vmem:[#allocation2 + $0xb9] sm:$0x1] %v2149
        %2168 = vst [vmem:[#allocation2 + $0xd1] sm:$0x1] %v2150
        %2169 = vst [vmem:[#allocation2 + $0xe9] sm:$0x1] %v2151
        %2170 = vst [vmem:[#allocation2 + $0x101] sm:$0x1] %v2152
        %2171 = vst [vmem:[#allocation2 + $0x119] sm:$0x1] %v2153
        %2172 = vst [vmem:[#allocation2 + $0x131] sm:$0x1] %v2154
        %2173 = vst [vmem:[#allocation2 + $0x149] sm:$0x1] %v2155
        %2174 = vst [vmem:[#allocation2 + $0x161] sm:$0x1] %v2156
        %2175 = vst [vmem:[#allocation2 + $0x179] sm:$0x1] %v2157
        %2176 = vst [vmem:[#allocation2 + $0x191] sm:$0x1] %v2158
        %2177 = vst [vmem:[#allocation2 + $0x1a9] sm:$0x1] %v2159
        %v2178 = vld [vmem:[#allocation2] sm:$0xff]
        %v2179 = vld [vmem:[#allocation2 + $0x8] sm:$0xff]
        %v2180 = vld [vmem:[#allocation2 + $0x18] sm:$0xff]
        %v2181 = vld [vmem:[#allocation2 + $0x20] sm:$0xff]
        %v2182 = vld [vmem:[#allocation2 + $0x30] sm:$0xff]
        %v2183 = vld [vmem:[#allocation2 + $0x38] sm:$0xff]
        %v2184 = vld [vmem:[#allocation2 + $0x48] sm:$0xff]
        %v2185 = vld [vmem:[#allocation2 + $0x50] sm:$0xff]
        %v2186 = vld [vmem:[#allocation2 + $0x60] sm:$0xff]
        %v2187 = vld [vmem:[#allocation2 + $0x68] sm:$0xff]
        %v2188 = vld [vmem:[#allocation2 + $0x78] sm:$0xff]
        %v2189 = vld [vmem:[#allocation2 + $0x80] sm:$0xff]
        %v2190 = vld [vmem:[#allocation2 + $0x90] sm:$0xff]
        %v2191 = vld [vmem:[#allocation2 + $0x98] sm:$0xff]
        %v2192 = vld [vmem:[#allocation2 + $0xa8] sm:$0xff]
        %v2193 = vld [vmem:[#allocation2 + $0xb0] sm:$0xff]
        %v2194 = vld [vmem:[#allocation2 + $0xc0] sm:$0xff]
        %v2195 = vld [vmem:[#allocation2 + $0xc8] sm:$0xff]
        %v2196 = vld [vmem:[#allocation2 + $0xd8] sm:$0xff]
        %v2197 = vld [vmem:[#allocation2 + $0xe0] sm:$0xff]
        %v2198 = vld [vmem:[#allocation2 + $0xf0] sm:$0xff]
        %v2199 = vld [vmem:[#allocation2 + $0xf8] sm:$0xff]
        %v2200 = vld [vmem:[#allocation2 + $0x108] sm:$0xff]
        %v2201 = vld [vmem:[#allocation2 + $0x110] sm:$0xff]
        %v2202 = vld [vmem:[#allocation2 + $0x120] sm:$0xff]
        %v2203 = vld [vmem:[#allocation2 + $0x128] sm:$0xff]
        %v2204 = vld [vmem:[#allocation2 + $0x138] sm:$0xff]
        %v2205 = vld [vmem:[#allocation2 + $0x140] sm:$0xff]
        %v2206 = vld [vmem:[#allocation2 + $0x150] sm:$0xff]
        %v2207 = vld [vmem:[#allocation2 + $0x158] sm:$0xff]
        %v2208 = vld [vmem:[#allocation2 + $0x168] sm:$0xff]
        %v2209 = vld [vmem:[#allocation2 + $0x170] sm:$0xff]
        %v2210 = vld [vmem:[#allocation2 + $0x1] sm:$0xff]
        %v2211 = vld [vmem:[#allocation2 + $0x9] sm:$0xff]
        %v2212 = vld [vmem:[#allocation2 + $0x19] sm:$0xff]
        %v2213 = vld [vmem:[#allocation2 + $0x21] sm:$0xff]
        %v2214 = vld [vmem:[#allocation2 + $0x31] sm:$0xff]
        %v2215 = vld [vmem:[#allocation2 + $0x39] sm:$0xff]
        %v2216 = vld [vmem:[#allocation2 + $0x49] sm:$0xff]
        %v2217 = vld [vmem:[#allocation2 + $0x51] sm:$0xff]
        %v2218 = vld [vmem:[#allocation2 + $0x61] sm:$0xff]
        %v2219 = vld [vmem:[#allocation2 + $0x69] sm:$0xff]
        %v2220 = vld [vmem:[#allocation2 + $0x79] sm:$0xff]
        %v2221 = vld [vmem:[#allocation2 + $0x81] sm:$0xff]
        %v2222 = vld [vmem:[#allocation2 + $0x91] sm:$0xff]
        %v2223 = vld [vmem:[#allocation2 + $0x99] sm:$0xff]
        %v2224 = vld [vmem:[#allocation2 + $0xa9] sm:$0xff]
        %v2225 = vld [vmem:[#allocation2 + $0xb1] sm:$0xff]
        %v2226 = vld [vmem:[#allocation2 + $0xc1] sm:$0xff]
        %v2227 = vld [vmem:[#allocation2 + $0xc9] sm:$0xff]
        %v2228 = vld [vmem:[#allocation2 + $0xd9] sm:$0xff]
        %v2229 = vld [vmem:[#allocation2 + $0xe1] sm:$0xff]
        %v2230 = vld [vmem:[#allocation2 + $0xf1] sm:$0xff]
        %v2231 = vld [vmem:[#allocation2 + $0xf9] sm:$0xff]
        %v2232 = vld [vmem:[#allocation2 + $0x109] sm:$0xff]
        %v2233 = vld [vmem:[#allocation2 + $0x111] sm:$0xff]
        %v2234 = vld [vmem:[#allocation2 + $0x121] sm:$0xff]
        %v2235 = vld [vmem:[#allocation2 + $0x129] sm:$0xff]
        %v2236 = vld [vmem:[#allocation2 + $0x139] sm:$0xff]
        %v2237 = vld [vmem:[#allocation2 + $0x141] sm:$0xff]
        %v2238 = vld [vmem:[#allocation2 + $0x151] sm:$0xff]
        %v2239 = vld [vmem:[#allocation2 + $0x159] sm:$0xff]
        %v2240 = vld [vmem:[#allocation2 + $0x169] sm:$0xff]
        %v2241 = vld [vmem:[#allocation2 + $0x171] sm:$0xff]
        %v2242 = vld [vmem:[#allocation2 + $0x2] sm:$0xff]
        %v2243 = vld [vmem:[#allocation2 + $0xa] sm:$0xff]
        %v2244 = vld [vmem:[#allocation2 + $0x1a] sm:$0xff]
        %v2245 = vld [vmem:[#allocation2 + $0x22] sm:$0xff]
        %v2246 = vld [vmem:[#allocation2 + $0x32] sm:$0xff]
        %v2247 = vld [vmem:[#allocation2 + $0x3a] sm:$0xff]
        %v2248 = vld [vmem:[#allocation2 + $0x4a] sm:$0xff]
        %v2249 = vld [vmem:[#allocation2 + $0x52] sm:$0xff]
        %v2250 = vld [vmem:[#allocation2 + $0x62] sm:$0xff]
        %v2251 = vld [vmem:[#allocation2 + $0x6a] sm:$0xff]
        %v2252 = vld [vmem:[#allocation2 + $0x7a] sm:$0xff]
        %v2253 = vld [vmem:[#allocation2 + $0x82] sm:$0xff]
        %v2254 = vld [vmem:[#allocation2 + $0x92] sm:$0xff]
        %v2255 = vld [vmem:[#allocation2 + $0x9a] sm:$0xff]
        %v2256 = vld [vmem:[#allocation2 + $0xaa] sm:$0xff]
        %v2257 = vld [vmem:[#allocation2 + $0xb2] sm:$0xff]
        %v2258 = vld [vmem:[#allocation2 + $0xc2] sm:$0xff]
        %v2259 = vld [vmem:[#allocation2 + $0xca] sm:$0xff]
        %v2260 = vld [vmem:[#allocation2 + $0xda] sm:$0xff]
        %v2261 = vld [vmem:[#allocation2 + $0xe2] sm:$0xff]
        %v2262 = vld [vmem:[#allocation2 + $0xf2] sm:$0xff]
        %v2263 = vld [vmem:[#allocation2 + $0xfa] sm:$0xff]
        %v2264 = vld [vmem:[#allocation2 + $0x10a] sm:$0xff]
        %v2265 = vld [vmem:[#allocation2 + $0x112] sm:$0xff]
        %v2266 = vld [vmem:[#allocation2 + $0x122] sm:$0xff]
        %v2267 = vld [vmem:[#allocation2 + $0x12a] sm:$0xff]
        %v2268 = vld [vmem:[#allocation2 + $0x13a] sm:$0xff]
        %v2269 = vld [vmem:[#allocation2 + $0x142] sm:$0xff]
        %v2270 = vld [vmem:[#allocation2 + $0x152] sm:$0xff]
        %v2271 = vld [vmem:[#allocation2 + $0x15a] sm:$0xff]
        %v2272 = vld [vmem:[#allocation2 + $0x16a] sm:$0xff]
        %v2273 = vld [vmem:[#allocation2 + $0x172] sm:$0xff]
        %v2274 = vld [vmem:[%s292] sm:$0xff]
        %v2275 = vld [vmem:[%s292 + $0x8] sm:$0xff]
        %v2276 = vld [vmem:[%s292 + $0x18] sm:$0xff]
        %v2277 = vld [vmem:[%s292 + $0x20] sm:$0xff]
        %v2278 = vld [vmem:[%s292 + $0x30] sm:$0xff]
        %v2279 = vld [vmem:[%s292 + $0x38] sm:$0xff]
        %v2280 = vld [vmem:[%s292 + $0x48] sm:$0xff]
        %v2281 = vld [vmem:[%s292 + $0x50] sm:$0xff]
        %v2282 = vld [vmem:[%s292 + $0x60] sm:$0xff]
        %v2283 = vld [vmem:[%s292 + $0x68] sm:$0xff]
        %v2284 = vld [vmem:[%s292 + $0x78] sm:$0xff]
        %v2285 = vld [vmem:[%s292 + $0x80] sm:$0xff]
        %v2286 = vld [vmem:[%s292 + $0x90] sm:$0xff]
        %v2287 = vld [vmem:[%s292 + $0x98] sm:$0xff]
        %v2288 = vld [vmem:[%s292 + $0xa8] sm:$0xff]
        %v2289 = vld [vmem:[%s292 + $0xb0] sm:$0xff]
        %v2290 = vld [vmem:[%s292 + $0xc0] sm:$0xff]
        %v2291 = vld [vmem:[%s292 + $0xc8] sm:$0xff]
        %v2292 = vld [vmem:[%s292 + $0xd8] sm:$0xff]
        %v2293 = vld [vmem:[%s292 + $0xe0] sm:$0xff]
        %v2294 = vld [vmem:[%s292 + $0xf0] sm:$0xff]
        %v2295 = vld [vmem:[%s292 + $0xf8] sm:$0xff]
        %v2296 = vld [vmem:[%s292 + $0x108] sm:$0xff]
        %v2297 = vld [vmem:[%s292 + $0x110] sm:$0xff]
        %v2298 = vld [vmem:[%s292 + $0x120] sm:$0xff]
        %v2299 = vld [vmem:[%s292 + $0x128] sm:$0xff]
        %v2300 = vld [vmem:[%s292 + $0x138] sm:$0xff]
        %v2301 = vld [vmem:[%s292 + $0x140] sm:$0xff]
        %v2302 = vld [vmem:[%s292 + $0x150] sm:$0xff]
        %v2303 = vld [vmem:[%s292 + $0x158] sm:$0xff]
        %v2304 = vld [vmem:[%s292 + $0x168] sm:$0xff]
        %v2305 = vld [vmem:[%s292 + $0x170] sm:$0xff]
        %v2306 = vld [vmem:[%s292 + $0x1] sm:$0xff]
        %v2307 = vld [vmem:[%s292 + $0x9] sm:$0xff]
        %v2308 = vld [vmem:[%s292 + $0x19] sm:$0xff]
        %v2309 = vld [vmem:[%s292 + $0x21] sm:$0xff]
        %v2310 = vld [vmem:[%s292 + $0x31] sm:$0xff]
        %v2311 = vld [vmem:[%s292 + $0x39] sm:$0xff]
        %v2312 = vld [vmem:[%s292 + $0x49] sm:$0xff]
        %v2313 = vld [vmem:[%s292 + $0x51] sm:$0xff]
        %v2314 = vld [vmem:[%s292 + $0x61] sm:$0xff]
        %v2315 = vld [vmem:[%s292 + $0x69] sm:$0xff]
        %v2316 = vld [vmem:[%s292 + $0x79] sm:$0xff]
        %v2317 = vld [vmem:[%s292 + $0x81] sm:$0xff]
        %v2318 = vld [vmem:[%s292 + $0x91] sm:$0xff]
        %v2319 = vld [vmem:[%s292 + $0x99] sm:$0xff]
        %v2320 = vld [vmem:[%s292 + $0xa9] sm:$0xff]
        %v2321 = vld [vmem:[%s292 + $0xb1] sm:$0xff]
        %v2322 = vld [vmem:[%s292 + $0xc1] sm:$0xff]
        %v2323 = vld [vmem:[%s292 + $0xc9] sm:$0xff]
        %v2324 = vld [vmem:[%s292 + $0xd9] sm:$0xff]
        %v2325 = vld [vmem:[%s292 + $0xe1] sm:$0xff]
        %v2326 = vld [vmem:[%s292 + $0xf1] sm:$0xff]
        %v2327 = vld [vmem:[%s292 + $0xf9] sm:$0xff]
        %v2328 = vld [vmem:[%s292 + $0x109] sm:$0xff]
        %v2329 = vld [vmem:[%s292 + $0x111] sm:$0xff]
        %v2330 = vld [vmem:[%s292 + $0x121] sm:$0xff]
        %v2331 = vld [vmem:[%s292 + $0x129] sm:$0xff]
        %v2332 = vld [vmem:[%s292 + $0x139] sm:$0xff]
        %v2333 = vld [vmem:[%s292 + $0x141] sm:$0xff]
        %v2334 = vld [vmem:[%s292 + $0x151] sm:$0xff]
        %v2335 = vld [vmem:[%s292 + $0x159] sm:$0xff]
        %v2336 = vld [vmem:[%s292 + $0x169] sm:$0xff]
        %v2337 = vld [vmem:[%s292 + $0x171] sm:$0xff]
        %v2338 = vld [vmem:[%s292 + $0x2] sm:$0xff]
        %v2339 = vld [vmem:[%s292 + $0xa] sm:$0xff]
        %v2340 = vld [vmem:[%s292 + $0x1a] sm:$0xff]
        %v2341 = vld [vmem:[%s292 + $0x22] sm:$0xff]
        %v2342 = vld [vmem:[%s292 + $0x32] sm:$0xff]
        %v2343 = vld [vmem:[%s292 + $0x3a] sm:$0xff]
        %v2344 = vld [vmem:[%s292 + $0x4a] sm:$0xff]
        %v2345 = vld [vmem:[%s292 + $0x52] sm:$0xff]
        %v2346 = vld [vmem:[%s292 + $0x62] sm:$0xff]
        %v2347 = vld [vmem:[%s292 + $0x6a] sm:$0xff]
        %v2348 = vld [vmem:[%s292 + $0x7a] sm:$0xff]
        %v2349 = vld [vmem:[%s292 + $0x82] sm:$0xff]
        %v2350 = vld [vmem:[%s292 + $0x92] sm:$0xff]
        %v2351 = vld [vmem:[%s292 + $0x9a] sm:$0xff]
        %v2352 = vld [vmem:[%s292 + $0xaa] sm:$0xff]
        %v2353 = vld [vmem:[%s292 + $0xb2] sm:$0xff]
        %v2354 = vld [vmem:[%s292 + $0xc2] sm:$0xff]
        %v2355 = vld [vmem:[%s292 + $0xca] sm:$0xff]
        %v2356 = vld [vmem:[%s292 + $0xda] sm:$0xff]
        %v2357 = vld [vmem:[%s292 + $0xe2] sm:$0xff]
        %v2358 = vld [vmem:[%s292 + $0xf2] sm:$0xff]
        %v2359 = vld [vmem:[%s292 + $0xfa] sm:$0xff]
        %v2360 = vld [vmem:[%s292 + $0x10a] sm:$0xff]
        %v2361 = vld [vmem:[%s292 + $0x112] sm:$0xff]
        %v2362 = vld [vmem:[%s292 + $0x122] sm:$0xff]
        %v2363 = vld [vmem:[%s292 + $0x12a] sm:$0xff]
        %v2364 = vld [vmem:[%s292 + $0x13a] sm:$0xff]
        %v2365 = vld [vmem:[%s292 + $0x142] sm:$0xff]
        %v2366 = vld [vmem:[%s292 + $0x152] sm:$0xff]
        %v2367 = vld [vmem:[%s292 + $0x15a] sm:$0xff]
        %v2368 = vld [vmem:[%s292 + $0x16a] sm:$0xff]
        %v2369 = vld [vmem:[%s292 + $0x172] sm:$0xff]
        %v2370 = vld [vmem:[%s594] sm:$0xff]
        %v2371 = vld [vmem:[%s594 + $0x8] sm:$0xff]
        %v2372 = vld [vmem:[%s594 + $0x18] sm:$0xff]
        %v2373 = vld [vmem:[%s594 + $0x20] sm:$0xff]
        %v2374 = vld [vmem:[%s594 + $0x30] sm:$0xff]
        %v2375 = vld [vmem:[%s594 + $0x38] sm:$0xff]
        %v2376 = vld [vmem:[%s594 + $0x48] sm:$0xff]
        %v2377 = vld [vmem:[%s594 + $0x50] sm:$0xff]
        %v2378 = vld [vmem:[%s594 + $0x60] sm:$0xff]
        %v2379 = vld [vmem:[%s594 + $0x68] sm:$0xff]
        %v2380 = vld [vmem:[%s594 + $0x78] sm:$0xff]
        %v2381 = vld [vmem:[%s594 + $0x80] sm:$0xff]
        %v2382 = vld [vmem:[%s594 + $0x90] sm:$0xff]
        %v2383 = vld [vmem:[%s594 + $0x98] sm:$0xff]
        %v2384 = vld [vmem:[%s594 + $0xa8] sm:$0xff]
        %v2385 = vld [vmem:[%s594 + $0xb0] sm:$0xff]
        %v2386 = vld [vmem:[%s594 + $0xc0] sm:$0xff]
        %v2387 = vld [vmem:[%s594 + $0xc8] sm:$0xff]
        %v2388 = vld [vmem:[%s594 + $0xd8] sm:$0xff]
        %v2389 = vld [vmem:[%s594 + $0xe0] sm:$0xff]
        %v2390 = vld [vmem:[%s594 + $0xf0] sm:$0xff]
        %v2391 = vld [vmem:[%s594 + $0xf8] sm:$0xff]
        %v2392 = vld [vmem:[%s594 + $0x108] sm:$0xff]
        %v2393 = vld [vmem:[%s594 + $0x110] sm:$0xff]
        %v2394 = vld [vmem:[%s594 + $0x120] sm:$0xff]
        %v2395 = vld [vmem:[%s594 + $0x128] sm:$0xff]
        %v2396 = vld [vmem:[%s594 + $0x138] sm:$0xff]
        %v2397 = vld [vmem:[%s594 + $0x140] sm:$0xff]
        %v2398 = vld [vmem:[%s594 + $0x150] sm:$0xff]
        %v2399 = vld [vmem:[%s594 + $0x158] sm:$0xff]
        %v2400 = vld [vmem:[%s594 + $0x168] sm:$0xff]
        %v2401 = vld [vmem:[%s594 + $0x170] sm:$0xff]
        %v2402 = vld [vmem:[%s594 + $0x1] sm:$0xff]
        %v2403 = vld [vmem:[%s594 + $0x9] sm:$0xff]
        %v2404 = vld [vmem:[%s594 + $0x19] sm:$0xff]
        %v2405 = vld [vmem:[%s594 + $0x21] sm:$0xff]
        %v2406 = vld [vmem:[%s594 + $0x31] sm:$0xff]
        %v2407 = vld [vmem:[%s594 + $0x39] sm:$0xff]
        %v2408 = vld [vmem:[%s594 + $0x49] sm:$0xff]
        %v2409 = vld [vmem:[%s594 + $0x51] sm:$0xff]
        %v2410 = vld [vmem:[%s594 + $0x61] sm:$0xff]
        %v2411 = vld [vmem:[%s594 + $0x69] sm:$0xff]
        %v2412 = vld [vmem:[%s594 + $0x79] sm:$0xff]
        %v2413 = vld [vmem:[%s594 + $0x81] sm:$0xff]
        %v2414 = vld [vmem:[%s594 + $0x91] sm:$0xff]
        %v2415 = vld [vmem:[%s594 + $0x99] sm:$0xff]
        %v2416 = vld [vmem:[%s594 + $0xa9] sm:$0xff]
        %v2417 = vld [vmem:[%s594 + $0xb1] sm:$0xff]
        %v2418 = vld [vmem:[%s594 + $0xc1] sm:$0xff]
        %v2419 = vld [vmem:[%s594 + $0xc9] sm:$0xff]
        %v2420 = vld [vmem:[%s594 + $0xd9] sm:$0xff]
        %v2421 = vld [vmem:[%s594 + $0xe1] sm:$0xff]
        %v2422 = vld [vmem:[%s594 + $0xf1] sm:$0xff]
        %v2423 = vld [vmem:[%s594 + $0xf9] sm:$0xff]
        %v2424 = vld [vmem:[%s594 + $0x109] sm:$0xff]
        %v2425 = vld [vmem:[%s594 + $0x111] sm:$0xff]
        %v2426 = vld [vmem:[%s594 + $0x121] sm:$0xff]
        %v2427 = vld [vmem:[%s594 + $0x129] sm:$0xff]
        %v2428 = vld [vmem:[%s594 + $0x139] sm:$0xff]
        %v2429 = vld [vmem:[%s594 + $0x141] sm:$0xff]
        %v2430 = vld [vmem:[%s594 + $0x151] sm:$0xff]
        %v2431 = vld [vmem:[%s594 + $0x159] sm:$0xff]
        %v2432 = vld [vmem:[%s594 + $0x169] sm:$0xff]
        %v2433 = vld [vmem:[%s594 + $0x171] sm:$0xff]
        %v2434 = vld [vmem:[%s594 + $0x2] sm:$0xff]
        %v2435 = vld [vmem:[%s594 + $0xa] sm:$0xff]
        %v2436 = vld [vmem:[%s594 + $0x1a] sm:$0xff]
        %v2437 = vld [vmem:[%s594 + $0x22] sm:$0xff]
        %v2438 = vld [vmem:[%s594 + $0x32] sm:$0xff]
        %v2439 = vld [vmem:[%s594 + $0x3a] sm:$0xff]
        %v2440 = vld [vmem:[%s594 + $0x4a] sm:$0xff]
        %v2441 = vld [vmem:[%s594 + $0x52] sm:$0xff]
        %v2442 = vld [vmem:[%s594 + $0x62] sm:$0xff]
        %v2443 = vld [vmem:[%s594 + $0x6a] sm:$0xff]
        %v2444 = vld [vmem:[%s594 + $0x7a] sm:$0xff]
        %v2445 = vld [vmem:[%s594 + $0x82] sm:$0xff]
        %v2446 = vld [vmem:[%s594 + $0x92] sm:$0xff]
        %v2447 = vld [vmem:[%s594 + $0x9a] sm:$0xff]
        %v2448 = vld [vmem:[%s594 + $0xaa] sm:$0xff]
        %v2449 = vld [vmem:[%s594 + $0xb2] sm:$0xff]
        %v2450 = vld [vmem:[%s594 + $0xc2] sm:$0xff]
        %v2451 = vld [vmem:[%s594 + $0xca] sm:$0xff]
        %v2452 = vld [vmem:[%s594 + $0xda] sm:$0xff]
        %v2453 = vld [vmem:[%s594 + $0xe2] sm:$0xff]
        %v2454 = vld [vmem:[%s594 + $0xf2] sm:$0xff]
        %v2455 = vld [vmem:[%s594 + $0xfa] sm:$0xff]
        %v2456 = vld [vmem:[%s594 + $0x10a] sm:$0xff]
        %v2457 = vld [vmem:[%s594 + $0x112] sm:$0xff]
        %v2458 = vld [vmem:[%s594 + $0x122] sm:$0xff]
        %v2459 = vld [vmem:[%s594 + $0x12a] sm:$0xff]
        %v2460 = vld [vmem:[%s594 + $0x13a] sm:$0xff]
        %v2461 = vld [vmem:[%s594 + $0x142] sm:$0xff]
        %v2462 = vld [vmem:[%s594 + $0x152] sm:$0xff]
        %v2463 = vld [vmem:[%s594 + $0x15a] sm:$0xff]
        %v2464 = vld [vmem:[%s594 + $0x16a] sm:$0xff]
        %v2465 = vld [vmem:[%s594 + $0x172] sm:$0xff]
        %s2466 = scalar_lea.vmem [#allocation6], 1152
        %v2467 = vld [vmem:[%s2466] sm:$0xff]
        %v2468 = vld [vmem:[%s2466 + $0x8] sm:$0xff]
        %v2469 = vld [vmem:[%s2466 + $0x10] sm:$0xff]
        %v2470 = vld [vmem:[%s2466 + $0x18] sm:$0xff]
        %v2471 = vld [vmem:[%s2466 + $0x20] sm:$0xff]
        %v2472 = vld [vmem:[%s2466 + $0x28] sm:$0xff]
        %v2473 = vld [vmem:[%s2466 + $0x30] sm:$0xff]
        %v2474 = vld [vmem:[%s2466 + $0x38] sm:$0xff]
        %v2475 = vld [vmem:[%s2466 + $0x40] sm:$0xff]
        %v2476 = vld [vmem:[%s2466 + $0x48] sm:$0xff]
        %v2477 = vld [vmem:[%s2466 + $0x50] sm:$0xff]
        %v2478 = vld [vmem:[%s2466 + $0x58] sm:$0xff]
        %v2479 = vld [vmem:[%s2466 + $0x60] sm:$0xff]
        %v2480 = vld [vmem:[%s2466 + $0x68] sm:$0xff]
        %v2481 = vld [vmem:[%s2466 + $0x70] sm:$0xff]
        %v2482 = vld [vmem:[%s2466 + $0x78] sm:$0xff]
        %v2483 = vld [vmem:[%s2466 + $0x80] sm:$0xff]
        %v2484 = vld [vmem:[%s2466 + $0x88] sm:$0xff]
        %v2485 = vld [vmem:[%s2466 + $0x90] sm:$0xff]
        %v2486 = vld [vmem:[%s2466 + $0x98] sm:$0xff]
        %v2487 = vld [vmem:[%s2466 + $0xa0] sm:$0xff]
        %v2488 = vld [vmem:[%s2466 + $0xa8] sm:$0xff]
        %v2489 = vld [vmem:[%s2466 + $0xb0] sm:$0xff]
        %v2490 = vld [vmem:[%s2466 + $0xb8] sm:$0xff]
        %v2491 = vld [vmem:[%s2466 + $0xc0] sm:$0xff]
        %v2492 = vld [vmem:[%s2466 + $0xc8] sm:$0xff]
        %v2493 = vld [vmem:[%s2466 + $0xd0] sm:$0xff]
        %v2494 = vld [vmem:[%s2466 + $0xd8] sm:$0xff]
        %v2495 = vld [vmem:[%s2466 + $0xe0] sm:$0xff]
        %v2496 = vld [vmem:[%s2466 + $0xe8] sm:$0xff]
        %v2497 = vld [vmem:[%s2466 + $0xf0] sm:$0xff]
        %v2498 = vld [vmem:[%s2466 + $0xf8] sm:$0xff]
        %v2499 = vld [vmem:[%s2466 + $0x100] sm:$0xff]
        %v2500 = vld [vmem:[%s2466 + $0x108] sm:$0xff]
        %v2501 = vld [vmem:[%s2466 + $0x110] sm:$0xff]
        %v2502 = vld [vmem:[%s2466 + $0x118] sm:$0xff]
        %v2503 = vld [vmem:[%s2466 + $0x120] sm:$0xff]
        %v2504 = vld [vmem:[%s2466 + $0x128] sm:$0xff]
        %v2505 = vld [vmem:[%s2466 + $0x130] sm:$0xff]
        %v2506 = vld [vmem:[%s2466 + $0x138] sm:$0xff]
        %v2507 = vld [vmem:[%s2466 + $0x140] sm:$0xff]
        %v2508 = vld [vmem:[%s2466 + $0x148] sm:$0xff]
        %v2509 = vld [vmem:[%s2466 + $0x150] sm:$0xff]
        %v2510 = vld [vmem:[%s2466 + $0x158] sm:$0xff]
        %v2511 = vld [vmem:[%s2466 + $0x160] sm:$0xff]
        %v2512 = vld [vmem:[%s2466 + $0x168] sm:$0xff]
        %v2513 = vld [vmem:[%s2466 + $0x170] sm:$0xff]
        %v2514 = vld [vmem:[%s2466 + $0x178] sm:$0xff]
        %v2515 = vld [vmem:[%s2466 + $0x180] sm:$0xff]
        %v2516 = vld [vmem:[%s2466 + $0x188] sm:$0xff]
        %v2517 = vld [vmem:[%s2466 + $0x190] sm:$0xff]
        %v2518 = vld [vmem:[%s2466 + $0x198] sm:$0xff]
        %v2519 = vld [vmem:[%s2466 + $0x1a0] sm:$0xff]
        %v2520 = vld [vmem:[%s2466 + $0x1a8] sm:$0xff]
        %v2521 = vld [vmem:[%s2466 + $0x1b0] sm:$0xff]
        %v2522 = vld [vmem:[%s2466 + $0x1b8] sm:$0xff]
        %v2523 = vld [vmem:[%s2466 + $0x1c0] sm:$0xff]
        %v2524 = vld [vmem:[%s2466 + $0x1c8] sm:$0xff]
        %v2525 = vld [vmem:[%s2466 + $0x1d0] sm:$0xff]
        %v2526 = vld [vmem:[%s2466 + $0x1d8] sm:$0xff]
        %v2527 = vld [vmem:[%s2466 + $0x1e0] sm:$0xff]
        %v2528 = vld [vmem:[%s2466 + $0x1e8] sm:$0xff]
        %v2529 = vld [vmem:[%s2466 + $0x1f0] sm:$0xff]
        %v2530 = vld [vmem:[%s2466 + $0x1f8] sm:$0xff]
        %v2531 = vld [vmem:[%s2466 + $0x200] sm:$0xff]
        %v2532 = vld [vmem:[%s2466 + $0x208] sm:$0xff]
        %v2533 = vld [vmem:[%s2466 + $0x210] sm:$0xff]
        %v2534 = vld [vmem:[%s2466 + $0x218] sm:$0xff]
        %v2535 = vld [vmem:[%s2466 + $0x220] sm:$0xff]
        %v2536 = vld [vmem:[%s2466 + $0x228] sm:$0xff]
        %v2537 = vld [vmem:[%s2466 + $0x230] sm:$0xff]
        %v2538 = vld [vmem:[%s2466 + $0x238] sm:$0xff]
        %v2539 = vld [vmem:[%s2466 + $0x240] sm:$0xff]
        %v2540 = vld [vmem:[%s2466 + $0x248] sm:$0xff]
        %v2541 = vld [vmem:[%s2466 + $0x250] sm:$0xff]
        %v2542 = vld [vmem:[%s2466 + $0x258] sm:$0xff]
        %v2543 = vld [vmem:[%s2466 + $0x260] sm:$0xff]
        %v2544 = vld [vmem:[%s2466 + $0x268] sm:$0xff]
        %v2545 = vld [vmem:[%s2466 + $0x270] sm:$0xff]
        %v2546 = vld [vmem:[%s2466 + $0x278] sm:$0xff]
        %v2547 = vld [vmem:[%s2466 + $0x280] sm:$0xff]
        %v2548 = vld [vmem:[%s2466 + $0x288] sm:$0xff]
        %v2549 = vld [vmem:[%s2466 + $0x290] sm:$0xff]
        %v2550 = vld [vmem:[%s2466 + $0x298] sm:$0xff]
        %v2551 = vld [vmem:[%s2466 + $0x2a0] sm:$0xff]
        %v2552 = vld [vmem:[%s2466 + $0x2a8] sm:$0xff]
        %v2553 = vld [vmem:[%s2466 + $0x2b0] sm:$0xff]
        %v2554 = vld [vmem:[%s2466 + $0x2b8] sm:$0xff]
        %v2555 = vld [vmem:[%s2466 + $0x2c0] sm:$0xff]
        %v2556 = vld [vmem:[%s2466 + $0x2c8] sm:$0xff]
        %v2557 = vld [vmem:[%s2466 + $0x2d0] sm:$0xff]
        %v2558 = vld [vmem:[%s2466 + $0x2d8] sm:$0xff]
        %v2559 = vld [vmem:[%s2466 + $0x2e0] sm:$0xff]
        %v2560 = vld [vmem:[%s2466 + $0x2e8] sm:$0xff]
        %v2561 = vld [vmem:[%s2466 + $0x2f0] sm:$0xff]
        %v2562 = vld [vmem:[%s2466 + $0x2f8] sm:$0xff]
        %v2563 = vld [vmem:[%s2466 + $0x300] sm:$0xff]
        %v2564 = vld [vmem:[%s2466 + $0x308] sm:$0xff]
        %v2565 = vld [vmem:[%s2466 + $0x310] sm:$0xff]
        %v2566 = vld [vmem:[%s2466 + $0x318] sm:$0xff]
        %v2567 = vld [vmem:[%s2466 + $0x320] sm:$0xff]
        %v2568 = vld [vmem:[%s2466 + $0x328] sm:$0xff]
        %v2569 = vld [vmem:[%s2466 + $0x330] sm:$0xff]
        %v2570 = vld [vmem:[%s2466 + $0x338] sm:$0xff]
        %v2571 = vld [vmem:[%s2466 + $0x340] sm:$0xff]
        %v2572 = vld [vmem:[%s2466 + $0x348] sm:$0xff]
        %v2573 = vld [vmem:[%s2466 + $0x350] sm:$0xff]
        %v2574 = vld [vmem:[%s2466 + $0x358] sm:$0xff]
        %v2575 = vld [vmem:[%s2466 + $0x360] sm:$0xff]
        %v2576 = vld [vmem:[%s2466 + $0x368] sm:$0xff]
        %v2577 = vld [vmem:[%s2466 + $0x370] sm:$0xff]
        %v2578 = vld [vmem:[%s2466 + $0x378] sm:$0xff]
        %v2579 = vld [vmem:[%s2466 + $0x380] sm:$0xff]
        %v2580 = vld [vmem:[%s2466 + $0x388] sm:$0xff]
        %v2581 = vld [vmem:[%s2466 + $0x390] sm:$0xff]
        %v2582 = vld [vmem:[%s2466 + $0x398] sm:$0xff]
        %v2583 = vld [vmem:[%s2466 + $0x3a0] sm:$0xff]
        %v2584 = vld [vmem:[%s2466 + $0x3a8] sm:$0xff]
        %v2585 = vld [vmem:[%s2466 + $0x3b0] sm:$0xff]
        %v2586 = vld [vmem:[%s2466 + $0x3b8] sm:$0xff]
        %v2587 = vld [vmem:[%s2466 + $0x3c0] sm:$0xff]
        %v2588 = vld [vmem:[%s2466 + $0x3c8] sm:$0xff]
        %v2589 = vld [vmem:[%s2466 + $0x3d0] sm:$0xff]
        %v2590 = vld [vmem:[%s2466 + $0x3d8] sm:$0xff]
        %v2591 = vld [vmem:[%s2466 + $0x3e0] sm:$0xff]
        %v2592 = vld [vmem:[%s2466 + $0x3e8] sm:$0xff]
        %v2593 = vld [vmem:[%s2466 + $0x3f0] sm:$0xff]
        %v2594 = vld [vmem:[%s2466 + $0x3f8] sm:$0xff]
        %v2595 = vld [vmem:[%s2466 + $0x400] sm:$0xff]
        %v2596 = vld [vmem:[%s2466 + $0x408] sm:$0xff]
        %v2597 = vld [vmem:[%s2466 + $0x410] sm:$0xff]
        %v2598 = vld [vmem:[%s2466 + $0x418] sm:$0xff]
        %v2599 = vld [vmem:[%s2466 + $0x420] sm:$0xff]
        %v2600 = vld [vmem:[%s2466 + $0x428] sm:$0xff]
        %v2601 = vld [vmem:[%s2466 + $0x430] sm:$0xff]
        %v2602 = vld [vmem:[%s2466 + $0x438] sm:$0xff]
        %v2603 = vld [vmem:[%s2466 + $0x440] sm:$0xff]
        %v2604 = vld [vmem:[%s2466 + $0x448] sm:$0xff]
        %v2605 = vld [vmem:[%s2466 + $0x450] sm:$0xff]
        %v2606 = vld [vmem:[%s2466 + $0x458] sm:$0xff]
        %v2607 = vld [vmem:[%s2466 + $0x460] sm:$0xff]
        %v2608 = vld [vmem:[%s2466 + $0x468] sm:$0xff]
        %v2609 = vld [vmem:[%s2466 + $0x470] sm:$0xff]
        %v2610 = vld [vmem:[%s2466 + $0x478] sm:$0xff]
        %2611 = vmatprep.subr.mxu0 0.0
        %2612 = vmatpush1.msra.mxu0 %v2482
        %2613 = vmatprep.subr.mxu0 0.0
        %2614 = vmatpush1.msra.mxu0 %v2481
        %2615 = vmatprep.subr.mxu0 0.0
        %2616 = vmatpush1.msra.mxu0 %v2480
        %2617 = vmatprep.subr.mxu0 0.0
        %2618 = vmatpush1.msra.mxu0 %v2479
        %2619 = vmatprep.subr.mxu0 0.0
        %2620 = vmatpush1.msra.mxu0 %v2478
        %2621 = vmatprep.subr.mxu0 0.0
        %2622 = vmatpush1.msra.mxu0 %v2477
        %2623 = vmatprep.subr.mxu0 0.0
        %2624 = vmatpush1.msra.mxu0 %v2476
        %2625 = vmatprep.subr.mxu0 0.0
        %2626 = vmatpush1.msra.mxu0 %v2475
        %2627 = vmatprep.subr.mxu0 0.0
        %2628 = vmatpush1.msra.mxu0 %v2474
        %2629 = vmatprep.subr.mxu0 0.0
        %2630 = vmatpush1.msra.mxu0 %v2473
        %2631 = vmatprep.subr.mxu0 0.0
        %2632 = vmatpush1.msra.mxu0 %v2472
        %2633 = vmatprep.subr.mxu0 0.0
        %2634 = vmatpush1.msra.mxu0 %v2471
        %2635 = vmatprep.subr.mxu0 0.0
        %2636 = vmatpush1.msra.mxu0 %v2470
        %2637 = vmatprep.subr.mxu0 0.0
        %2638 = vmatpush1.msra.mxu0 %v2469
        %2639 = vmatprep.subr.mxu0 0.0
        %2640 = vmatpush1.msra.mxu0 %v2468
        %2641 = vmatprep.subr.mxu0 0.0
        %2642 = vmatpush1.msra.mxu0 %v2467
        %2643 = vmatprep.subr.mxu0 0.0
        %2644 = vmatpush2.msra.mxu0 %v2498
        %2645 = vmatprep.subr.mxu0 0.0
        %2646 = vmatpush2.msra.mxu0 %v2497
        %2647 = vmatprep.subr.mxu0 0.0
        %2648 = vmatpush2.msra.mxu0 %v2496
        %2649 = vmatprep.subr.mxu0 0.0
        %2650 = vmatpush2.msra.mxu0 %v2495
        %2651 = vmatprep.subr.mxu0 0.0
        %2652 = vmatpush2.msra.mxu0 %v2494
        %2653 = vmatprep.subr.mxu0 0.0
        %2654 = vmatpush2.msra.mxu0 %v2493
        %2655 = vmatprep.subr.mxu0 0.0
        %2656 = vmatpush2.msra.mxu0 %v2492
        %2657 = vmatprep.subr.mxu0 0.0
        %2658 = vmatpush2.msra.mxu0 %v2491
        %2659 = vmatprep.subr.mxu0 0.0
        %2660 = vmatpush2.msra.mxu0 %v2490
        %2661 = vmatprep.subr.mxu0 0.0
        %2662 = vmatpush2.msra.mxu0 %v2489
        %2663 = vmatprep.subr.mxu0 0.0
        %2664 = vmatpush2.msra.mxu0 %v2488
        %2665 = vmatprep.subr.mxu0 0.0
        %2666 = vmatpush2.msra.mxu0 %v2487
        %2667 = vmatprep.subr.mxu0 0.0
        %2668 = vmatpush2.msra.mxu0 %v2486
        %2669 = vmatprep.subr.mxu0 0.0
        %2670 = vmatpush2.msra.mxu0 %v2485
        %2671 = vmatprep.subr.mxu0 0.0
        %2672 = vmatpush2.msra.mxu0 %v2484
        %2673 = vmatprep.subr.mxu0 0.0
        %2674 = vmatpush2.msra.mxu0 %v2483
        %2675 = vmatprep.mubr.f32.mxu0 %v2210
        %2676 = vmatmul.mubr.f32.gmra.mxu0 %v2178
        %v2677 = vpop.f32.mrf.mxu0
        %v2678 = vadd.f32 0.0, %v2677
        %v2679 = vpop.f32.mrf.mxu0
        %2680 = vmatprep.mubr.f32.mxu0 %v2211
        %2681 = vmatmul.mubr.f32.gmra.mxu0 %v2179
        %v2682 = vpop.f32.mrf.mxu0
        %v2683 = vadd.f32 0.0, %v2682
        %v2684 = vpop.f32.mrf.mxu0
        %2685 = vmatprep.mubr.f32.mxu0 %v2212
        %2686 = vmatmul.mubr.f32.gmra.mxu0 %v2180
        %v2687 = vpop.f32.mrf.mxu0
        %v2688 = vadd.f32 0.0, %v2687
        %v2689 = vpop.f32.mrf.mxu0
        %2690 = vmatprep.mubr.f32.mxu0 %v2213
        %2691 = vmatmul.mubr.f32.gmra.mxu0 %v2181
        %v2692 = vpop.f32.mrf.mxu0
        %v2693 = vadd.f32 0.0, %v2692
        %v2694 = vpop.f32.mrf.mxu0
        %2695 = vmatprep.mubr.f32.mxu0 %v2214
        %2696 = vmatmul.mubr.f32.gmra.mxu0 %v2182
        %v2697 = vpop.f32.mrf.mxu0
        %v2698 = vadd.f32 0.0, %v2697
        %v2699 = vpop.f32.mrf.mxu0
        %2700 = vmatprep.mubr.f32.mxu0 %v2215
        %2701 = vmatmul.mubr.f32.gmra.mxu0 %v2183
        %v2702 = vpop.f32.mrf.mxu0
        %v2703 = vadd.f32 0.0, %v2702
        %v2704 = vpop.f32.mrf.mxu0
        %2705 = vmatprep.mubr.f32.mxu0 %v2216
        %2706 = vmatmul.mubr.f32.gmra.mxu0 %v2184
        %v2707 = vpop.f32.mrf.mxu0
        %v2708 = vadd.f32 0.0, %v2707
        %v2709 = vpop.f32.mrf.mxu0
        %2710 = vmatprep.mubr.f32.mxu0 %v2217
        %2711 = vmatmul.mubr.f32.gmra.mxu0 %v2185
        %v2712 = vpop.f32.mrf.mxu0
        %v2713 = vadd.f32 0.0, %v2712
        %v2714 = vpop.f32.mrf.mxu0
        %2715 = vmatprep.mubr.f32.mxu0 %v2218
        %2716 = vmatmul.mubr.f32.gmra.mxu0 %v2186
        %v2717 = vpop.f32.mrf.mxu0
        %v2718 = vadd.f32 0.0, %v2717
        %v2719 = vpop.f32.mrf.mxu0
        %2720 = vmatprep.mubr.f32.mxu0 %v2219
        %2721 = vmatmul.mubr.f32.gmra.mxu0 %v2187
        %v2722 = vpop.f32.mrf.mxu0
        %v2723 = vadd.f32 0.0, %v2722
        %v2724 = vpop.f32.mrf.mxu0
        %2725 = vmatprep.mubr.f32.mxu0 %v2220
        %2726 = vmatmul.mubr.f32.gmra.mxu0 %v2188
        %v2727 = vpop.f32.mrf.mxu0
        %v2728 = vadd.f32 0.0, %v2727
        %v2729 = vpop.f32.mrf.mxu0
        %2730 = vmatprep.mubr.f32.mxu0 %v2221
        %2731 = vmatmul.mubr.f32.gmra.mxu0 %v2189
        %v2732 = vpop.f32.mrf.mxu0
        %v2733 = vadd.f32 0.0, %v2732
        %v2734 = vpop.f32.mrf.mxu0
        %2735 = vmatprep.mubr.f32.mxu0 %v2222
        %2736 = vmatmul.mubr.f32.gmra.mxu0 %v2190
        %v2737 = vpop.f32.mrf.mxu0
        %v2738 = vadd.f32 0.0, %v2737
        %v2739 = vpop.f32.mrf.mxu0
        %2740 = vmatprep.mubr.f32.mxu0 %v2223
        %2741 = vmatmul.mubr.f32.gmra.mxu0 %v2191
        %v2742 = vpop.f32.mrf.mxu0
        %v2743 = vadd.f32 0.0, %v2742
        %v2744 = vpop.f32.mrf.mxu0
        %2745 = vmatprep.mubr.f32.mxu0 %v2224
        %2746 = vmatmul.mubr.f32.gmra.mxu0 %v2192
        %v2747 = vpop.f32.mrf.mxu0
        %v2748 = vadd.f32 0.0, %v2747
        %v2749 = vpop.f32.mrf.mxu0
        %2750 = vmatprep.mubr.f32.mxu0 %v2225
        %2751 = vmatmul.mubr.f32.gmra.mxu0 %v2193
        %v2752 = vpop.f32.mrf.mxu0
        %v2753 = vadd.f32 0.0, %v2752
        %v2754 = vpop.f32.mrf.mxu0
        %2755 = vmatprep.mubr.f32.mxu0 %v2226
        %2756 = vmatmul.mubr.f32.gmra.mxu0 %v2194
        %v2757 = vpop.f32.mrf.mxu0
        %v2758 = vadd.f32 0.0, %v2757
        %v2759 = vpop.f32.mrf.mxu0
        %2760 = vmatprep.mubr.f32.mxu0 %v2227
        %2761 = vmatmul.mubr.f32.gmra.mxu0 %v2195
        %v2762 = vpop.f32.mrf.mxu0
        %v2763 = vadd.f32 0.0, %v2762
        %v2764 = vpop.f32.mrf.mxu0
        %2765 = vmatprep.mubr.f32.mxu0 %v2228
        %2766 = vmatmul.mubr.f32.gmra.mxu0 %v2196
        %v2767 = vpop.f32.mrf.mxu0
        %v2768 = vadd.f32 0.0, %v2767
        %v2769 = vpop.f32.mrf.mxu0
        %2770 = vmatprep.mubr.f32.mxu0 %v2229
        %2771 = vmatmul.mubr.f32.gmra.mxu0 %v2197
        %v2772 = vpop.f32.mrf.mxu0
        %v2773 = vadd.f32 0.0, %v2772
        %v2774 = vpop.f32.mrf.mxu0
        %2775 = vmatprep.mubr.f32.mxu0 %v2230
        %2776 = vmatmul.mubr.f32.gmra.mxu0 %v2198
        %v2777 = vpop.f32.mrf.mxu0
        %v2778 = vadd.f32 0.0, %v2777
        %v2779 = vpop.f32.mrf.mxu0
        %2780 = vmatprep.mubr.f32.mxu0 %v2231
        %2781 = vmatmul.mubr.f32.gmra.mxu0 %v2199
        %v2782 = vpop.f32.mrf.mxu0
        %v2783 = vadd.f32 0.0, %v2782
        %v2784 = vpop.f32.mrf.mxu0
        %2785 = vmatprep.mubr.f32.mxu0 %v2232
        %2786 = vmatmul.mubr.f32.gmra.mxu0 %v2200
        %v2787 = vpop.f32.mrf.mxu0
        %v2788 = vadd.f32 0.0, %v2787
        %v2789 = vpop.f32.mrf.mxu0
        %2790 = vmatprep.mubr.f32.mxu0 %v2233
        %2791 = vmatmul.mubr.f32.gmra.mxu0 %v2201
        %v2792 = vpop.f32.mrf.mxu0
        %v2793 = vadd.f32 0.0, %v2792
        %v2794 = vpop.f32.mrf.mxu0
        %2795 = vmatprep.mubr.f32.mxu0 %v2234
        %2796 = vmatmul.mubr.f32.gmra.mxu0 %v2202
        %v2797 = vpop.f32.mrf.mxu0
        %v2798 = vadd.f32 0.0, %v2797
        %v2799 = vpop.f32.mrf.mxu0
        %2800 = vmatprep.mubr.f32.mxu0 %v2235
        %2801 = vmatmul.mubr.f32.gmra.mxu0 %v2203
        %v2802 = vpop.f32.mrf.mxu0
        %v2803 = vadd.f32 0.0, %v2802
        %v2804 = vpop.f32.mrf.mxu0
        %2805 = vmatprep.mubr.f32.mxu0 %v2236
        %2806 = vmatmul.mubr.f32.gmra.mxu0 %v2204
        %v2807 = vpop.f32.mrf.mxu0
        %v2808 = vadd.f32 0.0, %v2807
        %v2809 = vpop.f32.mrf.mxu0
        %2810 = vmatprep.mubr.f32.mxu0 %v2237
        %2811 = vmatmul.mubr.f32.gmra.mxu0 %v2205
        %v2812 = vpop.f32.mrf.mxu0
        %v2813 = vadd.f32 0.0, %v2812
        %v2814 = vpop.f32.mrf.mxu0
        %2815 = vmatprep.mubr.f32.mxu0 %v2238
        %2816 = vmatmul.mubr.f32.gmra.mxu0 %v2206
        %v2817 = vpop.f32.mrf.mxu0
        %v2818 = vadd.f32 0.0, %v2817
        %v2819 = vpop.f32.mrf.mxu0
        %2820 = vmatprep.mubr.f32.mxu0 %v2239
        %2821 = vmatmul.mubr.f32.gmra.mxu0 %v2207
        %v2822 = vpop.f32.mrf.mxu0
        %v2823 = vadd.f32 0.0, %v2822
        %v2824 = vpop.f32.mrf.mxu0
        %2825 = vmatprep.mubr.f32.mxu0 %v2240
        %2826 = vmatmul.mubr.f32.gmra.mxu0 %v2208
        %v2827 = vpop.f32.mrf.mxu0
        %v2828 = vadd.f32 0.0, %v2827
        %v2829 = vpop.f32.mrf.mxu0
        %2830 = vmatprep.mubr.f32.mxu0 %v2241
        %2831 = vmatmul.mubr.f32.gmra.mxu0 %v2209
        %v2832 = vpop.f32.mrf.mxu0
        %v2833 = vadd.f32 0.0, %v2832
        %v2834 = vpop.f32.mrf.mxu0
        %2835 = vdwg.mxu0
        %2836 = vmatprep.subr.mxu0 0.0
        %2837 = vmatpush1.msra.mxu0 %v2514
        %2838 = vmatprep.subr.mxu0 0.0
        %2839 = vmatpush1.msra.mxu0 %v2513
        %2840 = vmatprep.subr.mxu0 0.0
        %2841 = vmatpush1.msra.mxu0 %v2512
        %2842 = vmatprep.subr.mxu0 0.0
        %2843 = vmatpush1.msra.mxu0 %v2511
        %2844 = vmatprep.subr.mxu0 0.0
        %2845 = vmatpush1.msra.mxu0 %v2510
        %2846 = vmatprep.subr.mxu0 0.0
        %2847 = vmatpush1.msra.mxu0 %v2509
        %2848 = vmatprep.subr.mxu0 0.0
        %2849 = vmatpush1.msra.mxu0 %v2508
        %2850 = vmatprep.subr.mxu0 0.0
        %2851 = vmatpush1.msra.mxu0 %v2507
        %2852 = vmatprep.subr.mxu0 0.0
        %2853 = vmatpush1.msra.mxu0 %v2506
        %2854 = vmatprep.subr.mxu0 0.0
        %2855 = vmatpush1.msra.mxu0 %v2505
        %2856 = vmatprep.subr.mxu0 0.0
        %2857 = vmatpush1.msra.mxu0 %v2504
        %2858 = vmatprep.subr.mxu0 0.0
        %2859 = vmatpush1.msra.mxu0 %v2503
        %2860 = vmatprep.subr.mxu0 0.0
        %2861 = vmatpush1.msra.mxu0 %v2502
        %2862 = vmatprep.subr.mxu0 0.0
        %2863 = vmatpush1.msra.mxu0 %v2501
        %2864 = vmatprep.subr.mxu0 0.0
        %2865 = vmatpush1.msra.mxu0 %v2500
        %2866 = vmatprep.subr.mxu0 0.0
        %2867 = vmatpush1.msra.mxu0 %v2499
        %2868 = vmatprep.subr.mxu0 0.0
        %2869 = vmatpush2.msra.mxu0 %v2530
        %2870 = vmatprep.subr.mxu0 0.0
        %2871 = vmatpush2.msra.mxu0 %v2529
        %2872 = vmatprep.subr.mxu0 0.0
        %2873 = vmatpush2.msra.mxu0 %v2528
        %2874 = vmatprep.subr.mxu0 0.0
        %2875 = vmatpush2.msra.mxu0 %v2527
        %2876 = vmatprep.subr.mxu0 0.0
        %2877 = vmatpush2.msra.mxu0 %v2526
        %2878 = vmatprep.subr.mxu0 0.0
        %2879 = vmatpush2.msra.mxu0 %v2525
        %2880 = vmatprep.subr.mxu0 0.0
        %2881 = vmatpush2.msra.mxu0 %v2524
        %2882 = vmatprep.subr.mxu0 0.0
        %2883 = vmatpush2.msra.mxu0 %v2523
        %2884 = vmatprep.subr.mxu0 0.0
        %2885 = vmatpush2.msra.mxu0 %v2522
        %2886 = vmatprep.subr.mxu0 0.0
        %2887 = vmatpush2.msra.mxu0 %v2521
        %2888 = vmatprep.subr.mxu0 0.0
        %2889 = vmatpush2.msra.mxu0 %v2520
        %2890 = vmatprep.subr.mxu0 0.0
        %2891 = vmatpush2.msra.mxu0 %v2519
        %2892 = vmatprep.subr.mxu0 0.0
        %2893 = vmatpush2.msra.mxu0 %v2518
        %2894 = vmatprep.subr.mxu0 0.0
        %2895 = vmatpush2.msra.mxu0 %v2517
        %2896 = vmatprep.subr.mxu0 0.0
        %2897 = vmatpush2.msra.mxu0 %v2516
        %2898 = vmatprep.subr.mxu0 0.0
        %2899 = vmatpush2.msra.mxu0 %v2515
        %2900 = vmatprep.mubr.f32.mxu0 %v2274
        %2901 = vmatmul.mubr.f32.gmra.mxu0 %v2242
        %v2902 = vpop.f32.mrf.mxu0
        %v2903 = vadd.f32 %v2678, %v2902
        %v2904 = vpop.f32.mrf.mxu0
        %2905 = vmatprep.mubr.f32.mxu0 %v2275
        %2906 = vmatmul.mubr.f32.gmra.mxu0 %v2243
        %v2907 = vpop.f32.mrf.mxu0
        %v2908 = vadd.f32 %v2683, %v2907
        %v2909 = vpop.f32.mrf.mxu0
        %2910 = vmatprep.mubr.f32.mxu0 %v2276
        %2911 = vmatmul.mubr.f32.gmra.mxu0 %v2244
        %v2912 = vpop.f32.mrf.mxu0
        %v2913 = vadd.f32 %v2688, %v2912
        %v2914 = vpop.f32.mrf.mxu0
        %2915 = vmatprep.mubr.f32.mxu0 %v2277
        %2916 = vmatmul.mubr.f32.gmra.mxu0 %v2245
        %v2917 = vpop.f32.mrf.mxu0
        %v2918 = vadd.f32 %v2693, %v2917
        %v2919 = vpop.f32.mrf.mxu0
        %2920 = vmatprep.mubr.f32.mxu0 %v2278
        %2921 = vmatmul.mubr.f32.gmra.mxu0 %v2246
        %v2922 = vpop.f32.mrf.mxu0
        %v2923 = vadd.f32 %v2698, %v2922
        %v2924 = vpop.f32.mrf.mxu0
        %2925 = vmatprep.mubr.f32.mxu0 %v2279
        %2926 = vmatmul.mubr.f32.gmra.mxu0 %v2247
        %v2927 = vpop.f32.mrf.mxu0
        %v2928 = vadd.f32 %v2703, %v2927
        %v2929 = vpop.f32.mrf.mxu0
        %2930 = vmatprep.mubr.f32.mxu0 %v2280
        %2931 = vmatmul.mubr.f32.gmra.mxu0 %v2248
        %v2932 = vpop.f32.mrf.mxu0
        %v2933 = vadd.f32 %v2708, %v2932
        %v2934 = vpop.f32.mrf.mxu0
        %2935 = vmatprep.mubr.f32.mxu0 %v2281
        %2936 = vmatmul.mubr.f32.gmra.mxu0 %v2249
        %v2937 = vpop.f32.mrf.mxu0
        %v2938 = vadd.f32 %v2713, %v2937
        %v2939 = vpop.f32.mrf.mxu0
        %2940 = vmatprep.mubr.f32.mxu0 %v2282
        %2941 = vmatmul.mubr.f32.gmra.mxu0 %v2250
        %v2942 = vpop.f32.mrf.mxu0
        %v2943 = vadd.f32 %v2718, %v2942
        %v2944 = vpop.f32.mrf.mxu0
        %2945 = vmatprep.mubr.f32.mxu0 %v2283
        %2946 = vmatmul.mubr.f32.gmra.mxu0 %v2251
        %v2947 = vpop.f32.mrf.mxu0
        %v2948 = vadd.f32 %v2723, %v2947
        %v2949 = vpop.f32.mrf.mxu0
        %2950 = vmatprep.mubr.f32.mxu0 %v2284
        %2951 = vmatmul.mubr.f32.gmra.mxu0 %v2252
        %v2952 = vpop.f32.mrf.mxu0
        %v2953 = vadd.f32 %v2728, %v2952
        %v2954 = vpop.f32.mrf.mxu0
        %2955 = vmatprep.mubr.f32.mxu0 %v2285
        %2956 = vmatmul.mubr.f32.gmra.mxu0 %v2253
        %v2957 = vpop.f32.mrf.mxu0
        %v2958 = vadd.f32 %v2733, %v2957
        %v2959 = vpop.f32.mrf.mxu0
        %2960 = vmatprep.mubr.f32.mxu0 %v2286
        %2961 = vmatmul.mubr.f32.gmra.mxu0 %v2254
        %v2962 = vpop.f32.mrf.mxu0
        %v2963 = vadd.f32 %v2738, %v2962
        %v2964 = vpop.f32.mrf.mxu0
        %2965 = vmatprep.mubr.f32.mxu0 %v2287
        %2966 = vmatmul.mubr.f32.gmra.mxu0 %v2255
        %v2967 = vpop.f32.mrf.mxu0
        %v2968 = vadd.f32 %v2743, %v2967
        %v2969 = vpop.f32.mrf.mxu0
        %2970 = vmatprep.mubr.f32.mxu0 %v2288
        %2971 = vmatmul.mubr.f32.gmra.mxu0 %v2256
        %v2972 = vpop.f32.mrf.mxu0
        %v2973 = vadd.f32 %v2748, %v2972
        %v2974 = vpop.f32.mrf.mxu0
        %2975 = vmatprep.mubr.f32.mxu0 %v2289
        %2976 = vmatmul.mubr.f32.gmra.mxu0 %v2257
        %v2977 = vpop.f32.mrf.mxu0
        %v2978 = vadd.f32 %v2753, %v2977
        %v2979 = vpop.f32.mrf.mxu0
        %2980 = vmatprep.mubr.f32.mxu0 %v2290
        %2981 = vmatmul.mubr.f32.gmra.mxu0 %v2258
        %v2982 = vpop.f32.mrf.mxu0
        %v2983 = vadd.f32 %v2758, %v2982
        %v2984 = vpop.f32.mrf.mxu0
        %2985 = vmatprep.mubr.f32.mxu0 %v2291
        %2986 = vmatmul.mubr.f32.gmra.mxu0 %v2259
        %v2987 = vpop.f32.mrf.mxu0
        %v2988 = vadd.f32 %v2763, %v2987
        %v2989 = vpop.f32.mrf.mxu0
        %2990 = vmatprep.mubr.f32.mxu0 %v2292
        %2991 = vmatmul.mubr.f32.gmra.mxu0 %v2260
        %v2992 = vpop.f32.mrf.mxu0
        %v2993 = vadd.f32 %v2768, %v2992
        %v2994 = vpop.f32.mrf.mxu0
        %2995 = vmatprep.mubr.f32.mxu0 %v2293
        %2996 = vmatmul.mubr.f32.gmra.mxu0 %v2261
        %v2997 = vpop.f32.mrf.mxu0
        %v2998 = vadd.f32 %v2773, %v2997
        %v2999 = vpop.f32.mrf.mxu0
        %3000 = vmatprep.mubr.f32.mxu0 %v2294
        %3001 = vmatmul.mubr.f32.gmra.mxu0 %v2262
        %v3002 = vpop.f32.mrf.mxu0
        %v3003 = vadd.f32 %v2778, %v3002
        %v3004 = vpop.f32.mrf.mxu0
        %3005 = vmatprep.mubr.f32.mxu0 %v2295
        %3006 = vmatmul.mubr.f32.gmra.mxu0 %v2263
        %v3007 = vpop.f32.mrf.mxu0
        %v3008 = vadd.f32 %v2783, %v3007
        %v3009 = vpop.f32.mrf.mxu0
        %3010 = vmatprep.mubr.f32.mxu0 %v2296
        %3011 = vmatmul.mubr.f32.gmra.mxu0 %v2264
        %v3012 = vpop.f32.mrf.mxu0
        %v3013 = vadd.f32 %v2788, %v3012
        %v3014 = vpop.f32.mrf.mxu0
        %3015 = vmatprep.mubr.f32.mxu0 %v2297
        %3016 = vmatmul.mubr.f32.gmra.mxu0 %v2265
        %v3017 = vpop.f32.mrf.mxu0
        %v3018 = vadd.f32 %v2793, %v3017
        %v3019 = vpop.f32.mrf.mxu0
        %3020 = vmatprep.mubr.f32.mxu0 %v2298
        %3021 = vmatmul.mubr.f32.gmra.mxu0 %v2266
        %v3022 = vpop.f32.mrf.mxu0
        %v3023 = vadd.f32 %v2798, %v3022
        %v3024 = vpop.f32.mrf.mxu0
        %3025 = vmatprep.mubr.f32.mxu0 %v2299
        %3026 = vmatmul.mubr.f32.gmra.mxu0 %v2267
        %v3027 = vpop.f32.mrf.mxu0
        %v3028 = vadd.f32 %v2803, %v3027
        %v3029 = vpop.f32.mrf.mxu0
        %3030 = vmatprep.mubr.f32.mxu0 %v2300
        %3031 = vmatmul.mubr.f32.gmra.mxu0 %v2268
        %v3032 = vpop.f32.mrf.mxu0
        %v3033 = vadd.f32 %v2808, %v3032
        %v3034 = vpop.f32.mrf.mxu0
        %3035 = vmatprep.mubr.f32.mxu0 %v2301
        %3036 = vmatmul.mubr.f32.gmra.mxu0 %v2269
        %v3037 = vpop.f32.mrf.mxu0
        %v3038 = vadd.f32 %v2813, %v3037
        %v3039 = vpop.f32.mrf.mxu0
        %3040 = vmatprep.mubr.f32.mxu0 %v2302
        %3041 = vmatmul.mubr.f32.gmra.mxu0 %v2270
        %v3042 = vpop.f32.mrf.mxu0
        %v3043 = vadd.f32 %v2818, %v3042
        %v3044 = vpop.f32.mrf.mxu0
        %3045 = vmatprep.mubr.f32.mxu0 %v2303
        %3046 = vmatmul.mubr.f32.gmra.mxu0 %v2271
        %v3047 = vpop.f32.mrf.mxu0
        %v3048 = vadd.f32 %v2823, %v3047
        %v3049 = vpop.f32.mrf.mxu0
        %3050 = vmatprep.mubr.f32.mxu0 %v2304
        %3051 = vmatmul.mubr.f32.gmra.mxu0 %v2272
        %v3052 = vpop.f32.mrf.mxu0
        %v3053 = vadd.f32 %v2828, %v3052
        %v3054 = vpop.f32.mrf.mxu0
        %3055 = vmatprep.mubr.f32.mxu0 %v2305
        %3056 = vmatmul.mubr.f32.gmra.mxu0 %v2273
        %v3057 = vpop.f32.mrf.mxu0
        %v3058 = vadd.f32 %v2833, %v3057
        %v3059 = vpop.f32.mrf.mxu0
        %3060 = vdwg.mxu0
        %3061 = vmatprep.subr.mxu0 0.0
        %3062 = vmatpush1.msra.mxu0 %v2546
        %3063 = vmatprep.subr.mxu0 0.0
        %3064 = vmatpush1.msra.mxu0 %v2545
        %3065 = vmatprep.subr.mxu0 0.0
        %3066 = vmatpush1.msra.mxu0 %v2544
        %3067 = vmatprep.subr.mxu0 0.0
        %3068 = vmatpush1.msra.mxu0 %v2543
        %3069 = vmatprep.subr.mxu0 0.0
        %3070 = vmatpush1.msra.mxu0 %v2542
        %3071 = vmatprep.subr.mxu0 0.0
        %3072 = vmatpush1.msra.mxu0 %v2541
        %3073 = vmatprep.subr.mxu0 0.0
        %3074 = vmatpush1.msra.mxu0 %v2540
        %3075 = vmatprep.subr.mxu0 0.0
        %3076 = vmatpush1.msra.mxu0 %v2539
        %3077 = vmatprep.subr.mxu0 0.0
        %3078 = vmatpush1.msra.mxu0 %v2538
        %3079 = vmatprep.subr.mxu0 0.0
        %3080 = vmatpush1.msra.mxu0 %v2537
        %3081 = vmatprep.subr.mxu0 0.0
        %3082 = vmatpush1.msra.mxu0 %v2536
        %3083 = vmatprep.subr.mxu0 0.0
        %3084 = vmatpush1.msra.mxu0 %v2535
        %3085 = vmatprep.subr.mxu0 0.0
        %3086 = vmatpush1.msra.mxu0 %v2534
        %3087 = vmatprep.subr.mxu0 0.0
        %3088 = vmatpush1.msra.mxu0 %v2533
        %3089 = vmatprep.subr.mxu0 0.0
        %3090 = vmatpush1.msra.mxu0 %v2532
        %3091 = vmatprep.subr.mxu0 0.0
        %3092 = vmatpush1.msra.mxu0 %v2531
        %3093 = vmatprep.subr.mxu0 0.0
        %3094 = vmatpush2.msra.mxu0 %v2562
        %3095 = vmatprep.subr.mxu0 0.0
        %3096 = vmatpush2.msra.mxu0 %v2561
        %3097 = vmatprep.subr.mxu0 0.0
        %3098 = vmatpush2.msra.mxu0 %v2560
        %3099 = vmatprep.subr.mxu0 0.0
        %3100 = vmatpush2.msra.mxu0 %v2559
        %3101 = vmatprep.subr.mxu0 0.0
        %3102 = vmatpush2.msra.mxu0 %v2558
        %3103 = vmatprep.subr.mxu0 0.0
        %3104 = vmatpush2.msra.mxu0 %v2557
        %3105 = vmatprep.subr.mxu0 0.0
        %3106 = vmatpush2.msra.mxu0 %v2556
        %3107 = vmatprep.subr.mxu0 0.0
        %3108 = vmatpush2.msra.mxu0 %v2555
        %3109 = vmatprep.subr.mxu0 0.0
        %3110 = vmatpush2.msra.mxu0 %v2554
        %3111 = vmatprep.subr.mxu0 0.0
        %3112 = vmatpush2.msra.mxu0 %v2553
        %3113 = vmatprep.subr.mxu0 0.0
        %3114 = vmatpush2.msra.mxu0 %v2552
        %3115 = vmatprep.subr.mxu0 0.0
        %3116 = vmatpush2.msra.mxu0 %v2551
        %3117 = vmatprep.subr.mxu0 0.0
        %3118 = vmatpush2.msra.mxu0 %v2550
        %3119 = vmatprep.subr.mxu0 0.0
        %3120 = vmatpush2.msra.mxu0 %v2549
        %3121 = vmatprep.subr.mxu0 0.0
        %3122 = vmatpush2.msra.mxu0 %v2548
        %3123 = vmatprep.subr.mxu0 0.0
        %3124 = vmatpush2.msra.mxu0 %v2547
        %3125 = vmatprep.mubr.f32.mxu0 %v2338
        %3126 = vmatmul.mubr.f32.gmra.mxu0 %v2306
        %v3127 = vpop.f32.mrf.mxu0
        %v3128 = vadd.f32 %v2903, %v3127
        %v3129 = vpop.f32.mrf.mxu0
        %3130 = vmatprep.mubr.f32.mxu0 %v2339
        %3131 = vmatmul.mubr.f32.gmra.mxu0 %v2307
        %v3132 = vpop.f32.mrf.mxu0
        %v3133 = vadd.f32 %v2908, %v3132
        %v3134 = vpop.f32.mrf.mxu0
        %3135 = vmatprep.mubr.f32.mxu0 %v2340
        %3136 = vmatmul.mubr.f32.gmra.mxu0 %v2308
        %v3137 = vpop.f32.mrf.mxu0
        %v3138 = vadd.f32 %v2913, %v3137
        %v3139 = vpop.f32.mrf.mxu0
        %3140 = vmatprep.mubr.f32.mxu0 %v2341
        %3141 = vmatmul.mubr.f32.gmra.mxu0 %v2309
        %v3142 = vpop.f32.mrf.mxu0
        %v3143 = vadd.f32 %v2918, %v3142
        %v3144 = vpop.f32.mrf.mxu0
        %3145 = vmatprep.mubr.f32.mxu0 %v2342
        %3146 = vmatmul.mubr.f32.gmra.mxu0 %v2310
        %v3147 = vpop.f32.mrf.mxu0
        %v3148 = vadd.f32 %v2923, %v3147
        %v3149 = vpop.f32.mrf.mxu0
        %3150 = vmatprep.mubr.f32.mxu0 %v2343
        %3151 = vmatmul.mubr.f32.gmra.mxu0 %v2311
        %v3152 = vpop.f32.mrf.mxu0
        %v3153 = vadd.f32 %v2928, %v3152
        %v3154 = vpop.f32.mrf.mxu0
        %3155 = vmatprep.mubr.f32.mxu0 %v2344
        %3156 = vmatmul.mubr.f32.gmra.mxu0 %v2312
        %v3157 = vpop.f32.mrf.mxu0
        %v3158 = vadd.f32 %v2933, %v3157
        %v3159 = vpop.f32.mrf.mxu0
        %3160 = vmatprep.mubr.f32.mxu0 %v2345
        %3161 = vmatmul.mubr.f32.gmra.mxu0 %v2313
        %v3162 = vpop.f32.mrf.mxu0
        %v3163 = vadd.f32 %v2938, %v3162
        %v3164 = vpop.f32.mrf.mxu0
        %3165 = vmatprep.mubr.f32.mxu0 %v2346
        %3166 = vmatmul.mubr.f32.gmra.mxu0 %v2314
        %v3167 = vpop.f32.mrf.mxu0
        %v3168 = vadd.f32 %v2943, %v3167
        %v3169 = vpop.f32.mrf.mxu0
        %3170 = vmatprep.mubr.f32.mxu0 %v2347
        %3171 = vmatmul.mubr.f32.gmra.mxu0 %v2315
        %v3172 = vpop.f32.mrf.mxu0
        %v3173 = vadd.f32 %v2948, %v3172
        %v3174 = vpop.f32.mrf.mxu0
        %3175 = vmatprep.mubr.f32.mxu0 %v2348
        %3176 = vmatmul.mubr.f32.gmra.mxu0 %v2316
        %v3177 = vpop.f32.mrf.mxu0
        %v3178 = vadd.f32 %v2953, %v3177
        %v3179 = vpop.f32.mrf.mxu0
        %3180 = vmatprep.mubr.f32.mxu0 %v2349
        %3181 = vmatmul.mubr.f32.gmra.mxu0 %v2317
        %v3182 = vpop.f32.mrf.mxu0
        %v3183 = vadd.f32 %v2958, %v3182
        %v3184 = vpop.f32.mrf.mxu0
        %3185 = vmatprep.mubr.f32.mxu0 %v2350
        %3186 = vmatmul.mubr.f32.gmra.mxu0 %v2318
        %v3187 = vpop.f32.mrf.mxu0
        %v3188 = vadd.f32 %v2963, %v3187
        %v3189 = vpop.f32.mrf.mxu0
        %3190 = vmatprep.mubr.f32.mxu0 %v2351
        %3191 = vmatmul.mubr.f32.gmra.mxu0 %v2319
        %v3192 = vpop.f32.mrf.mxu0
        %v3193 = vadd.f32 %v2968, %v3192
        %v3194 = vpop.f32.mrf.mxu0
        %3195 = vmatprep.mubr.f32.mxu0 %v2352
        %3196 = vmatmul.mubr.f32.gmra.mxu0 %v2320
        %v3197 = vpop.f32.mrf.mxu0
        %v3198 = vadd.f32 %v2973, %v3197
        %v3199 = vpop.f32.mrf.mxu0
        %3200 = vmatprep.mubr.f32.mxu0 %v2353
        %3201 = vmatmul.mubr.f32.gmra.mxu0 %v2321
        %v3202 = vpop.f32.mrf.mxu0
        %v3203 = vadd.f32 %v2978, %v3202
        %v3204 = vpop.f32.mrf.mxu0
        %3205 = vmatprep.mubr.f32.mxu0 %v2354
        %3206 = vmatmul.mubr.f32.gmra.mxu0 %v2322
        %v3207 = vpop.f32.mrf.mxu0
        %v3208 = vadd.f32 %v2983, %v3207
        %v3209 = vpop.f32.mrf.mxu0
        %3210 = vmatprep.mubr.f32.mxu0 %v2355
        %3211 = vmatmul.mubr.f32.gmra.mxu0 %v2323
        %v3212 = vpop.f32.mrf.mxu0
        %v3213 = vadd.f32 %v2988, %v3212
        %v3214 = vpop.f32.mrf.mxu0
        %3215 = vmatprep.mubr.f32.mxu0 %v2356
        %3216 = vmatmul.mubr.f32.gmra.mxu0 %v2324
        %v3217 = vpop.f32.mrf.mxu0
        %v3218 = vadd.f32 %v2993, %v3217
        %v3219 = vpop.f32.mrf.mxu0
        %3220 = vmatprep.mubr.f32.mxu0 %v2357
        %3221 = vmatmul.mubr.f32.gmra.mxu0 %v2325
        %v3222 = vpop.f32.mrf.mxu0
        %v3223 = vadd.f32 %v2998, %v3222
        %v3224 = vpop.f32.mrf.mxu0
        %3225 = vmatprep.mubr.f32.mxu0 %v2358
        %3226 = vmatmul.mubr.f32.gmra.mxu0 %v2326
        %v3227 = vpop.f32.mrf.mxu0
        %v3228 = vadd.f32 %v3003, %v3227
        %v3229 = vpop.f32.mrf.mxu0
        %3230 = vmatprep.mubr.f32.mxu0 %v2359
        %3231 = vmatmul.mubr.f32.gmra.mxu0 %v2327
        %v3232 = vpop.f32.mrf.mxu0
        %v3233 = vadd.f32 %v3008, %v3232
        %v3234 = vpop.f32.mrf.mxu0
        %3235 = vmatprep.mubr.f32.mxu0 %v2360
        %3236 = vmatmul.mubr.f32.gmra.mxu0 %v2328
        %v3237 = vpop.f32.mrf.mxu0
        %v3238 = vadd.f32 %v3013, %v3237
        %v3239 = vpop.f32.mrf.mxu0
        %3240 = vmatprep.mubr.f32.mxu0 %v2361
        %3241 = vmatmul.mubr.f32.gmra.mxu0 %v2329
        %v3242 = vpop.f32.mrf.mxu0
        %v3243 = vadd.f32 %v3018, %v3242
        %v3244 = vpop.f32.mrf.mxu0
        %3245 = vmatprep.mubr.f32.mxu0 %v2362
        %3246 = vmatmul.mubr.f32.gmra.mxu0 %v2330
        %v3247 = vpop.f32.mrf.mxu0
        %v3248 = vadd.f32 %v3023, %v3247
        %v3249 = vpop.f32.mrf.mxu0
        %3250 = vmatprep.mubr.f32.mxu0 %v2363
        %3251 = vmatmul.mubr.f32.gmra.mxu0 %v2331
        %v3252 = vpop.f32.mrf.mxu0
        %v3253 = vadd.f32 %v3028, %v3252
        %v3254 = vpop.f32.mrf.mxu0
        %3255 = vmatprep.mubr.f32.mxu0 %v2364
        %3256 = vmatmul.mubr.f32.gmra.mxu0 %v2332
        %v3257 = vpop.f32.mrf.mxu0
        %v3258 = vadd.f32 %v3033, %v3257
        %v3259 = vpop.f32.mrf.mxu0
        %3260 = vmatprep.mubr.f32.mxu0 %v2365
        %3261 = vmatmul.mubr.f32.gmra.mxu0 %v2333
        %v3262 = vpop.f32.mrf.mxu0
        %v3263 = vadd.f32 %v3038, %v3262
        %v3264 = vpop.f32.mrf.mxu0
        %3265 = vmatprep.mubr.f32.mxu0 %v2366
        %3266 = vmatmul.mubr.f32.gmra.mxu0 %v2334
        %v3267 = vpop.f32.mrf.mxu0
        %v3268 = vadd.f32 %v3043, %v3267
        %v3269 = vpop.f32.mrf.mxu0
        %3270 = vmatprep.mubr.f32.mxu0 %v2367
        %3271 = vmatmul.mubr.f32.gmra.mxu0 %v2335
        %v3272 = vpop.f32.mrf.mxu0
        %v3273 = vadd.f32 %v3048, %v3272
        %v3274 = vpop.f32.mrf.mxu0
        %3275 = vmatprep.mubr.f32.mxu0 %v2368
        %3276 = vmatmul.mubr.f32.gmra.mxu0 %v2336
        %v3277 = vpop.f32.mrf.mxu0
        %v3278 = vadd.f32 %v3053, %v3277
        %v3279 = vpop.f32.mrf.mxu0
        %3280 = vmatprep.mubr.f32.mxu0 %v2369
        %3281 = vmatmul.mubr.f32.gmra.mxu0 %v2337
        %v3282 = vpop.f32.mrf.mxu0
        %v3283 = vadd.f32 %v3058, %v3282
        %v3284 = vpop.f32.mrf.mxu0
        %3285 = vdwg.mxu0
        %3286 = vmatprep.subr.mxu0 0.0
        %3287 = vmatpush1.msra.mxu0 %v2578
        %3288 = vmatprep.subr.mxu0 0.0
        %3289 = vmatpush1.msra.mxu0 %v2577
        %3290 = vmatprep.subr.mxu0 0.0
        %3291 = vmatpush1.msra.mxu0 %v2576
        %3292 = vmatprep.subr.mxu0 0.0
        %3293 = vmatpush1.msra.mxu0 %v2575
        %3294 = vmatprep.subr.mxu0 0.0
        %3295 = vmatpush1.msra.mxu0 %v2574
        %3296 = vmatprep.subr.mxu0 0.0
        %3297 = vmatpush1.msra.mxu0 %v2573
        %3298 = vmatprep.subr.mxu0 0.0
        %3299 = vmatpush1.msra.mxu0 %v2572
        %3300 = vmatprep.subr.mxu0 0.0
        %3301 = vmatpush1.msra.mxu0 %v2571
        %3302 = vmatprep.subr.mxu0 0.0
        %3303 = vmatpush1.msra.mxu0 %v2570
        %3304 = vmatprep.subr.mxu0 0.0
        %3305 = vmatpush1.msra.mxu0 %v2569
        %3306 = vmatprep.subr.mxu0 0.0
        %3307 = vmatpush1.msra.mxu0 %v2568
        %3308 = vmatprep.subr.mxu0 0.0
        %3309 = vmatpush1.msra.mxu0 %v2567
        %3310 = vmatprep.subr.mxu0 0.0
        %3311 = vmatpush1.msra.mxu0 %v2566
        %3312 = vmatprep.subr.mxu0 0.0
        %3313 = vmatpush1.msra.mxu0 %v2565
        %3314 = vmatprep.subr.mxu0 0.0
        %3315 = vmatpush1.msra.mxu0 %v2564
        %3316 = vmatprep.subr.mxu0 0.0
        %3317 = vmatpush1.msra.mxu0 %v2563
        %3318 = vmatprep.subr.mxu0 0.0
        %3319 = vmatpush2.msra.mxu0 %v2594
        %3320 = vmatprep.subr.mxu0 0.0
        %3321 = vmatpush2.msra.mxu0 %v2593
        %3322 = vmatprep.subr.mxu0 0.0
        %3323 = vmatpush2.msra.mxu0 %v2592
        %3324 = vmatprep.subr.mxu0 0.0
        %3325 = vmatpush2.msra.mxu0 %v2591
        %3326 = vmatprep.subr.mxu0 0.0
        %3327 = vmatpush2.msra.mxu0 %v2590
        %3328 = vmatprep.subr.mxu0 0.0
        %3329 = vmatpush2.msra.mxu0 %v2589
        %3330 = vmatprep.subr.mxu0 0.0
        %3331 = vmatpush2.msra.mxu0 %v2588
        %3332 = vmatprep.subr.mxu0 0.0
        %3333 = vmatpush2.msra.mxu0 %v2587
        %3334 = vmatprep.subr.mxu0 0.0
        %3335 = vmatpush2.msra.mxu0 %v2586
        %3336 = vmatprep.subr.mxu0 0.0
        %3337 = vmatpush2.msra.mxu0 %v2585
        %3338 = vmatprep.subr.mxu0 0.0
        %3339 = vmatpush2.msra.mxu0 %v2584
        %3340 = vmatprep.subr.mxu0 0.0
        %3341 = vmatpush2.msra.mxu0 %v2583
        %3342 = vmatprep.subr.mxu0 0.0
        %3343 = vmatpush2.msra.mxu0 %v2582
        %3344 = vmatprep.subr.mxu0 0.0
        %3345 = vmatpush2.msra.mxu0 %v2581
        %3346 = vmatprep.subr.mxu0 0.0
        %3347 = vmatpush2.msra.mxu0 %v2580
        %3348 = vmatprep.subr.mxu0 0.0
        %3349 = vmatpush2.msra.mxu0 %v2579
        %3350 = vmatprep.mubr.f32.mxu0 %v2402
        %3351 = vmatmul.mubr.f32.gmra.mxu0 %v2370
        %v3352 = vpop.f32.mrf.mxu0
        %v3353 = vadd.f32 %v3128, %v3352
        %v3354 = vpop.f32.mrf.mxu0
        %3355 = vmatprep.mubr.f32.mxu0 %v2403
        %3356 = vmatmul.mubr.f32.gmra.mxu0 %v2371
        %v3357 = vpop.f32.mrf.mxu0
        %v3358 = vadd.f32 %v3133, %v3357
        %v3359 = vpop.f32.mrf.mxu0
        %3360 = vmatprep.mubr.f32.mxu0 %v2404
        %3361 = vmatmul.mubr.f32.gmra.mxu0 %v2372
        %v3362 = vpop.f32.mrf.mxu0
        %v3363 = vadd.f32 %v3138, %v3362
        %v3364 = vpop.f32.mrf.mxu0
        %3365 = vmatprep.mubr.f32.mxu0 %v2405
        %3366 = vmatmul.mubr.f32.gmra.mxu0 %v2373
        %v3367 = vpop.f32.mrf.mxu0
        %v3368 = vadd.f32 %v3143, %v3367
        %v3369 = vpop.f32.mrf.mxu0
        %3370 = vmatprep.mubr.f32.mxu0 %v2406
        %3371 = vmatmul.mubr.f32.gmra.mxu0 %v2374
        %v3372 = vpop.f32.mrf.mxu0
        %v3373 = vadd.f32 %v3148, %v3372
        %v3374 = vpop.f32.mrf.mxu0
        %3375 = vmatprep.mubr.f32.mxu0 %v2407
        %3376 = vmatmul.mubr.f32.gmra.mxu0 %v2375
        %v3377 = vpop.f32.mrf.mxu0
        %v3378 = vadd.f32 %v3153, %v3377
        %v3379 = vpop.f32.mrf.mxu0
        %3380 = vmatprep.mubr.f32.mxu0 %v2408
        %3381 = vmatmul.mubr.f32.gmra.mxu0 %v2376
        %v3382 = vpop.f32.mrf.mxu0
        %v3383 = vadd.f32 %v3158, %v3382
        %v3384 = vpop.f32.mrf.mxu0
        %3385 = vmatprep.mubr.f32.mxu0 %v2409
        %3386 = vmatmul.mubr.f32.gmra.mxu0 %v2377
        %v3387 = vpop.f32.mrf.mxu0
        %v3388 = vadd.f32 %v3163, %v3387
        %v3389 = vpop.f32.mrf.mxu0
        %3390 = vmatprep.mubr.f32.mxu0 %v2410
        %3391 = vmatmul.mubr.f32.gmra.mxu0 %v2378
        %v3392 = vpop.f32.mrf.mxu0
        %v3393 = vadd.f32 %v3168, %v3392
        %v3394 = vpop.f32.mrf.mxu0
        %3395 = vmatprep.mubr.f32.mxu0 %v2411
        %3396 = vmatmul.mubr.f32.gmra.mxu0 %v2379
        %v3397 = vpop.f32.mrf.mxu0
        %v3398 = vadd.f32 %v3173, %v3397
        %v3399 = vpop.f32.mrf.mxu0
        %3400 = vmatprep.mubr.f32.mxu0 %v2412
        %3401 = vmatmul.mubr.f32.gmra.mxu0 %v2380
        %v3402 = vpop.f32.mrf.mxu0
        %v3403 = vadd.f32 %v3178, %v3402
        %v3404 = vpop.f32.mrf.mxu0
        %3405 = vmatprep.mubr.f32.mxu0 %v2413
        %3406 = vmatmul.mubr.f32.gmra.mxu0 %v2381
        %v3407 = vpop.f32.mrf.mxu0
        %v3408 = vadd.f32 %v3183, %v3407
        %v3409 = vpop.f32.mrf.mxu0
        %3410 = vmatprep.mubr.f32.mxu0 %v2414
        %3411 = vmatmul.mubr.f32.gmra.mxu0 %v2382
        %v3412 = vpop.f32.mrf.mxu0
        %v3413 = vadd.f32 %v3188, %v3412
        %v3414 = vpop.f32.mrf.mxu0
        %3415 = vmatprep.mubr.f32.mxu0 %v2415
        %3416 = vmatmul.mubr.f32.gmra.mxu0 %v2383
        %v3417 = vpop.f32.mrf.mxu0
        %v3418 = vadd.f32 %v3193, %v3417
        %v3419 = vpop.f32.mrf.mxu0
        %3420 = vmatprep.mubr.f32.mxu0 %v2416
        %3421 = vmatmul.mubr.f32.gmra.mxu0 %v2384
        %v3422 = vpop.f32.mrf.mxu0
        %v3423 = vadd.f32 %v3198, %v3422
        %v3424 = vpop.f32.mrf.mxu0
        %3425 = vmatprep.mubr.f32.mxu0 %v2417
        %3426 = vmatmul.mubr.f32.gmra.mxu0 %v2385
        %v3427 = vpop.f32.mrf.mxu0
        %v3428 = vadd.f32 %v3203, %v3427
        %v3429 = vpop.f32.mrf.mxu0
        %3430 = vmatprep.mubr.f32.mxu0 %v2418
        %3431 = vmatmul.mubr.f32.gmra.mxu0 %v2386
        %v3432 = vpop.f32.mrf.mxu0
        %v3433 = vadd.f32 %v3208, %v3432
        %v3434 = vpop.f32.mrf.mxu0
        %3435 = vmatprep.mubr.f32.mxu0 %v2419
        %3436 = vmatmul.mubr.f32.gmra.mxu0 %v2387
        %v3437 = vpop.f32.mrf.mxu0
        %v3438 = vadd.f32 %v3213, %v3437
        %v3439 = vpop.f32.mrf.mxu0
        %3440 = vmatprep.mubr.f32.mxu0 %v2420
        %3441 = vmatmul.mubr.f32.gmra.mxu0 %v2388
        %v3442 = vpop.f32.mrf.mxu0
        %v3443 = vadd.f32 %v3218, %v3442
        %v3444 = vpop.f32.mrf.mxu0
        %3445 = vmatprep.mubr.f32.mxu0 %v2421
        %3446 = vmatmul.mubr.f32.gmra.mxu0 %v2389
        %v3447 = vpop.f32.mrf.mxu0
        %v3448 = vadd.f32 %v3223, %v3447
        %v3449 = vpop.f32.mrf.mxu0
        %3450 = vmatprep.mubr.f32.mxu0 %v2422
        %3451 = vmatmul.mubr.f32.gmra.mxu0 %v2390
        %v3452 = vpop.f32.mrf.mxu0
        %v3453 = vadd.f32 %v3228, %v3452
        %v3454 = vpop.f32.mrf.mxu0
        %3455 = vmatprep.mubr.f32.mxu0 %v2423
        %3456 = vmatmul.mubr.f32.gmra.mxu0 %v2391
        %v3457 = vpop.f32.mrf.mxu0
        %v3458 = vadd.f32 %v3233, %v3457
        %v3459 = vpop.f32.mrf.mxu0
        %3460 = vmatprep.mubr.f32.mxu0 %v2424
        %3461 = vmatmul.mubr.f32.gmra.mxu0 %v2392
        %v3462 = vpop.f32.mrf.mxu0
        %v3463 = vadd.f32 %v3238, %v3462
        %v3464 = vpop.f32.mrf.mxu0
        %3465 = vmatprep.mubr.f32.mxu0 %v2425
        %3466 = vmatmul.mubr.f32.gmra.mxu0 %v2393
        %v3467 = vpop.f32.mrf.mxu0
        %v3468 = vadd.f32 %v3243, %v3467
        %v3469 = vpop.f32.mrf.mxu0
        %3470 = vmatprep.mubr.f32.mxu0 %v2426
        %3471 = vmatmul.mubr.f32.gmra.mxu0 %v2394
        %v3472 = vpop.f32.mrf.mxu0
        %v3473 = vadd.f32 %v3248, %v3472
        %v3474 = vpop.f32.mrf.mxu0
        %3475 = vmatprep.mubr.f32.mxu0 %v2427
        %3476 = vmatmul.mubr.f32.gmra.mxu0 %v2395
        %v3477 = vpop.f32.mrf.mxu0
        %v3478 = vadd.f32 %v3253, %v3477
        %v3479 = vpop.f32.mrf.mxu0
        %3480 = vmatprep.mubr.f32.mxu0 %v2428
        %3481 = vmatmul.mubr.f32.gmra.mxu0 %v2396
        %v3482 = vpop.f32.mrf.mxu0
        %v3483 = vadd.f32 %v3258, %v3482
        %v3484 = vpop.f32.mrf.mxu0
        %3485 = vmatprep.mubr.f32.mxu0 %v2429
        %3486 = vmatmul.mubr.f32.gmra.mxu0 %v2397
        %v3487 = vpop.f32.mrf.mxu0
        %v3488 = vadd.f32 %v3263, %v3487
        %v3489 = vpop.f32.mrf.mxu0
        %3490 = vmatprep.mubr.f32.mxu0 %v2430
        %3491 = vmatmul.mubr.f32.gmra.mxu0 %v2398
        %v3492 = vpop.f32.mrf.mxu0
        %v3493 = vadd.f32 %v3268, %v3492
        %v3494 = vpop.f32.mrf.mxu0
        %3495 = vmatprep.mubr.f32.mxu0 %v2431
        %3496 = vmatmul.mubr.f32.gmra.mxu0 %v2399
        %v3497 = vpop.f32.mrf.mxu0
        %v3498 = vadd.f32 %v3273, %v3497
        %v3499 = vpop.f32.mrf.mxu0
        %3500 = vmatprep.mubr.f32.mxu0 %v2432
        %3501 = vmatmul.mubr.f32.gmra.mxu0 %v2400
        %v3502 = vpop.f32.mrf.mxu0
        %v3503 = vadd.f32 %v3278, %v3502
        %v3504 = vpop.f32.mrf.mxu0
        %3505 = vmatprep.mubr.f32.mxu0 %v2433
        %3506 = vmatmul.mubr.f32.gmra.mxu0 %v2401
        %v3507 = vpop.f32.mrf.mxu0
        %v3508 = vadd.f32 %v3283, %v3507
        %v3509 = vpop.f32.mrf.mxu0
        %3510 = vdwg.mxu0
        %3511 = vmatprep.subr.mxu0 0.0
        %3512 = vmatpush1.msra.mxu0 %v2610
        %3513 = vmatprep.subr.mxu0 0.0
        %3514 = vmatpush1.msra.mxu0 %v2609
        %3515 = vmatprep.subr.mxu0 0.0
        %3516 = vmatpush1.msra.mxu0 %v2608
        %3517 = vmatprep.subr.mxu0 0.0
        %3518 = vmatpush1.msra.mxu0 %v2607
        %3519 = vmatprep.subr.mxu0 0.0
        %3520 = vmatpush1.msra.mxu0 %v2606
        %3521 = vmatprep.subr.mxu0 0.0
        %3522 = vmatpush1.msra.mxu0 %v2605
        %3523 = vmatprep.subr.mxu0 0.0
        %3524 = vmatpush1.msra.mxu0 %v2604
        %3525 = vmatprep.subr.mxu0 0.0
        %3526 = vmatpush1.msra.mxu0 %v2603
        %3527 = vmatprep.subr.mxu0 0.0
        %3528 = vmatpush1.msra.mxu0 %v2602
        %3529 = vmatprep.subr.mxu0 0.0
        %3530 = vmatpush1.msra.mxu0 %v2601
        %3531 = vmatprep.subr.mxu0 0.0
        %3532 = vmatpush1.msra.mxu0 %v2600
        %3533 = vmatprep.subr.mxu0 0.0
        %3534 = vmatpush1.msra.mxu0 %v2599
        %3535 = vmatprep.subr.mxu0 0.0
        %3536 = vmatpush1.msra.mxu0 %v2598
        %3537 = vmatprep.subr.mxu0 0.0
        %3538 = vmatpush1.msra.mxu0 %v2597
        %3539 = vmatprep.subr.mxu0 0.0
        %3540 = vmatpush1.msra.mxu0 %v2596
        %3541 = vmatprep.subr.mxu0 0.0
        %3542 = vmatpush1.msra.mxu0 %v2595
        %3543 = vmatprep.subr.mxu0 0.0
        %3544 = vmatpush2.msra.mxu0 0.0
        %3545 = vmatprep.subr.mxu0 0.0
        %3546 = vmatpush2.msra.mxu0 0.0
        %3547 = vmatprep.subr.mxu0 0.0
        %3548 = vmatpush2.msra.mxu0 0.0
        %3549 = vmatprep.subr.mxu0 0.0
        %3550 = vmatpush2.msra.mxu0 0.0
        %3551 = vmatprep.subr.mxu0 0.0
        %3552 = vmatpush2.msra.mxu0 0.0
        %3553 = vmatprep.subr.mxu0 0.0
        %3554 = vmatpush2.msra.mxu0 0.0
        %3555 = vmatprep.subr.mxu0 0.0
        %3556 = vmatpush2.msra.mxu0 0.0
        %3557 = vmatprep.subr.mxu0 0.0
        %3558 = vmatpush2.msra.mxu0 0.0
        %3559 = vmatprep.subr.mxu0 0.0
        %3560 = vmatpush2.msra.mxu0 0.0
        %3561 = vmatprep.subr.mxu0 0.0
        %3562 = vmatpush2.msra.mxu0 0.0
        %3563 = vmatprep.subr.mxu0 0.0
        %3564 = vmatpush2.msra.mxu0 0.0
        %3565 = vmatprep.subr.mxu0 0.0
        %3566 = vmatpush2.msra.mxu0 0.0
        %3567 = vmatprep.subr.mxu0 0.0
        %3568 = vmatpush2.msra.mxu0 0.0
        %3569 = vmatprep.subr.mxu0 0.0
        %3570 = vmatpush2.msra.mxu0 0.0
        %3571 = vmatprep.subr.mxu0 0.0
        %3572 = vmatpush2.msra.mxu0 0.0
        %3573 = vmatprep.subr.mxu0 0.0
        %3574 = vmatpush2.msra.mxu0 0.0
        %3575 = vmatprep.mubr.f32.mxu0 0.0
        %3576 = vmatmul.mubr.f32.gmra.mxu0 %v2434
        %v3577 = vpop.f32.mrf.mxu0
        %v3578 = vadd.f32 %v3353, %v3577
        %v3579 = vpop.f32.mrf.mxu0
        %3580 = vmatprep.mubr.f32.mxu0 0.0
        %3581 = vmatmul.mubr.f32.gmra.mxu0 %v2435
        %v3582 = vpop.f32.mrf.mxu0
        %v3583 = vadd.f32 %v3358, %v3582
        %v3584 = vpop.f32.mrf.mxu0
        %3585 = vmatprep.mubr.f32.mxu0 0.0
        %3586 = vmatmul.mubr.f32.gmra.mxu0 %v2436
        %v3587 = vpop.f32.mrf.mxu0
        %v3588 = vadd.f32 %v3363, %v3587
        %v3589 = vpop.f32.mrf.mxu0
        %3590 = vmatprep.mubr.f32.mxu0 0.0
        %3591 = vmatmul.mubr.f32.gmra.mxu0 %v2437
        %v3592 = vpop.f32.mrf.mxu0
        %v3593 = vadd.f32 %v3368, %v3592
        %v3594 = vpop.f32.mrf.mxu0
        %3595 = vmatprep.mubr.f32.mxu0 0.0
        %3596 = vmatmul.mubr.f32.gmra.mxu0 %v2438
        %v3597 = vpop.f32.mrf.mxu0
        %v3598 = vadd.f32 %v3373, %v3597
        %v3599 = vpop.f32.mrf.mxu0
        %3600 = vmatprep.mubr.f32.mxu0 0.0
        %3601 = vmatmul.mubr.f32.gmra.mxu0 %v2439
        %v3602 = vpop.f32.mrf.mxu0
        %v3603 = vadd.f32 %v3378, %v3602
        %v3604 = vpop.f32.mrf.mxu0
        %3605 = vmatprep.mubr.f32.mxu0 0.0
        %3606 = vmatmul.mubr.f32.gmra.mxu0 %v2440
        %v3607 = vpop.f32.mrf.mxu0
        %v3608 = vadd.f32 %v3383, %v3607
        %v3609 = vpop.f32.mrf.mxu0
        %3610 = vmatprep.mubr.f32.mxu0 0.0
        %3611 = vmatmul.mubr.f32.gmra.mxu0 %v2441
        %v3612 = vpop.f32.mrf.mxu0
        %v3613 = vadd.f32 %v3388, %v3612
        %v3614 = vpop.f32.mrf.mxu0
        %3615 = vmatprep.mubr.f32.mxu0 0.0
        %3616 = vmatmul.mubr.f32.gmra.mxu0 %v2442
        %v3617 = vpop.f32.mrf.mxu0
        %v3618 = vadd.f32 %v3393, %v3617
        %v3619 = vpop.f32.mrf.mxu0
        %3620 = vmatprep.mubr.f32.mxu0 0.0
        %3621 = vmatmul.mubr.f32.gmra.mxu0 %v2443
        %v3622 = vpop.f32.mrf.mxu0
        %v3623 = vadd.f32 %v3398, %v3622
        %v3624 = vpop.f32.mrf.mxu0
        %3625 = vmatprep.mubr.f32.mxu0 0.0
        %3626 = vmatmul.mubr.f32.gmra.mxu0 %v2444
        %v3627 = vpop.f32.mrf.mxu0
        %v3628 = vadd.f32 %v3403, %v3627
        %v3629 = vpop.f32.mrf.mxu0
        %3630 = vmatprep.mubr.f32.mxu0 0.0
        %3631 = vmatmul.mubr.f32.gmra.mxu0 %v2445
        %v3632 = vpop.f32.mrf.mxu0
        %v3633 = vadd.f32 %v3408, %v3632
        %v3634 = vpop.f32.mrf.mxu0
        %3635 = vmatprep.mubr.f32.mxu0 0.0
        %3636 = vmatmul.mubr.f32.gmra.mxu0 %v2446
        %v3637 = vpop.f32.mrf.mxu0
        %v3638 = vadd.f32 %v3413, %v3637
        %v3639 = vpop.f32.mrf.mxu0
        %3640 = vmatprep.mubr.f32.mxu0 0.0
        %3641 = vmatmul.mubr.f32.gmra.mxu0 %v2447
        %v3642 = vpop.f32.mrf.mxu0
        %v3643 = vadd.f32 %v3418, %v3642
        %v3644 = vpop.f32.mrf.mxu0
        %3645 = vmatprep.mubr.f32.mxu0 0.0
        %3646 = vmatmul.mubr.f32.gmra.mxu0 %v2448
        %v3647 = vpop.f32.mrf.mxu0
        %v3648 = vadd.f32 %v3423, %v3647
        %v3649 = vpop.f32.mrf.mxu0
        %3650 = vmatprep.mubr.f32.mxu0 0.0
        %3651 = vmatmul.mubr.f32.gmra.mxu0 %v2449
        %v3652 = vpop.f32.mrf.mxu0
        %v3653 = vadd.f32 %v3428, %v3652
        %v3654 = vpop.f32.mrf.mxu0
        %3655 = vmatprep.mubr.f32.mxu0 0.0
        %3656 = vmatmul.mubr.f32.gmra.mxu0 %v2450
        %v3657 = vpop.f32.mrf.mxu0
        %v3658 = vadd.f32 %v3433, %v3657
        %v3659 = vpop.f32.mrf.mxu0
        %3660 = vmatprep.mubr.f32.mxu0 0.0
        %3661 = vmatmul.mubr.f32.gmra.mxu0 %v2451
        %v3662 = vpop.f32.mrf.mxu0
        %v3663 = vadd.f32 %v3438, %v3662
        %v3664 = vpop.f32.mrf.mxu0
        %3665 = vmatprep.mubr.f32.mxu0 0.0
        %3666 = vmatmul.mubr.f32.gmra.mxu0 %v2452
        %v3667 = vpop.f32.mrf.mxu0
        %v3668 = vadd.f32 %v3443, %v3667
        %v3669 = vpop.f32.mrf.mxu0
        %3670 = vmatprep.mubr.f32.mxu0 0.0
        %3671 = vmatmul.mubr.f32.gmra.mxu0 %v2453
        %v3672 = vpop.f32.mrf.mxu0
        %v3673 = vadd.f32 %v3448, %v3672
        %v3674 = vpop.f32.mrf.mxu0
        %3675 = vmatprep.mubr.f32.mxu0 0.0
        %3676 = vmatmul.mubr.f32.gmra.mxu0 %v2454
        %v3677 = vpop.f32.mrf.mxu0
        %v3678 = vadd.f32 %v3453, %v3677
        %v3679 = vpop.f32.mrf.mxu0
        %3680 = vmatprep.mubr.f32.mxu0 0.0
        %3681 = vmatmul.mubr.f32.gmra.mxu0 %v2455
        %v3682 = vpop.f32.mrf.mxu0
        %v3683 = vadd.f32 %v3458, %v3682
        %v3684 = vpop.f32.mrf.mxu0
        %3685 = vmatprep.mubr.f32.mxu0 0.0
        %3686 = vmatmul.mubr.f32.gmra.mxu0 %v2456
        %v3687 = vpop.f32.mrf.mxu0
        %v3688 = vadd.f32 %v3463, %v3687
        %v3689 = vpop.f32.mrf.mxu0
        %3690 = vmatprep.mubr.f32.mxu0 0.0
        %3691 = vmatmul.mubr.f32.gmra.mxu0 %v2457
        %v3692 = vpop.f32.mrf.mxu0
        %v3693 = vadd.f32 %v3468, %v3692
        %v3694 = vpop.f32.mrf.mxu0
        %3695 = vmatprep.mubr.f32.mxu0 0.0
        %3696 = vmatmul.mubr.f32.gmra.mxu0 %v2458
        %v3697 = vpop.f32.mrf.mxu0
        %v3698 = vadd.f32 %v3473, %v3697
        %v3699 = vpop.f32.mrf.mxu0
        %3700 = vmatprep.mubr.f32.mxu0 0.0
        %3701 = vmatmul.mubr.f32.gmra.mxu0 %v2459
        %v3702 = vpop.f32.mrf.mxu0
        %v3703 = vadd.f32 %v3478, %v3702
        %v3704 = vpop.f32.mrf.mxu0
        %3705 = vmatprep.mubr.f32.mxu0 0.0
        %3706 = vmatmul.mubr.f32.gmra.mxu0 %v2460
        %v3707 = vpop.f32.mrf.mxu0
        %v3708 = vadd.f32 %v3483, %v3707
        %v3709 = vpop.f32.mrf.mxu0
        %3710 = vmatprep.mubr.f32.mxu0 0.0
        %3711 = vmatmul.mubr.f32.gmra.mxu0 %v2461
        %v3712 = vpop.f32.mrf.mxu0
        %v3713 = vadd.f32 %v3488, %v3712
        %v3714 = vpop.f32.mrf.mxu0
        %3715 = vmatprep.mubr.f32.mxu0 0.0
        %3716 = vmatmul.mubr.f32.gmra.mxu0 %v2462
        %v3717 = vpop.f32.mrf.mxu0
        %v3718 = vadd.f32 %v3493, %v3717
        %v3719 = vpop.f32.mrf.mxu0
        %3720 = vmatprep.mubr.f32.mxu0 0.0
        %3721 = vmatmul.mubr.f32.gmra.mxu0 %v2463
        %v3722 = vpop.f32.mrf.mxu0
        %v3723 = vadd.f32 %v3498, %v3722
        %v3724 = vpop.f32.mrf.mxu0
        %3725 = vmatprep.mubr.f32.mxu0 0.0
        %3726 = vmatmul.mubr.f32.gmra.mxu0 %v2464
        %v3727 = vpop.f32.mrf.mxu0
        %v3728 = vadd.f32 %v3503, %v3727
        %v3729 = vpop.f32.mrf.mxu0
        %3730 = vmatprep.mubr.f32.mxu0 0.0
        %3731 = vmatmul.mubr.f32.gmra.mxu0 %v2465
        %v3732 = vpop.f32.mrf.mxu0
        %v3733 = vadd.f32 %v3508, %v3732
        %v3734 = vpop.f32.mrf.mxu0
        %3735 = vdwg.mxu0
        %s3736 = scalar_lea.vmem [#allocation8], 1
        %v3737 = vld [vmem:[%s3736] sm:$0x1]
        %v3739 = vlaneseq
        %v3740 = vshrl.u32 %v3739, 7
        %v3741 = vsub.s32 0, %v3740
        %v3742 = vrot.slane %v3737, %v3741
        %v3744 = vmul.f32 %v3578, %v3742
        %v3745 = vmul.f32 %v3583, %v3742
        %v3746 = vmul.f32 %v3588, %v3742
        %v3747 = vmul.f32 %v3593, %v3742
        %v3748 = vmul.f32 %v3598, %v3742
        %v3749 = vmul.f32 %v3603, %v3742
        %v3750 = vmul.f32 %v3608, %v3742
        %v3751 = vmul.f32 %v3613, %v3742
        %v3752 = vmul.f32 %v3618, %v3742
        %v3753 = vmul.f32 %v3623, %v3742
        %v3754 = vmul.f32 %v3628, %v3742
        %v3755 = vmul.f32 %v3633, %v3742
        %v3756 = vmul.f32 %v3638, %v3742
        %v3757 = vmul.f32 %v3643, %v3742
        %v3758 = vmul.f32 %v3648, %v3742
        %v3759 = vmul.f32 %v3653, %v3742
        %v3760 = vmul.f32 %v3658, %v3742
        %v3761 = vmul.f32 %v3663, %v3742
        %v3762 = vmul.f32 %v3668, %v3742
        %v3763 = vmul.f32 %v3673, %v3742
        %v3764 = vmul.f32 %v3678, %v3742
        %v3765 = vmul.f32 %v3683, %v3742
        %v3766 = vmul.f32 %v3688, %v3742
        %v3767 = vmul.f32 %v3693, %v3742
        %v3768 = vmul.f32 %v3698, %v3742
        %v3769 = vmul.f32 %v3703, %v3742
        %v3770 = vmul.f32 %v3708, %v3742
        %v3771 = vmul.f32 %v3713, %v3742
        %v3772 = vmul.f32 %v3718, %v3742
        %v3773 = vmul.f32 %v3723, %v3742
        %v3774 = vmul.f32 %v3728, %v3742
        %v3775 = vmul.f32 %v3733, %v3742
        %s3776 = scalar_lea.vmem [#allocation9], 1
        %v3777 = vld [vmem:[%s3776] sm:$0x1]
        %v3779 = vlaneseq
        %v3780 = vshrl.u32 %v3779, 7
        %v3781 = vsub.s32 0, %v3780
        %v3782 = vrot.slane %v3777, %v3781
        %v3784 = vadd.f32 %v3744, %v3782
        %v3785 = vadd.f32 %v3745, %v3782
        %v3786 = vadd.f32 %v3746, %v3782
        %v3787 = vadd.f32 %v3747, %v3782
        %v3788 = vadd.f32 %v3748, %v3782
        %v3789 = vadd.f32 %v3749, %v3782
        %v3790 = vadd.f32 %v3750, %v3782
        %v3791 = vadd.f32 %v3751, %v3782
        %v3792 = vadd.f32 %v3752, %v3782
        %v3793 = vadd.f32 %v3753, %v3782
        %v3794 = vadd.f32 %v3754, %v3782
        %v3795 = vadd.f32 %v3755, %v3782
        %v3796 = vadd.f32 %v3756, %v3782
        %v3797 = vadd.f32 %v3757, %v3782
        %v3798 = vadd.f32 %v3758, %v3782
        %v3799 = vadd.f32 %v3759, %v3782
        %v3800 = vadd.f32 %v3760, %v3782
        %v3801 = vadd.f32 %v3761, %v3782
        %v3802 = vadd.f32 %v3762, %v3782
        %v3803 = vadd.f32 %v3763, %v3782
        %v3804 = vadd.f32 %v3764, %v3782
        %v3805 = vadd.f32 %v3765, %v3782
        %v3806 = vadd.f32 %v3766, %v3782
        %v3807 = vadd.f32 %v3767, %v3782
        %v3808 = vadd.f32 %v3768, %v3782
        %v3809 = vadd.f32 %v3769, %v3782
        %v3810 = vadd.f32 %v3770, %v3782
        %v3811 = vadd.f32 %v3771, %v3782
        %v3812 = vadd.f32 %v3772, %v3782
        %v3813 = vadd.f32 %v3773, %v3782
        %v3814 = vadd.f32 %v3774, %v3782
        %v3815 = vadd.f32 %v3775, %v3782
        %v3816 = vmax.f32 %v3784, 0.0
        %v3817 = vmax.f32 %v3785, 0.0
        %v3818 = vmax.f32 %v3786, 0.0
        %v3819 = vmax.f32 %v3787, 0.0
        %v3820 = vmax.f32 %v3788, 0.0
        %v3821 = vmax.f32 %v3789, 0.0
        %v3822 = vmax.f32 %v3790, 0.0
        %v3823 = vmax.f32 %v3791, 0.0
        %v3824 = vmax.f32 %v3792, 0.0
        %v3825 = vmax.f32 %v3793, 0.0
        %v3826 = vmax.f32 %v3794, 0.0
        %v3827 = vmax.f32 %v3795, 0.0
        %v3828 = vmax.f32 %v3796, 0.0
        %v3829 = vmax.f32 %v3797, 0.0
        %v3830 = vmax.f32 %v3798, 0.0
        %v3831 = vmax.f32 %v3799, 0.0
        %v3832 = vmax.f32 %v3800, 0.0
        %v3833 = vmax.f32 %v3801, 0.0
        %v3834 = vmax.f32 %v3802, 0.0
        %v3835 = vmax.f32 %v3803, 0.0
        %v3836 = vmax.f32 %v3804, 0.0
        %v3837 = vmax.f32 %v3805, 0.0
        %v3838 = vmax.f32 %v3806, 0.0
        %v3839 = vmax.f32 %v3807, 0.0
        %v3840 = vmax.f32 %v3808, 0.0
        %v3841 = vmax.f32 %v3809, 0.0
        %v3842 = vmax.f32 %v3810, 0.0
        %v3843 = vmax.f32 %v3811, 0.0
        %v3844 = vmax.f32 %v3812, 0.0
        %v3845 = vmax.f32 %v3813, 0.0
        %v3846 = vmax.f32 %v3814, 0.0
        %v3847 = vmax.f32 %v3815, 0.0
        %3848 = vxpose.xlu0.b32.start [1/16] %v3816, 128
        %3849 = vxpose.xlu0.b32.cont [2/16] %v3817, 128
        %3850 = vxpose.xlu0.b32.cont [3/16] %v3818, 128
        %3851 = vxpose.xlu0.b32.cont [4/16] %v3819, 128
        %3852 = vxpose.xlu0.b32.cont [5/16] %v3820, 128
        %3853 = vxpose.xlu0.b32.cont [6/16] %v3821, 128
        %3854 = vxpose.xlu0.b32.cont [7/16] %v3822, 128
        %3855 = vxpose.xlu0.b32.cont [8/16] %v3823, 128
        %3856 = vxpose.xlu0.b32.cont [9/16] %v3824, 128
        %3857 = vxpose.xlu0.b32.cont [10/16] %v3825, 128
        %3858 = vxpose.xlu0.b32.cont [11/16] %v3826, 128
        %3859 = vxpose.xlu0.b32.cont [12/16] %v3827, 128
        %3860 = vxpose.xlu0.b32.cont [13/16] %v3828, 128
        %3861 = vxpose.xlu0.b32.cont [14/16] %v3829, 128
        %3862 = vxpose.xlu0.b32.cont [15/16] %v3830, 128
        %3863 = vxpose.xlu0.b32.end [16/16] %v3831, 128
        %v3864 = vpop.trf.xlu0
        %v3865 = vpop.trf.xlu0
        %v3866 = vpop.trf.xlu0
        %v3867 = vpop.trf.xlu0
        %v3868 = vpop.trf.xlu0
        %v3869 = vpop.trf.xlu0
        %v3870 = vpop.trf.xlu0
        %v3871 = vpop.trf.xlu0
        %v3872 = vpop.trf.xlu0
        %v3873 = vpop.trf.xlu0
        %v3874 = vpop.trf.xlu0
        %v3875 = vpop.trf.xlu0
        %v3876 = vpop.trf.xlu0
        %v3877 = vpop.trf.xlu0
        %v3878 = vpop.trf.xlu0
        %v3879 = vpop.trf.xlu0
        %3880 = vxpose.xlu0.b32.start [1/16] %v3832, 128
        %3881 = vxpose.xlu0.b32.cont [2/16] %v3833, 128
        %3882 = vxpose.xlu0.b32.cont [3/16] %v3834, 128
        %3883 = vxpose.xlu0.b32.cont [4/16] %v3835, 128
        %3884 = vxpose.xlu0.b32.cont [5/16] %v3836, 128
        %3885 = vxpose.xlu0.b32.cont [6/16] %v3837, 128
        %3886 = vxpose.xlu0.b32.cont [7/16] %v3838, 128
        %3887 = vxpose.xlu0.b32.cont [8/16] %v3839, 128
        %3888 = vxpose.xlu0.b32.cont [9/16] %v3840, 128
        %3889 = vxpose.xlu0.b32.cont [10/16] %v3841, 128
        %3890 = vxpose.xlu0.b32.cont [11/16] %v3842, 128
        %3891 = vxpose.xlu0.b32.cont [12/16] %v3843, 128
        %3892 = vxpose.xlu0.b32.cont [13/16] %v3844, 128
        %3893 = vxpose.xlu0.b32.cont [14/16] %v3845, 128
        %3894 = vxpose.xlu0.b32.cont [15/16] %v3846, 128
        %3895 = vxpose.xlu0.b32.end [16/16] %v3847, 128
        %v3896 = vpop.trf.xlu0
        %v3897 = vpop.trf.xlu0
        %v3898 = vpop.trf.xlu0
        %v3899 = vpop.trf.xlu0
        %v3900 = vpop.trf.xlu0
        %v3901 = vpop.trf.xlu0
        %v3902 = vpop.trf.xlu0
        %v3903 = vpop.trf.xlu0
        %v3904 = vpop.trf.xlu0
        %v3905 = vpop.trf.xlu0
        %v3906 = vpop.trf.xlu0
        %v3907 = vpop.trf.xlu0
        %v3908 = vpop.trf.xlu0
        %v3909 = vpop.trf.xlu0
        %v3910 = vpop.trf.xlu0
        %v3911 = vpop.trf.xlu0
        %3912 = vst [vmem:[%s259] sm:$0xff] %v3864
        %3913 = vst [vmem:[%s259 + $0x8] sm:$0xff] %v3896
        %3914 = vst [vmem:[%s259 + $0x10] sm:$0xff] %v3865
        %3915 = vst [vmem:[%s259 + $0x18] sm:$0xff] %v3897
        %s3916 = sand.u32 %s120, 1
        %s3917 = scalar_lea.sflag [#allocation5], %s3916
        %s3918 = sand.u32 %s120, 1
        %s3919 = smul.addr %s3918, 32
        %s3920 = scalar_lea.vmem [#allocation11], %s3919
        // Predicated region
        $region53: #{tpu_custom_call.1} parent=35 // pred_check
          %p3921 = pneg %p130
        $region54: #{tpu_custom_call.1} parent=35 // pred_check_branch
          %3923 = sbr.rel (%p3921) target = $region56
        $region55: #{tpu_custom_call.1} parent=35 // pred_region
          %s3925 = ssub.s32 512, 512
          %3926 = vsyncadd %s3917, %s3925
          %s3927 = smul.addr %s23, 4
          %s3928 = smul.addr %s3927, 128
          %s3929 = scalar_lea.hbm %s4, %s3928
          %s3930 = sshll.u32 %s3920, 4
          %s3931 = int_to_ptr.vmem [resolvable:$true] %s3930
          %3936 = dma.vmem_to_hbm [thread:$0]  %s3931, 512, %s3929, %s3917, 256, 256, 16
        $region56: #{tpu_custom_call.1} parent=35 // pred_fallthru
          _
      $region36: #{tpu_custom_call.1} parent=5 // pred_fallthru
        _
      %p3937 = scmp.le.s32.totalorder 2, %s18
      // Predicated region
      $region57: #{tpu_custom_call.1} parent=5 // pred_check
        %p3938 = pneg %p3937
      $region58: #{tpu_custom_call.1} parent=5 // pred_check_branch
        %3940 = sbr.rel (%p3938) target = $region60
      $region59: #{tpu_custom_call.1} parent=5 // pred_region
        %s3941 = ssub.s32 %s18, 2
        // Predicated region
        $region61: #{tpu_custom_call.1} parent=59 // pred_check
          %p3942 = pneg %p136
        $region62: #{tpu_custom_call.1} parent=59 // pred_check_branch
          %3944 = sbr.rel (%p3942) target = $region64
        $region63: #{tpu_custom_call.1} parent=59 // pred_region
          %s3945 = sand.u32 %s121, 1
          %s3946 = scalar_lea.sflag [#allocation5], %s3945
          %s3947 = sand.u32 %s121, 1
          %s3948 = smul.addr %s3947, 32
          %s3949 = scalar_lea.vmem [#allocation11], %s3948
          %3950 = dma.done %s3946, 512
        $region64: #{tpu_custom_call.1} parent=59 // pred_fallthru
          _
      $region60: #{tpu_custom_call.1} parent=5 // pred_fallthru
        _
    $region6: #{tpu_custom_call.1} parent=1 // loop_footer
      %s22 = sadd.s32 1, %s18
    $region7: #{tpu_custom_call.1} parent=1 // loop_footer_branch
      %17 = sbr.rel target = $region3
    $region8: #{tpu_custom_call.1} parent=1 // loop_exit
      _
    %3951 = vsyncpa [#allocation4], 1
    %s3952 = scalar_lea.sflag [#allocation4], 1
    %3953 = vsyncpa %s3952, 1
    %3954 = vsyncpa [#allocation7], 1
    %3955 = vsyncpa [#allocation10], 1
    %3956 = vsyncpa [#allocation5], 1
    %s3957 = scalar_lea.sflag [#allocation5], 1
    %3958 = vsyncpa %s3957, 1

</llo_original>
